<compile_context>
chip_gen: v7x
topology: tpu7x:2x2x1
jax: 0.10.0
libtpu: 0.0.40
codegen_flags: <defaults>
</compile_context>

<pallas_src>
import functools

import jax
import jax.numpy as jnp
from jax.experimental import pallas as pl
from jax.experimental.pallas import tpu as pltpu


# ----------------------------------------------------------------------------
# Fused encoder kernel
# ----------------------------------------------------------------------------
def _ts_encoder_kernel(x0_ref, fcw_ref, fcb_ref,
                       w1h_ref, b1h_ref, w2h_ref, b2h_ref,
                       pw_ref, pb_ref, wf1_ref, bf1_ref, wf2_ref, bf2_ref,
                       o_ref, *, nb, seq_len, cph, cpo, out_dims, depth):
    f32, bf16 = jnp.float32, jnp.bfloat16
    T = seq_len

    def dilated_conv(x, w_cat, bias, d, cin_p, cout_p):
        """GELU -> SamePadConv(K=3, dilation=d) in weight-concat form.

        x: (nb, T, cin_p) f32; w_cat: (cin_p, 3*cout_p) bf16 = [W0|W1|W2];
        bias: (1, cout_p) f32.  One matmul (N = 3*cout_p), then
        y[t] = p0[t-d] + p1[t] + p2[t+d] via two static zero-extended shifts.
        """
        # bf16 BEFORE any data movement; tanh GELU goes to the EUP slot.
        h = jax.nn.gelu(x, approximate=True).astype(bf16)            # (nb, T, cin_p)
        p = jnp.dot(h.reshape(nb * T, cin_p), w_cat,
                    preferred_element_type=f32).reshape(nb, T, 3 * cout_p)
        p0 = p[:, :, :cout_p]                 # pairs with h[t - d]
        p1 = p[:, :, cout_p:2 * cout_p]       # pairs with h[t]
        p2 = p[:, :, 2 * cout_p:]             # pairs with h[t + d]
        y = p1 + bias
        if d < T:                             # static dilation -> static shifts
            z = jnp.zeros((nb, d, cout_p), f32)
            y = y + jnp.concatenate([z, p0[:, :T - d, :]], axis=1)    # shift +d along T
            y = y + jnp.concatenate([p2[:, d:, :], z], axis=1)        # shift -d along T
        return y

    # --- NaN mask + input_fc (Linear(1, hidden)); broadcast mul/add on the VPU ---
    x0 = x0_ref[...].astype(f32)                      # (nb, T, 1)
    x0 = jnp.where(jnp.isnan(x0), jnp.zeros_like(x0), x0)
    x = x0 * fcw_ref[...] + fcb_ref[...]              # (nb, T, cph); padded lanes stay exactly 0

    # --- `depth` hidden->hidden ConvBlocks: (gelu -> conv) x2 + identity residual ---
    for i in range(depth):
        d = 2 ** i
        h = dilated_conv(x, w1h_ref[i], b1h_ref[i], d, cph, cph)
        x = dilated_conv(h, w2h_ref[i], b2h_ref[i], d, cph, cph) + x

    # --- final ConvBlock hidden->output: residual through the 1x1 projector (pre-GELU x) ---
    d = 2 ** depth
    res = jnp.dot(x.reshape(nb * T, cph).astype(bf16), pw_ref[...],
                  preferred_element_type=f32).reshape(nb, T, cpo) + pb_ref[...]
    h = dilated_conv(x, wf1_ref[...], bf1_ref[...], d, cph, cpo)
    x = dilated_conv(h, wf2_ref[...], bf2_ref[...], d, cpo, cpo) + res

    # repr_dropout(p=0.1) is the identity in eval mode.
    # TODO(synk): training-mode dropout (random mask + 1/0.9 scale) not implemented.
    o_ref[...] = x[:, :, :out_dims]                   # store only the real channels


# ----------------------------------------------------------------------------
# Parameter construction / packing
# ----------------------------------------------------------------------------
def init_params(key, input_dims, output_dims, hidden_dims, depth):
    """Deterministic synthetic parameters matching TSEncoder.__init__ shapes."""
    assert input_dims == 1, "forward unsqueezes to feature dim 1 -> input_fc is Linear(1, hidden)"
    assert depth >= 1
    keys = iter(jax.random.split(key, 2 + 6 * (depth + 1)))

    def rnd(shape):
        return jax.random.normal(next(keys), shape, jnp.float32) * 0.05

    params = {
        "fc_w": rnd((input_dims, hidden_dims)),       # Linear(1, hidden) as (in, out)
        "fc_b": rnd((hidden_dims,)),
        "blocks": [],
    }
    channels = [hidden_dims] * depth + [output_dims]
    for i, cout in enumerate(channels):
        cin = hidden_dims if i == 0 else channels[i - 1]
        final = i == len(channels) - 1
        has_proj = (cin != cout) or final
        params["blocks"].append({
            "w1": rnd((3, cin, cout)),                # SamePadConv weight as (K, Cin, Cout)
            "b1": rnd((cout,)),
            "w2": rnd((3, cout, cout)),
            "b2": rnd((cout,)),
            "dilation": 2 ** i,
            "proj_w": rnd((cin, cout)) if has_proj else None,
            "proj_b": rnd((cout,)) if has_proj else None,
        })
    return params


def _round_up(x, m):
    return ((x + m - 1) // m) * m


def pack_params(params, hidden_dims, output_dims, depth):
    """Pad channels to lane-dense multiples of 128, lay conv weights out as
    [W0|W1|W2] along the output dim (weight-concat conv), stack the hidden
    blocks, cast MXU weights to bf16."""
    cph = _round_up(max(hidden_dims, 1), 128)
    cpo = _round_up(max(output_dims, 1), 128)
    f32, bf16 = jnp.float32, jnp.bfloat16
    blocks = params["blocks"]
    assert len(blocks) == depth + 1
    for b in blocks[:-1]:
        assert b["proj_w"] is None                    # hidden->hidden: identity residual
    assert blocks[-1]["proj_w"] is not None           # final block always has a projector

    def pad_w_cat(w, cin_p, cout_p):                  # (3, cin, cout) -> (cin_p, 3*cout_p)
        w = jnp.pad(w.astype(f32),
                    ((0, 0), (0, cin_p - w.shape[1]), (0, cout_p - w.shape[2])))
        return jnp.concatenate([w[0], w[1], w[2]], axis=-1)

    def pad_b(b, cout_p):                             # (cout,) -> (1, cout_p)
        b2 = b.astype(f32).reshape(1, -1)
        return jnp.pad(b2, ((0, 0), (0, cout_p - b2.shape[1])))

    fin = blocks[-1]
    return {
        "fcw": jnp.pad(params["fc_w"].astype(f32),
                       ((0, 0), (0, cph - params["fc_w"].shape[1]))),        # (1, cph), f32 (VPU)
        "fcb": pad_b(params["fc_b"], cph),
        "w1h": jnp.stack([pad_w_cat(b["w1"], cph, cph) for b in blocks[:depth]]).astype(bf16),
        "b1h": jnp.stack([pad_b(b["b1"], cph) for b in blocks[:depth]]),
        "w2h": jnp.stack([pad_w_cat(b["w2"], cph, cph) for b in blocks[:depth]]).astype(bf16),
        "b2h": jnp.stack([pad_b(b["b2"], cph) for b in blocks[:depth]]),
        "pw": jnp.pad(fin["proj_w"].astype(f32),
                      ((0, cph - fin["proj_w"].shape[0]),
                       (0, cpo - fin["proj_w"].shape[1]))).astype(bf16),
        "pb": pad_b(fin["proj_b"], cpo),
        "wf1": pad_w_cat(fin["w1"], cph, cpo).astype(bf16),
        "bf1": pad_b(fin["b1"], cpo),
        "wf2": pad_w_cat(fin["w2"], cpo, cpo).astype(bf16),
        "bf2": pad_b(fin["b2"], cpo),
    }


# ----------------------------------------------------------------------------
# Forward wrapper
# ----------------------------------------------------------------------------
def _vmem_capacity_bytes():
    """Per-generation VMEM capacity; conservative 64 MiB (v7x) fallback."""
    try:
        info = pltpu.get_tpu_info()
        cap = getattr(info, "vmem_capacity_bytes", None)
        if cap:
            return int(cap)
    except Exception:
        pass
    return 64 << 20


def _largest_divisor_leq(n, cap):
    cap = max(1, min(n, int(cap)))
    for d in range(cap, 0, -1):
        if n % d == 0:
            return d
    return 1


def ts_encoder_forward(ts, packed, *, output_dims):
    """ts: (B, T, C) -> (B, C, T, output_dims), matching TSEncoder.forward (eval mode)."""
    B, T, C_ts = ts.shape
    N = B * C_ts
    cph = packed["fcw"].shape[1]
    cpo = packed["pb"].shape[1]
    depth = packed["w1h"].shape[0]

    # transpose(1,2) + channel_independence + unsqueeze(-1): one pass over the tiny raw series.
    x0 = jnp.transpose(ts, (0, 2, 1)).reshape(N, T, 1).astype(jnp.float32)

    weights = (packed["fcw"], packed["fcb"], packed["w1h"], packed["b1h"],
               packed["w2h"], packed["b2h"], packed["pw"], packed["pb"],
               packed["wf1"], packed["bf1"], packed["wf2"], packed["bf2"])
    wbytes = sum(int(a.size) * a.dtype.itemsize for a in weights)

    # Generation-aware VMEM budget (v5e/v6e ~96-100 MiB, v7x ~48 MiB); derive nb FROM the
    # budget so the scoped limit can never fall below the kernel's true requirement.
    cap = _vmem_capacity_bytes()
    budget = min(cap * 3 // 4, 100 << 20)
    cm = max(cph, cpo)
    # Per (sample, timestep) bytes: resident x + bf16 gelu copy + 3*cout f32 matmul out
    # + shift temps + residual + double-buffered in/out blocks.  Deliberately generous.
    per_row = 4 * cph + 4 * cpo + 28 * cm + 8 * output_dims + 8
    avail = budget - 2 * wbytes - (2 << 20)
    nb_max = max(1, avail // (T * per_row))
    # nb divides N -> no row padding, no post-kernel slice (output reshape is metadata-only).
    nb = _largest_divisor_leq(N, min(nb_max, N))
    grid = (N // nb,)
    # TODO(synk): on v7x, prefer >= 2 grid steps when N*T is large so both TensorCores get work.

    kern = functools.partial(_ts_encoder_kernel, nb=nb, seq_len=T,
                             cph=cph, cpo=cpo, out_dims=output_dims, depth=depth)

    out = pl.pallas_call(
        kern,
        out_shape=jax.ShapeDtypeStruct((N, T, output_dims), jnp.float32),
        grid=grid,
        in_specs=[
            pl.BlockSpec((nb, T, 1), lambda n: (n, 0, 0)),               # raw series
            pl.BlockSpec((1, cph), lambda n: (0, 0)),                    # fc_w
            pl.BlockSpec((1, cph), lambda n: (0, 0)),                    # fc_b
            pl.BlockSpec((depth, cph, 3 * cph), lambda n: (0, 0, 0)),    # hidden conv1 weights [W0|W1|W2]
            pl.BlockSpec((depth, 1, cph), lambda n: (0, 0, 0)),          # hidden conv1 biases
            pl.BlockSpec((depth, cph, 3 * cph), lambda n: (0, 0, 0)),    # hidden conv2 weights
            pl.BlockSpec((depth, 1, cph), lambda n: (0, 0, 0)),          # hidden conv2 biases
            pl.BlockSpec((cph, cpo), lambda n: (0, 0)),                  # final 1x1 projector weight
            pl.BlockSpec((1, cpo), lambda n: (0, 0)),                    # final 1x1 projector bias
            pl.BlockSpec((cph, 3 * cpo), lambda n: (0, 0)),              # final conv1 weight
            pl.BlockSpec((1, cpo), lambda n: (0, 0)),                    # final conv1 bias
            pl.BlockSpec((cpo, 3 * cpo), lambda n: (0, 0)),              # final conv2 weight
            pl.BlockSpec((1, cpo), lambda n: (0, 0)),                    # final conv2 bias
        ],
        out_specs=pl.BlockSpec((nb, T, output_dims), lambda n: (n, 0, 0)),
        compiler_params=pltpu.CompilerParams(
            dimension_semantics=("parallel",),
            vmem_limit_bytes=int(budget),
        ),
    )(x0, *weights)

    # Kernel already wrote exactly the real channels for exactly N rows -> view-only reshape.
    return out.reshape(B, C_ts, T, output_dims)


# ----------------------------------------------------------------------------
# Pure-JAX f32 reference (mirrors the PyTorch module)
# ----------------------------------------------------------------------------
def ts_encoder_reference(ts, params):
    B, T, C = ts.shape
    x = jnp.transpose(ts, (0, 2, 1)).reshape(B * C, T)[..., None]
    x = jnp.where(jnp.isnan(x), 0.0, x).astype(jnp.float32)
    x = x @ params["fc_w"] + params["fc_b"]

    def same_conv(h, w, b, d):
        K = w.shape[0]
        pad = (K - 1) * d // 2
        hp = jnp.pad(h, ((0, 0), (pad, pad), (0, 0)))
        Tt = h.shape[1]
        return sum(hp[:, k * d:k * d + Tt, :] @ w[k] for k in range(K)) + b

    for blk in params["blocks"]:
        residual = x if blk["proj_w"] is None else x @ blk["proj_w"] + blk["proj_b"]
        h = same_conv(jax.nn.gelu(x, approximate=False), blk["w1"], blk["b1"], blk["dilation"])
        h = same_conv(jax.nn.gelu(h, approximate=False), blk["w2"], blk["b2"], blk["dilation"])
        x = h + residual
    return x.reshape(B, C, T, x.shape[-1])


if __name__ == "__main__":
    B, T, C = 2, 16, 3
    input_dims, hidden_dims, output_dims, depth = 1, 16, 32, 2

    key = jax.random.PRNGKey(0)
    k_ts, k_p = jax.random.split(key)
    ts = jax.random.normal(k_ts, (B, T, C), jnp.float32)
    params = init_params(k_p, input_dims, output_dims, hidden_dims, depth)
    packed = pack_params(params, hidden_dims, output_dims, depth)

    fwd = jax.jit(functools.partial(ts_encoder_forward, output_dims=output_dims))
    out = fwd(ts, packed)
    jax.block_until_ready(out)

    assert out.shape == (B, C, T, output_dims), out.shape
    assert bool(jnp.all(jnp.isfinite(out)))

    ref = ts_encoder_reference(ts, params)
    err = float(jnp.max(jnp.abs(out - ref)))
    scale = float(jnp.max(jnp.abs(ref)))
    # bf16 MXU operands + tanh-GELU in the kernel vs f32 / erf-GELU reference.
    assert err <= 1e-2 + 0.05 * scale, (err, scale)

    print("KERNEL_OK")
</pallas_src>

<mosaic_0001>
module attributes {stable_mosaic.version = 11 : i64} {
  func.func @_ts_encoder_kernel(%arg0: i32, %arg1: memref<6x16x1xf32, #tpu.memory_space<vmem>>, %arg2: memref<1x128xf32, #tpu.memory_space<vmem>>, %arg3: memref<1x128xf32, #tpu.memory_space<vmem>>, %arg4: memref<2x128x384xbf16, #tpu.memory_space<vmem>>, %arg5: memref<2x1x128xf32, #tpu.memory_space<vmem>>, %arg6: memref<2x128x384xbf16, #tpu.memory_space<vmem>>, %arg7: memref<2x1x128xf32, #tpu.memory_space<vmem>>, %arg8: memref<128x128xbf16, #tpu.memory_space<vmem>>, %arg9: memref<1x128xf32, #tpu.memory_space<vmem>>, %arg10: memref<128x384xbf16, #tpu.memory_space<vmem>>, %arg11: memref<1x128xf32, #tpu.memory_space<vmem>>, %arg12: memref<128x384xbf16, #tpu.memory_space<vmem>>, %arg13: memref<1x128xf32, #tpu.memory_space<vmem>>, %arg14: memref<6x16x32xf32, #tpu.memory_space<vmem>>) attributes {dimension_semantics = [#tpu.dimension_semantics<parallel>], iteration_bounds = array<i64: 1>, scalar_prefetch = 0 : i64, scratch_operands = 0 : i64, tpu.core_type = #tpu.core_type<tc>, window_params = [{transform_indices = @transform_0, window_bounds = array<i64: 6, 16, 1>}, {pipeline_mode = #tpu.pipeline_mode<synchronous>, transform_indices = @transform_1, window_bounds = array<i64: 1, 128>}, {pipeline_mode = #tpu.pipeline_mode<synchronous>, transform_indices = @transform_2, window_bounds = array<i64: 1, 128>}, {pipeline_mode = #tpu.pipeline_mode<synchronous>, transform_indices = @transform_3, window_bounds = array<i64: 2, 128, 384>}, {pipeline_mode = #tpu.pipeline_mode<synchronous>, transform_indices = @transform_4, window_bounds = array<i64: 2, 1, 128>}, {pipeline_mode = #tpu.pipeline_mode<synchronous>, transform_indices = @transform_5, window_bounds = array<i64: 2, 128, 384>}, {pipeline_mode = #tpu.pipeline_mode<synchronous>, transform_indices = @transform_6, window_bounds = array<i64: 2, 1, 128>}, {pipeline_mode = #tpu.pipeline_mode<synchronous>, transform_indices = @transform_7, window_bounds = array<i64: 128, 128>}, {pipeline_mode = #tpu.pipeline_mode<synchronous>, transform_indices = @transform_8, window_bounds = array<i64: 1, 128>}, {pipeline_mode = #tpu.pipeline_mode<synchronous>, transform_indices = @transform_9, window_bounds = array<i64: 128, 384>}, {pipeline_mode = #tpu.pipeline_mode<synchronous>, transform_indices = @transform_10, window_bounds = array<i64: 1, 128>}, {pipeline_mode = #tpu.pipeline_mode<synchronous>, transform_indices = @transform_11, window_bounds = array<i64: 128, 384>}, {pipeline_mode = #tpu.pipeline_mode<synchronous>, transform_indices = @transform_12, window_bounds = array<i64: 1, 128>}, {transform_indices = @transform_13, window_bounds = array<i64: 6, 16, 32>}]} {
    %c0 = arith.constant 0 : index
    %c0_0 = arith.constant 0 : index
    %c0_1 = arith.constant 0 : index
    %0 = vector.load %arg1[%c0, %c0_0, %c0_1] : memref<6x16x1xf32, #tpu.memory_space<vmem>>, vector<6x16x1xf32>
    %1 = arith.cmpf one, %0, %0 : vector<6x16x1xf32>
    %cst = arith.constant 0.000000e+00 : f32
    %2 = vector.broadcast %cst : f32 to vector<6x16x1xf32>
    %3 = arith.select %1, %2, %0 : vector<6x16x1xi1>, vector<6x16x1xf32>
    %c0_2 = arith.constant 0 : index
    %c0_3 = arith.constant 0 : index
    %4 = vector.load %arg2[%c0_2, %c0_3] : memref<1x128xf32, #tpu.memory_space<vmem>>, vector<1x128xf32>
    %5 = vector.shape_cast %4 : vector<1x128xf32> to vector<1x1x128xf32>
    %6 = vector.broadcast %3 : vector<6x16x1xf32> to vector<6x16x128xf32>
    %7 = vector.broadcast %5 : vector<1x1x128xf32> to vector<6x16x128xf32>
    %8 = arith.mulf %6, %7 : vector<6x16x128xf32>
    %c0_4 = arith.constant 0 : index
    %c0_5 = arith.constant 0 : index
    %9 = vector.load %arg3[%c0_4, %c0_5] : memref<1x128xf32, #tpu.memory_space<vmem>>, vector<1x128xf32>
    %10 = vector.shape_cast %9 : vector<1x128xf32> to vector<1x1x128xf32>
    %11 = vector.broadcast %10 : vector<1x1x128xf32> to vector<6x16x128xf32>
    %12 = arith.addf %8, %11 : vector<6x16x128xf32>
    %c0_6 = arith.constant 0 : index
    %c0_7 = arith.constant 0 : index
    %c0_8 = arith.constant 0 : index
    %13 = vector.load %arg4[%c0_6, %c0_7, %c0_8] : memref<2x128x384xbf16, #tpu.memory_space<vmem>>, vector<1x128x384xbf16>
    %14 = vector.shape_cast %13 : vector<1x128x384xbf16> to vector<128x384xbf16>
    %c0_9 = arith.constant 0 : index
    %c0_10 = arith.constant 0 : index
    %c0_11 = arith.constant 0 : index
    %15 = vector.load %arg5[%c0_9, %c0_10, %c0_11] : memref<2x1x128xf32, #tpu.memory_space<vmem>>, vector<1x1x128xf32>
    %16 = vector.shape_cast %15 : vector<1x1x128xf32> to vector<1x128xf32>
    %17 = arith.mulf %12, %12 : vector<6x16x128xf32>
    %18 = arith.mulf %12, %17 : vector<6x16x128xf32>
    %cst_12 = arith.constant 4.471500e-02 : f32
    %19 = vector.broadcast %cst_12 : f32 to vector<6x16x128xf32>
    %20 = arith.mulf %19, %18 : vector<6x16x128xf32>
    %21 = arith.addf %12, %20 : vector<6x16x128xf32>
    %cst_13 = arith.constant 0.797884583 : f32
    %22 = vector.broadcast %cst_13 : f32 to vector<6x16x128xf32>
    %23 = arith.mulf %22, %21 : vector<6x16x128xf32>
    %24 = math.tanh %23 : vector<6x16x128xf32>
    %cst_14 = arith.constant 1.000000e+00 : f32
    %25 = vector.broadcast %cst_14 : f32 to vector<6x16x128xf32>
    %26 = arith.addf %25, %24 : vector<6x16x128xf32>
    %cst_15 = arith.constant 5.000000e-01 : f32
    %27 = vector.broadcast %cst_15 : f32 to vector<6x16x128xf32>
    %28 = arith.mulf %27, %26 : vector<6x16x128xf32>
    %29 = arith.mulf %12, %28 : vector<6x16x128xf32>
    %30 = arith.truncf %29 : vector<6x16x128xf32> to vector<6x16x128xbf16>
    %31 = vector.shape_cast %30 : vector<6x16x128xbf16> to vector<96x128xbf16>
    %cst_16 = arith.constant dense<0.000000e+00> : vector<96x384xf32>
    %32 = tpu.matmul %31, %14, %cst_16 {dimension_numbers = #tpu.dot_dimension_numbers<[1], [0], [0], [1], [0, 0, 1, 1], [], []>} : vector<96x128xbf16>, vector<128x384xbf16>, vector<96x384xf32> -> vector<96x384xf32>
    %33 = vector.shape_cast %32 : vector<96x384xf32> to vector<6x16x384xf32>
    %34 = vector.extract_strided_slice %33 {offsets = [0, 0, 0], sizes = [6, 16, 128], strides = [1, 1, 1]} : vector<6x16x384xf32> to vector<6x16x128xf32>
    %35 = vector.extract_strided_slice %33 {offsets = [0, 0, 128], sizes = [6, 16, 128], strides = [1, 1, 1]} : vector<6x16x384xf32> to vector<6x16x128xf32>
    %36 = vector.extract_strided_slice %33 {offsets = [0, 0, 256], sizes = [6, 16, 128], strides = [1, 1, 1]} : vector<6x16x384xf32> to vector<6x16x128xf32>
    %37 = vector.shape_cast %16 : vector<1x128xf32> to vector<1x1x128xf32>
    %38 = vector.broadcast %37 : vector<1x1x128xf32> to vector<6x16x128xf32>
    %39 = arith.addf %35, %38 : vector<6x16x128xf32>
    %cst_17 = arith.constant 0.000000e+00 : f32
    %40 = vector.broadcast %cst_17 : f32 to vector<6x1x128xf32>
    %41 = vector.extract_strided_slice %34 {offsets = [0, 0, 0], sizes = [6, 15, 128], strides = [1, 1, 1]} : vector<6x16x128xf32> to vector<6x15x128xf32>
    %42 = tpu.concatenate %40, %41 in 1 : vector<6x1x128xf32>, vector<6x15x128xf32> -> vector<6x16x128xf32>
    %43 = arith.addf %39, %42 : vector<6x16x128xf32>
    %44 = vector.extract_strided_slice %36 {offsets = [0, 1, 0], sizes = [6, 15, 128], strides = [1, 1, 1]} : vector<6x16x128xf32> to vector<6x15x128xf32>
    %45 = tpu.concatenate %44, %40 in 1 : vector<6x15x128xf32>, vector<6x1x128xf32> -> vector<6x16x128xf32>
    %46 = arith.addf %43, %45 : vector<6x16x128xf32>
    %c0_18 = arith.constant 0 : index
    %c0_19 = arith.constant 0 : index
    %c0_20 = arith.constant 0 : index
    %47 = vector.load %arg6[%c0_18, %c0_19, %c0_20] : memref<2x128x384xbf16, #tpu.memory_space<vmem>>, vector<1x128x384xbf16>
    %48 = vector.shape_cast %47 : vector<1x128x384xbf16> to vector<128x384xbf16>
    %c0_21 = arith.constant 0 : index
    %c0_22 = arith.constant 0 : index
    %c0_23 = arith.constant 0 : index
    %49 = vector.load %arg7[%c0_21, %c0_22, %c0_23] : memref<2x1x128xf32, #tpu.memory_space<vmem>>, vector<1x1x128xf32>
    %50 = vector.shape_cast %49 : vector<1x1x128xf32> to vector<1x128xf32>
    %51 = arith.mulf %46, %46 : vector<6x16x128xf32>
    %52 = arith.mulf %46, %51 : vector<6x16x128xf32>
    %cst_24 = arith.constant 4.471500e-02 : f32
    %53 = vector.broadcast %cst_24 : f32 to vector<6x16x128xf32>
    %54 = arith.mulf %53, %52 : vector<6x16x128xf32>
    %55 = arith.addf %46, %54 : vector<6x16x128xf32>
    %cst_25 = arith.constant 0.797884583 : f32
    %56 = vector.broadcast %cst_25 : f32 to vector<6x16x128xf32>
    %57 = arith.mulf %56, %55 : vector<6x16x128xf32>
    %58 = math.tanh %57 : vector<6x16x128xf32>
    %cst_26 = arith.constant 1.000000e+00 : f32
    %59 = vector.broadcast %cst_26 : f32 to vector<6x16x128xf32>
    %60 = arith.addf %59, %58 : vector<6x16x128xf32>
    %cst_27 = arith.constant 5.000000e-01 : f32
    %61 = vector.broadcast %cst_27 : f32 to vector<6x16x128xf32>
    %62 = arith.mulf %61, %60 : vector<6x16x128xf32>
    %63 = arith.mulf %46, %62 : vector<6x16x128xf32>
    %64 = arith.truncf %63 : vector<6x16x128xf32> to vector<6x16x128xbf16>
    %65 = vector.shape_cast %64 : vector<6x16x128xbf16> to vector<96x128xbf16>
    %cst_28 = arith.constant dense<0.000000e+00> : vector<96x384xf32>
    %66 = tpu.matmul %65, %48, %cst_28 {dimension_numbers = #tpu.dot_dimension_numbers<[1], [0], [0], [1], [0, 0, 1, 1], [], []>} : vector<96x128xbf16>, vector<128x384xbf16>, vector<96x384xf32> -> vector<96x384xf32>
    %67 = vector.shape_cast %66 : vector<96x384xf32> to vector<6x16x384xf32>
    %68 = vector.extract_strided_slice %67 {offsets = [0, 0, 0], sizes = [6, 16, 128], strides = [1, 1, 1]} : vector<6x16x384xf32> to vector<6x16x128xf32>
    %69 = vector.extract_strided_slice %67 {offsets = [0, 0, 128], sizes = [6, 16, 128], strides = [1, 1, 1]} : vector<6x16x384xf32> to vector<6x16x128xf32>
    %70 = vector.extract_strided_slice %67 {offsets = [0, 0, 256], sizes = [6, 16, 128], strides = [1, 1, 1]} : vector<6x16x384xf32> to vector<6x16x128xf32>
    %71 = vector.shape_cast %50 : vector<1x128xf32> to vector<1x1x128xf32>
    %72 = vector.broadcast %71 : vector<1x1x128xf32> to vector<6x16x128xf32>
    %73 = arith.addf %69, %72 : vector<6x16x128xf32>
    %cst_29 = arith.constant 0.000000e+00 : f32
    %74 = vector.broadcast %cst_29 : f32 to vector<6x1x128xf32>
    %75 = vector.extract_strided_slice %68 {offsets = [0, 0, 0], sizes = [6, 15, 128], strides = [1, 1, 1]} : vector<6x16x128xf32> to vector<6x15x128xf32>
    %76 = tpu.concatenate %74, %75 in 1 : vector<6x1x128xf32>, vector<6x15x128xf32> -> vector<6x16x128xf32>
    %77 = arith.addf %73, %76 : vector<6x16x128xf32>
    %78 = vector.extract_strided_slice %70 {offsets = [0, 1, 0], sizes = [6, 15, 128], strides = [1, 1, 1]} : vector<6x16x128xf32> to vector<6x15x128xf32>
    %79 = tpu.concatenate %78, %74 in 1 : vector<6x15x128xf32>, vector<6x1x128xf32> -> vector<6x16x128xf32>
    %80 = arith.addf %77, %79 : vector<6x16x128xf32>
    %81 = arith.addf %80, %12 : vector<6x16x128xf32>
    %c1 = arith.constant 1 : index
    %c0_30 = arith.constant 0 : index
    %c0_31 = arith.constant 0 : index
    %82 = vector.load %arg4[%c1, %c0_30, %c0_31] : memref<2x128x384xbf16, #tpu.memory_space<vmem>>, vector<1x128x384xbf16>
    %83 = vector.shape_cast %82 : vector<1x128x384xbf16> to vector<128x384xbf16>
    %c1_32 = arith.constant 1 : index
    %c0_33 = arith.constant 0 : index
    %c0_34 = arith.constant 0 : index
    %84 = vector.load %arg5[%c1_32, %c0_33, %c0_34] : memref<2x1x128xf32, #tpu.memory_space<vmem>>, vector<1x1x128xf32>
    %85 = vector.shape_cast %84 : vector<1x1x128xf32> to vector<1x128xf32>
    %86 = arith.mulf %81, %81 : vector<6x16x128xf32>
    %87 = arith.mulf %81, %86 : vector<6x16x128xf32>
    %cst_35 = arith.constant 4.471500e-02 : f32
    %88 = vector.broadcast %cst_35 : f32 to vector<6x16x128xf32>
    %89 = arith.mulf %88, %87 : vector<6x16x128xf32>
    %90 = arith.addf %81, %89 : vector<6x16x128xf32>
    %cst_36 = arith.constant 0.797884583 : f32
    %91 = vector.broadcast %cst_36 : f32 to vector<6x16x128xf32>
    %92 = arith.mulf %91, %90 : vector<6x16x128xf32>
    %93 = math.tanh %92 : vector<6x16x128xf32>
    %cst_37 = arith.constant 1.000000e+00 : f32
    %94 = vector.broadcast %cst_37 : f32 to vector<6x16x128xf32>
    %95 = arith.addf %94, %93 : vector<6x16x128xf32>
    %cst_38 = arith.constant 5.000000e-01 : f32
    %96 = vector.broadcast %cst_38 : f32 to vector<6x16x128xf32>
    %97 = arith.mulf %96, %95 : vector<6x16x128xf32>
    %98 = arith.mulf %81, %97 : vector<6x16x128xf32>
    %99 = arith.truncf %98 : vector<6x16x128xf32> to vector<6x16x128xbf16>
    %100 = vector.shape_cast %99 : vector<6x16x128xbf16> to vector<96x128xbf16>
    %cst_39 = arith.constant dense<0.000000e+00> : vector<96x384xf32>
    %101 = tpu.matmul %100, %83, %cst_39 {dimension_numbers = #tpu.dot_dimension_numbers<[1], [0], [0], [1], [0, 0, 1, 1], [], []>} : vector<96x128xbf16>, vector<128x384xbf16>, vector<96x384xf32> -> vector<96x384xf32>
    %102 = vector.shape_cast %101 : vector<96x384xf32> to vector<6x16x384xf32>
    %103 = vector.extract_strided_slice %102 {offsets = [0, 0, 0], sizes = [6, 16, 128], strides = [1, 1, 1]} : vector<6x16x384xf32> to vector<6x16x128xf32>
    %104 = vector.extract_strided_slice %102 {offsets = [0, 0, 128], sizes = [6, 16, 128], strides = [1, 1, 1]} : vector<6x16x384xf32> to vector<6x16x128xf32>
    %105 = vector.extract_strided_slice %102 {offsets = [0, 0, 256], sizes = [6, 16, 128], strides = [1, 1, 1]} : vector<6x16x384xf32> to vector<6x16x128xf32>
    %106 = vector.shape_cast %85 : vector<1x128xf32> to vector<1x1x128xf32>
    %107 = vector.broadcast %106 : vector<1x1x128xf32> to vector<6x16x128xf32>
    %108 = arith.addf %104, %107 : vector<6x16x128xf32>
    %cst_40 = arith.constant 0.000000e+00 : f32
    %109 = vector.broadcast %cst_40 : f32 to vector<6x2x128xf32>
    %110 = vector.extract_strided_slice %103 {offsets = [0, 0, 0], sizes = [6, 14, 128], strides = [1, 1, 1]} : vector<6x16x128xf32> to vector<6x14x128xf32>
    %111 = tpu.concatenate %109, %110 in 1 : vector<6x2x128xf32>, vector<6x14x128xf32> -> vector<6x16x128xf32>
    %112 = arith.addf %108, %111 : vector<6x16x128xf32>
    %113 = vector.extract_strided_slice %105 {offsets = [0, 2, 0], sizes = [6, 14, 128], strides = [1, 1, 1]} : vector<6x16x128xf32> to vector<6x14x128xf32>
    %114 = tpu.concatenate %113, %109 in 1 : vector<6x14x128xf32>, vector<6x2x128xf32> -> vector<6x16x128xf32>
    %115 = arith.addf %112, %114 : vector<6x16x128xf32>
    %c1_41 = arith.constant 1 : index
    %c0_42 = arith.constant 0 : index
    %c0_43 = arith.constant 0 : index
    %116 = vector.load %arg6[%c1_41, %c0_42, %c0_43] : memref<2x128x384xbf16, #tpu.memory_space<vmem>>, vector<1x128x384xbf16>
    %117 = vector.shape_cast %116 : vector<1x128x384xbf16> to vector<128x384xbf16>
    %c1_44 = arith.constant 1 : index
    %c0_45 = arith.constant 0 : index
    %c0_46 = arith.constant 0 : index
    %118 = vector.load %arg7[%c1_44, %c0_45, %c0_46] : memref<2x1x128xf32, #tpu.memory_space<vmem>>, vector<1x1x128xf32>
    %119 = vector.shape_cast %118 : vector<1x1x128xf32> to vector<1x128xf32>
    %120 = arith.mulf %115, %115 : vector<6x16x128xf32>
    %121 = arith.mulf %115, %120 : vector<6x16x128xf32>
    %cst_47 = arith.constant 4.471500e-02 : f32
    %122 = vector.broadcast %cst_47 : f32 to vector<6x16x128xf32>
    %123 = arith.mulf %122, %121 : vector<6x16x128xf32>
    %124 = arith.addf %115, %123 : vector<6x16x128xf32>
    %cst_48 = arith.constant 0.797884583 : f32
    %125 = vector.broadcast %cst_48 : f32 to vector<6x16x128xf32>
    %126 = arith.mulf %125, %124 : vector<6x16x128xf32>
    %127 = math.tanh %126 : vector<6x16x128xf32>
    %cst_49 = arith.constant 1.000000e+00 : f32
    %128 = vector.broadcast %cst_49 : f32 to vector<6x16x128xf32>
    %129 = arith.addf %128, %127 : vector<6x16x128xf32>
    %cst_50 = arith.constant 5.000000e-01 : f32
    %130 = vector.broadcast %cst_50 : f32 to vector<6x16x128xf32>
    %131 = arith.mulf %130, %129 : vector<6x16x128xf32>
    %132 = arith.mulf %115, %131 : vector<6x16x128xf32>
    %133 = arith.truncf %132 : vector<6x16x128xf32> to vector<6x16x128xbf16>
    %134 = vector.shape_cast %133 : vector<6x16x128xbf16> to vector<96x128xbf16>
    %cst_51 = arith.constant dense<0.000000e+00> : vector<96x384xf32>
    %135 = tpu.matmul %134, %117, %cst_51 {dimension_numbers = #tpu.dot_dimension_numbers<[1], [0], [0], [1], [0, 0, 1, 1], [], []>} : vector<96x128xbf16>, vector<128x384xbf16>, vector<96x384xf32> -> vector<96x384xf32>
    %136 = vector.shape_cast %135 : vector<96x384xf32> to vector<6x16x384xf32>
    %137 = vector.extract_strided_slice %136 {offsets = [0, 0, 0], sizes = [6, 16, 128], strides = [1, 1, 1]} : vector<6x16x384xf32> to vector<6x16x128xf32>
    %138 = vector.extract_strided_slice %136 {offsets = [0, 0, 128], sizes = [6, 16, 128], strides = [1, 1, 1]} : vector<6x16x384xf32> to vector<6x16x128xf32>
    %139 = vector.extract_strided_slice %136 {offsets = [0, 0, 256], sizes = [6, 16, 128], strides = [1, 1, 1]} : vector<6x16x384xf32> to vector<6x16x128xf32>
    %140 = vector.shape_cast %119 : vector<1x128xf32> to vector<1x1x128xf32>
    %141 = vector.broadcast %140 : vector<1x1x128xf32> to vector<6x16x128xf32>
    %142 = arith.addf %138, %141 : vector<6x16x128xf32>
    %cst_52 = arith.constant 0.000000e+00 : f32
    %143 = vector.broadcast %cst_52 : f32 to vector<6x2x128xf32>
    %144 = vector.extract_strided_slice %137 {offsets = [0, 0, 0], sizes = [6, 14, 128], strides = [1, 1, 1]} : vector<6x16x128xf32> to vector<6x14x128xf32>
    %145 = tpu.concatenate %143, %144 in 1 : vector<6x2x128xf32>, vector<6x14x128xf32> -> vector<6x16x128xf32>
    %146 = arith.addf %142, %145 : vector<6x16x128xf32>
    %147 = vector.extract_strided_slice %139 {offsets = [0, 2, 0], sizes = [6, 14, 128], strides = [1, 1, 1]} : vector<6x16x128xf32> to vector<6x14x128xf32>
    %148 = tpu.concatenate %147, %143 in 1 : vector<6x14x128xf32>, vector<6x2x128xf32> -> vector<6x16x128xf32>
    %149 = arith.addf %146, %148 : vector<6x16x128xf32>
    %150 = arith.addf %149, %81 : vector<6x16x128xf32>
    %151 = vector.shape_cast %150 : vector<6x16x128xf32> to vector<96x128xf32>
    %152 = arith.truncf %151 : vector<96x128xf32> to vector<96x128xbf16>
    %c0_53 = arith.constant 0 : index
    %c0_54 = arith.constant 0 : index
    %153 = vector.load %arg8[%c0_53, %c0_54] : memref<128x128xbf16, #tpu.memory_space<vmem>>, vector<128x128xbf16>
    %cst_55 = arith.constant dense<0.000000e+00> : vector<96x128xf32>
    %154 = tpu.matmul %152, %153, %cst_55 {dimension_numbers = #tpu.dot_dimension_numbers<[1], [0], [0], [1], [0, 0, 1, 1], [], []>} : vector<96x128xbf16>, vector<128x128xbf16>, vector<96x128xf32> -> vector<96x128xf32>
    %155 = vector.shape_cast %154 : vector<96x128xf32> to vector<6x16x128xf32>
    %c0_56 = arith.constant 0 : index
    %c0_57 = arith.constant 0 : index
    %156 = vector.load %arg9[%c0_56, %c0_57] : memref<1x128xf32, #tpu.memory_space<vmem>>, vector<1x128xf32>
    %157 = vector.shape_cast %156 : vector<1x128xf32> to vector<1x1x128xf32>
    %158 = vector.broadcast %157 : vector<1x1x128xf32> to vector<6x16x128xf32>
    %159 = arith.addf %155, %158 : vector<6x16x128xf32>
    %c0_58 = arith.constant 0 : index
    %c0_59 = arith.constant 0 : index
    %160 = vector.load %arg10[%c0_58, %c0_59] : memref<128x384xbf16, #tpu.memory_space<vmem>>, vector<128x384xbf16>
    %c0_60 = arith.constant 0 : index
    %c0_61 = arith.constant 0 : index
    %161 = vector.load %arg11[%c0_60, %c0_61] : memref<1x128xf32, #tpu.memory_space<vmem>>, vector<1x128xf32>
    %162 = arith.mulf %150, %150 : vector<6x16x128xf32>
    %163 = arith.mulf %150, %162 : vector<6x16x128xf32>
    %cst_62 = arith.constant 4.471500e-02 : f32
    %164 = vector.broadcast %cst_62 : f32 to vector<6x16x128xf32>
    %165 = arith.mulf %164, %163 : vector<6x16x128xf32>
    %166 = arith.addf %150, %165 : vector<6x16x128xf32>
    %cst_63 = arith.constant 0.797884583 : f32
    %167 = vector.broadcast %cst_63 : f32 to vector<6x16x128xf32>
    %168 = arith.mulf %167, %166 : vector<6x16x128xf32>
    %169 = math.tanh %168 : vector<6x16x128xf32>
    %cst_64 = arith.constant 1.000000e+00 : f32
    %170 = vector.broadcast %cst_64 : f32 to vector<6x16x128xf32>
    %171 = arith.addf %170, %169 : vector<6x16x128xf32>
    %cst_65 = arith.constant 5.000000e-01 : f32
    %172 = vector.broadcast %cst_65 : f32 to vector<6x16x128xf32>
    %173 = arith.mulf %172, %171 : vector<6x16x128xf32>
    %174 = arith.mulf %150, %173 : vector<6x16x128xf32>
    %175 = arith.truncf %174 : vector<6x16x128xf32> to vector<6x16x128xbf16>
    %176 = vector.shape_cast %175 : vector<6x16x128xbf16> to vector<96x128xbf16>
    %cst_66 = arith.constant dense<0.000000e+00> : vector<96x384xf32>
    %177 = tpu.matmul %176, %160, %cst_66 {dimension_numbers = #tpu.dot_dimension_numbers<[1], [0], [0], [1], [0, 0, 1, 1], [], []>} : vector<96x128xbf16>, vector<128x384xbf16>, vector<96x384xf32> -> vector<96x384xf32>
    %178 = vector.shape_cast %177 : vector<96x384xf32> to vector<6x16x384xf32>
    %179 = vector.extract_strided_slice %178 {offsets = [0, 0, 0], sizes = [6, 16, 128], strides = [1, 1, 1]} : vector<6x16x384xf32> to vector<6x16x128xf32>
    %180 = vector.extract_strided_slice %178 {offsets = [0, 0, 128], sizes = [6, 16, 128], strides = [1, 1, 1]} : vector<6x16x384xf32> to vector<6x16x128xf32>
    %181 = vector.extract_strided_slice %178 {offsets = [0, 0, 256], sizes = [6, 16, 128], strides = [1, 1, 1]} : vector<6x16x384xf32> to vector<6x16x128xf32>
    %182 = vector.shape_cast %161 : vector<1x128xf32> to vector<1x1x128xf32>
    %183 = vector.broadcast %182 : vector<1x1x128xf32> to vector<6x16x128xf32>
    %184 = arith.addf %180, %183 : vector<6x16x128xf32>
    %cst_67 = arith.constant 0.000000e+00 : f32
    %185 = vector.broadcast %cst_67 : f32 to vector<6x4x128xf32>
    %186 = vector.extract_strided_slice %179 {offsets = [0, 0, 0], sizes = [6, 12, 128], strides = [1, 1, 1]} : vector<6x16x128xf32> to vector<6x12x128xf32>
    %187 = tpu.concatenate %185, %186 in 1 : vector<6x4x128xf32>, vector<6x12x128xf32> -> vector<6x16x128xf32>
    %188 = arith.addf %184, %187 : vector<6x16x128xf32>
    %189 = vector.extract_strided_slice %181 {offsets = [0, 4, 0], sizes = [6, 12, 128], strides = [1, 1, 1]} : vector<6x16x128xf32> to vector<6x12x128xf32>
    %190 = tpu.concatenate %189, %185 in 1 : vector<6x12x128xf32>, vector<6x4x128xf32> -> vector<6x16x128xf32>
    %191 = arith.addf %188, %190 : vector<6x16x128xf32>
    %c0_68 = arith.constant 0 : index
    %c0_69 = arith.constant 0 : index
    %192 = vector.load %arg12[%c0_68, %c0_69] : memref<128x384xbf16, #tpu.memory_space<vmem>>, vector<128x384xbf16>
    %c0_70 = arith.constant 0 : index
    %c0_71 = arith.constant 0 : index
    %193 = vector.load %arg13[%c0_70, %c0_71] : memref<1x128xf32, #tpu.memory_space<vmem>>, vector<1x128xf32>
    %194 = arith.mulf %191, %191 : vector<6x16x128xf32>
    %195 = arith.mulf %191, %194 : vector<6x16x128xf32>
    %cst_72 = arith.constant 4.471500e-02 : f32
    %196 = vector.broadcast %cst_72 : f32 to vector<6x16x128xf32>
    %197 = arith.mulf %196, %195 : vector<6x16x128xf32>
    %198 = arith.addf %191, %197 : vector<6x16x128xf32>
    %cst_73 = arith.constant 0.797884583 : f32
    %199 = vector.broadcast %cst_73 : f32 to vector<6x16x128xf32>
    %200 = arith.mulf %199, %198 : vector<6x16x128xf32>
    %201 = math.tanh %200 : vector<6x16x128xf32>
    %cst_74 = arith.constant 1.000000e+00 : f32
    %202 = vector.broadcast %cst_74 : f32 to vector<6x16x128xf32>
    %203 = arith.addf %202, %201 : vector<6x16x128xf32>
    %cst_75 = arith.constant 5.000000e-01 : f32
    %204 = vector.broadcast %cst_75 : f32 to vector<6x16x128xf32>
    %205 = arith.mulf %204, %203 : vector<6x16x128xf32>
    %206 = arith.mulf %191, %205 : vector<6x16x128xf32>
    %207 = arith.truncf %206 : vector<6x16x128xf32> to vector<6x16x128xbf16>
    %208 = vector.shape_cast %207 : vector<6x16x128xbf16> to vector<96x128xbf16>
    %cst_76 = arith.constant dense<0.000000e+00> : vector<96x384xf32>
    %209 = tpu.matmul %208, %192, %cst_76 {dimension_numbers = #tpu.dot_dimension_numbers<[1], [0], [0], [1], [0, 0, 1, 1], [], []>} : vector<96x128xbf16>, vector<128x384xbf16>, vector<96x384xf32> -> vector<96x384xf32>
    %210 = vector.shape_cast %209 : vector<96x384xf32> to vector<6x16x384xf32>
    %211 = vector.extract_strided_slice %210 {offsets = [0, 0, 0], sizes = [6, 16, 128], strides = [1, 1, 1]} : vector<6x16x384xf32> to vector<6x16x128xf32>
    %212 = vector.extract_strided_slice %210 {offsets = [0, 0, 128], sizes = [6, 16, 128], strides = [1, 1, 1]} : vector<6x16x384xf32> to vector<6x16x128xf32>
    %213 = vector.extract_strided_slice %210 {offsets = [0, 0, 256], sizes = [6, 16, 128], strides = [1, 1, 1]} : vector<6x16x384xf32> to vector<6x16x128xf32>
    %214 = vector.shape_cast %193 : vector<1x128xf32> to vector<1x1x128xf32>
    %215 = vector.broadcast %214 : vector<1x1x128xf32> to vector<6x16x128xf32>
    %216 = arith.addf %212, %215 : vector<6x16x128xf32>
    %cst_77 = arith.constant 0.000000e+00 : f32
    %217 = vector.broadcast %cst_77 : f32 to vector<6x4x128xf32>
    %218 = vector.extract_strided_slice %211 {offsets = [0, 0, 0], sizes = [6, 12, 128], strides = [1, 1, 1]} : vector<6x16x128xf32> to vector<6x12x128xf32>
    %219 = tpu.concatenate %217, %218 in 1 : vector<6x4x128xf32>, vector<6x12x128xf32> -> vector<6x16x128xf32>
    %220 = arith.addf %216, %219 : vector<6x16x128xf32>
    %221 = vector.extract_strided_slice %213 {offsets = [0, 4, 0], sizes = [6, 12, 128], strides = [1, 1, 1]} : vector<6x16x128xf32> to vector<6x12x128xf32>
    %222 = tpu.concatenate %221, %217 in 1 : vector<6x12x128xf32>, vector<6x4x128xf32> -> vector<6x16x128xf32>
    %223 = arith.addf %220, %222 : vector<6x16x128xf32>
    %224 = arith.addf %223, %159 : vector<6x16x128xf32>
    %225 = vector.extract_strided_slice %224 {offsets = [0, 0, 0], sizes = [6, 16, 32], strides = [1, 1, 1]} : vector<6x16x128xf32> to vector<6x16x32xf32>
    %c0_78 = arith.constant 0 : index
    %c0_79 = arith.constant 0 : index
    %c0_80 = arith.constant 0 : index
    %226 = vector.load %arg14[%c0_78, %c0_79, %c0_80] : memref<6x16x32xf32, #tpu.memory_space<vmem>>, vector<6x16x32xf32>
    tpu.vector_store %arg14[%c0_78, %c0_79, %c0_80], %225 {strides = array<i32>} : memref<6x16x32xf32, #tpu.memory_space<vmem>>, vector<6x16x32xf32>,
    return
  }
  func.func @transform_0(%arg0: i32) -> (i32, i32, i32) {
    %c0_i32 = arith.constant 0 : i32
    %c0_i32_0 = arith.constant 0 : i32
    %c0_i32_1 = arith.constant 0 : i32
    return %arg0, %c0_i32, %c0_i32_0 : i32, i32, i32
  }
  func.func @transform_1(%arg0: i32) -> (i32, i32) {
    %c0_i32 = arith.constant 0 : i32
    %c0_i32_0 = arith.constant 0 : i32
    %c0_i32_1 = arith.constant 0 : i32
    return %c0_i32, %c0_i32_0 : i32, i32
  }
  func.func @transform_2(%arg0: i32) -> (i32, i32) {
    %c0_i32 = arith.constant 0 : i32
    %c0_i32_0 = arith.constant 0 : i32
    %c0_i32_1 = arith.constant 0 : i32
    return %c0_i32, %c0_i32_0 : i32, i32
  }
  func.func @transform_3(%arg0: i32) -> (i32, i32, i32) {
    %c0_i32 = arith.constant 0 : i32
    %c0_i32_0 = arith.constant 0 : i32
    %c0_i32_1 = arith.constant 0 : i32
    %c0_i32_2 = arith.constant 0 : i32
    return %c0_i32, %c0_i32_0, %c0_i32_1 : i32, i32, i32
  }
  func.func @transform_4(%arg0: i32) -> (i32, i32, i32) {
    %c0_i32 = arith.constant 0 : i32
    %c0_i32_0 = arith.constant 0 : i32
    %c0_i32_1 = arith.constant 0 : i32
    %c0_i32_2 = arith.constant 0 : i32
    return %c0_i32, %c0_i32_0, %c0_i32_1 : i32, i32, i32
  }
  func.func @transform_5(%arg0: i32) -> (i32, i32, i32) {
    %c0_i32 = arith.constant 0 : i32
    %c0_i32_0 = arith.constant 0 : i32
    %c0_i32_1 = arith.constant 0 : i32
    %c0_i32_2 = arith.constant 0 : i32
    return %c0_i32, %c0_i32_0, %c0_i32_1 : i32, i32, i32
  }
  func.func @transform_6(%arg0: i32) -> (i32, i32, i32) {
    %c0_i32 = arith.constant 0 : i32
    %c0_i32_0 = arith.constant 0 : i32
    %c0_i32_1 = arith.constant 0 : i32
    %c0_i32_2 = arith.constant 0 : i32
    return %c0_i32, %c0_i32_0, %c0_i32_1 : i32, i32, i32
  }
  func.func @transform_7(%arg0: i32) -> (i32, i32) {
    %c0_i32 = arith.constant 0 : i32
    %c0_i32_0 = arith.constant 0 : i32
    %c0_i32_1 = arith.constant 0 : i32
    return %c0_i32, %c0_i32_0 : i32, i32
  }
  func.func @transform_8(%arg0: i32) -> (i32, i32) {
    %c0_i32 = arith.constant 0 : i32
    %c0_i32_0 = arith.constant 0 : i32
    %c0_i32_1 = arith.constant 0 : i32
    return %c0_i32, %c0_i32_0 : i32, i32
  }
  func.func @transform_9(%arg0: i32) -> (i32, i32) {
    %c0_i32 = arith.constant 0 : i32
    %c0_i32_0 = arith.constant 0 : i32
    %c0_i32_1 = arith.constant 0 : i32
    return %c0_i32, %c0_i32_0 : i32, i32
  }
  func.func @transform_10(%arg0: i32) -> (i32, i32) {
    %c0_i32 = arith.constant 0 : i32
    %c0_i32_0 = arith.constant 0 : i32
    %c0_i32_1 = arith.constant 0 : i32
    return %c0_i32, %c0_i32_0 : i32, i32
  }
  func.func @transform_11(%arg0: i32) -> (i32, i32) {
    %c0_i32 = arith.constant 0 : i32
    %c0_i32_0 = arith.constant 0 : i32
    %c0_i32_1 = arith.constant 0 : i32
    return %c0_i32, %c0_i32_0 : i32, i32
  }
  func.func @transform_12(%arg0: i32) -> (i32, i32) {
    %c0_i32 = arith.constant 0 : i32
    %c0_i32_0 = arith.constant 0 : i32
    %c0_i32_1 = arith.constant 0 : i32
    return %c0_i32, %c0_i32_0 : i32, i32
  }
  func.func @transform_13(%arg0: i32) -> (i32, i32, i32) {
    %c0_i32 = arith.constant 0 : i32
    %c0_i32_0 = arith.constant 0 : i32
    %c0_i32_1 = arith.constant 0 : i32
    return %arg0, %c0_i32, %c0_i32_0 : i32, i32, i32
  }
}

</mosaic_0001>

<llo_original>
// kernel: ts_encoder_forward.1
$region0: #{ts_encoder_forward.1}
  #allocation0 [shape = 'u32[]', space=smem, size = 0x4, offset = 0x4, fixed_abs, tag = 'smem constant byte address 0x4 - core index']
  #allocation1 [shape = 'u32[144,128]{1,0:T(1,128)}', space=vmem, size = 0x12000, scoped, tag = 'internal scratch']
  %s0 = inlined_call_operand.vmem [shape: f32[6,16,1], index: 0, kind: input, shape index: {}]
  %s1 = inlined_call_operand.vmem [shape: f32[1,128], index: 1, kind: input, shape index: {}]
  %s2 = inlined_call_operand.vmem [shape: f32[1,128], index: 2, kind: input, shape index: {}]
  %s3 = inlined_call_operand.hbm [shape: bf16[2,128,384], index: 3, kind: input, shape index: {}]
  %s4 = inlined_call_operand.vmem [shape: f32[2,1,128], index: 4, kind: input, shape index: {}]
  %s5 = inlined_call_operand.hbm [shape: bf16[2,128,384], index: 5, kind: input, shape index: {}]
  %s6 = inlined_call_operand.vmem [shape: f32[2,1,128], index: 6, kind: input, shape index: {}]
  %s7 = inlined_call_operand.vmem [shape: bf16[128,128], index: 7, kind: input, shape index: {}]
  %s8 = inlined_call_operand.vmem [shape: f32[1,128], index: 8, kind: input, shape index: {}]
  %s9 = inlined_call_operand.hbm [shape: bf16[128,384], index: 9, kind: input, shape index: {}]
  %s10 = inlined_call_operand.vmem [shape: f32[1,128], index: 10, kind: input, shape index: {}]
  %s11 = inlined_call_operand.hbm [shape: bf16[128,384], index: 11, kind: input, shape index: {}]
  %s12 = inlined_call_operand.vmem [shape: f32[1,128], index: 12, kind: input, shape index: {}]
  %s13 = inlined_call_operand.hbm [shape: f32[6,16,32], index: 13, kind: output, shape index: {}]
  %s14 = sld [smem:[#allocation0]]
  $region78: #{ts_encoder_forward.1} parent=0
    _
  %s16 = ssub.s32 1, %s14
  %s17 = scalar_select 0, %s16, %s14
  $region1: #{ts_encoder_forward.1} parent=0
    #allocation2 [shape = 'u8[196608]{0}', space=vmem, size = 0x30000, scoped, tag = 'input window, operand 3, single buffered']
    #allocation3 [shape = 's32[1]{0}', space=sflag, size = 0x4, scoped, tag = 'scoped memory for ts_encoder_forward.1']
    #allocation4 [shape = 's32[1]{0}', space=sflag, size = 0x4, scoped, tag = 'scoped memory for ts_encoder_forward.1']
    #allocation5 [shape = 'u8[196608]{0}', space=vmem, size = 0x30000, scoped, tag = 'input window, operand 5, single buffered']
    #allocation6 [shape = 's32[1]{0}', space=sflag, size = 0x4, scoped, tag = 'scoped memory for ts_encoder_forward.1']
    #allocation7 [shape = 'u8[98304]{0}', space=vmem, size = 0x18000, scoped, tag = 'input window, operand 9, single buffered']
    #allocation8 [shape = 'u8[98304]{0}', space=vmem, size = 0x18000, scoped, tag = 'input window, operand 11, single buffered']
    #allocation9 [shape = 's32[1]{0}', space=sflag, size = 0x4, scoped, tag = 'scoped memory for ts_encoder_forward.1']
    #allocation10 [shape = 'u8[49152]{0}', space=vmem, size = 0xc000, scoped, tag = 'output window, operand 0, single buffered']
    %18 = vsyncpa [#allocation3], 0
    %19 = vsyncpa [#allocation6], 0
    %20 = vsyncpa [#allocation9], 0
    %21 = vsyncpa [#allocation4], 0
    // Predicated region
    $region2: #{ts_encoder_forward.1} parent=1 // pred_check
      _
    $region3: #{ts_encoder_forward.1} parent=1 // pred_check_branch
      %23 = sbr.rel (0) target = $region5
    $region4: #{ts_encoder_forward.1} parent=1 // pred_region
      _
    $region5: #{ts_encoder_forward.1} parent=1 // pred_fallthru
      _
    // Predicated region
    $region6: #{ts_encoder_forward.1} parent=1 // pred_check
      _
    $region7: #{ts_encoder_forward.1} parent=1 // pred_check_branch
      %25 = sbr.rel (0) target = $region9
    $region8: #{ts_encoder_forward.1} parent=1 // pred_region
      _
    $region9: #{ts_encoder_forward.1} parent=1 // pred_fallthru
      _
    // Predicated region
    $region10: #{ts_encoder_forward.1} parent=1 // pred_check
      _
    $region11: #{ts_encoder_forward.1} parent=1 // pred_check_branch
      %27 = sbr.rel (0) target = $region13
    $region12: #{ts_encoder_forward.1} parent=1 // pred_region
      _
    $region13: #{ts_encoder_forward.1} parent=1 // pred_fallthru
      _
    // Predicated region
    $region14: #{ts_encoder_forward.1} parent=1 // pred_check
      _
    $region15: #{ts_encoder_forward.1} parent=1 // pred_check_branch
      %29 = sbr.rel (0) target = $region17
    $region16: #{ts_encoder_forward.1} parent=1 // pred_region
      %s31 = ssub.s32 6144, 6144
      %32 = vsyncadd [#allocation3], %s31
      %s33 = sshll.u32 [#allocation2], 4
      %s34 = int_to_ptr.vmem [resolvable:$true] %s33
      %39 = dma.hbm_to_vmem [thread:$0]  %s3, 6144, %s34, [#allocation3], 192, 192, 12
    $region17: #{ts_encoder_forward.1} parent=1 // pred_fallthru
      _
    // Predicated region
    $region18: #{ts_encoder_forward.1} parent=1 // pred_check
      _
    $region19: #{ts_encoder_forward.1} parent=1 // pred_check_branch
      %41 = sbr.rel (0) target = $region21
    $region20: #{ts_encoder_forward.1} parent=1 // pred_region
      _
    $region21: #{ts_encoder_forward.1} parent=1 // pred_fallthru
      _
    // Predicated region
    $region22: #{ts_encoder_forward.1} parent=1 // pred_check
      _
    $region23: #{ts_encoder_forward.1} parent=1 // pred_check_branch
      %43 = sbr.rel (0) target = $region25
    $region24: #{ts_encoder_forward.1} parent=1 // pred_region
      %s45 = ssub.s32 6144, 6144
      %46 = vsyncadd [#allocation6], %s45
      %s47 = sshll.u32 [#allocation5], 4
      %s48 = int_to_ptr.vmem [resolvable:$true] %s47
      %53 = dma.hbm_to_vmem [thread:$0]  %s5, 6144, %s48, [#allocation6], 192, 192, 12
    $region25: #{ts_encoder_forward.1} parent=1 // pred_fallthru
      _
    // Predicated region
    $region26: #{ts_encoder_forward.1} parent=1 // pred_check
      _
    $region27: #{ts_encoder_forward.1} parent=1 // pred_check_branch
      %55 = sbr.rel (0) target = $region29
    $region28: #{ts_encoder_forward.1} parent=1 // pred_region
      _
    $region29: #{ts_encoder_forward.1} parent=1 // pred_fallthru
      _
    // Predicated region
    $region30: #{ts_encoder_forward.1} parent=1 // pred_check
      _
    $region31: #{ts_encoder_forward.1} parent=1 // pred_check_branch
      %57 = sbr.rel (0) target = $region33
    $region32: #{ts_encoder_forward.1} parent=1 // pred_region
      _
    $region33: #{ts_encoder_forward.1} parent=1 // pred_fallthru
      _
    // Predicated region
    $region34: #{ts_encoder_forward.1} parent=1 // pred_check
      _
    $region35: #{ts_encoder_forward.1} parent=1 // pred_check_branch
      %59 = sbr.rel (0) target = $region37
    $region36: #{ts_encoder_forward.1} parent=1 // pred_region
      _
    $region37: #{ts_encoder_forward.1} parent=1 // pred_fallthru
      _
    // Predicated region
    $region38: #{ts_encoder_forward.1} parent=1 // pred_check
      _
    $region39: #{ts_encoder_forward.1} parent=1 // pred_check_branch
      %61 = sbr.rel (0) target = $region41
    $region40: #{ts_encoder_forward.1} parent=1 // pred_region
      %s63 = ssub.s32 3072, 3072
      %64 = vsyncadd [#allocation6], %s63
      %s65 = sshll.u32 [#allocation7], 4
      %s66 = int_to_ptr.vmem [resolvable:$true] %s65
      %71 = dma.hbm_to_vmem [thread:$0]  %s9, 3072, %s66, [#allocation6], 192, 192, 12
    $region41: #{ts_encoder_forward.1} parent=1 // pred_fallthru
      _
    // Predicated region
    $region42: #{ts_encoder_forward.1} parent=1 // pred_check
      _
    $region43: #{ts_encoder_forward.1} parent=1 // pred_check_branch
      %73 = sbr.rel (0) target = $region45
    $region44: #{ts_encoder_forward.1} parent=1 // pred_region
      _
    $region45: #{ts_encoder_forward.1} parent=1 // pred_fallthru
      _
    // Predicated region
    $region46: #{ts_encoder_forward.1} parent=1 // pred_check
      _
    $region47: #{ts_encoder_forward.1} parent=1 // pred_check_branch
      %75 = sbr.rel (0) target = $region49
    $region48: #{ts_encoder_forward.1} parent=1 // pred_region
      %s77 = ssub.s32 3072, 3072
      %78 = vsyncadd [#allocation9], %s77
      %s79 = sshll.u32 [#allocation8], 4
      %s80 = int_to_ptr.vmem [resolvable:$true] %s79
      %85 = dma.hbm_to_vmem [thread:$0]  %s11, 3072, %s80, [#allocation9], 192, 192, 12
    $region49: #{ts_encoder_forward.1} parent=1 // pred_fallthru
      _
    // Predicated region
    $region50: #{ts_encoder_forward.1} parent=1 // pred_check
      _
    $region51: #{ts_encoder_forward.1} parent=1 // pred_check_branch
      %87 = sbr.rel (0) target = $region53
    $region52: #{ts_encoder_forward.1} parent=1 // pred_region
      _
    $region53: #{ts_encoder_forward.1} parent=1 // pred_fallthru
      _
    // Predicated region
    $region54: #{ts_encoder_forward.1} parent=1 // pred_check
      _
    $region55: #{ts_encoder_forward.1} parent=1 // pred_check_branch
      %89 = sbr.rel (0) target = $region57
    $region56: #{ts_encoder_forward.1} parent=1 // pred_region
      %90 = dma.done [#allocation3], 6144
    $region57: #{ts_encoder_forward.1} parent=1 // pred_fallthru
      _
    // Predicated region
    $region58: #{ts_encoder_forward.1} parent=1 // pred_check
      _
    $region59: #{ts_encoder_forward.1} parent=1 // pred_check_branch
      %92 = sbr.rel (0) target = $region61
    $region60: #{ts_encoder_forward.1} parent=1 // pred_region
      %93 = dma.done [#allocation6], 6144
    $region61: #{ts_encoder_forward.1} parent=1 // pred_fallthru
      _
    // Predicated region
    $region62: #{ts_encoder_forward.1} parent=1 // pred_check
      _
    $region63: #{ts_encoder_forward.1} parent=1 // pred_check_branch
      %95 = sbr.rel (0) target = $region65
    $region64: #{ts_encoder_forward.1} parent=1 // pred_region
      %96 = dma.done [#allocation6], 3072
    $region65: #{ts_encoder_forward.1} parent=1 // pred_fallthru
      _
    // Predicated region
    $region66: #{ts_encoder_forward.1} parent=1 // pred_check
      _
    $region67: #{ts_encoder_forward.1} parent=1 // pred_check_branch
      %98 = sbr.rel (0) target = $region69
    $region68: #{ts_encoder_forward.1} parent=1 // pred_region
      %99 = dma.done [#allocation9], 3072
    $region69: #{ts_encoder_forward.1} parent=1 // pred_fallthru
      _
    %v101 = vld [vmem:[%s0] sm:$0xff]
    %v102 = vld [vmem:[%s0 + $0x8] sm:$0xff]
    %v103 = vld [vmem:[%s0 + $0x10] sm:$0xff]
    %v104 = vld [vmem:[%s0 + $0x18] sm:$0xff]
    %v105 = vld [vmem:[%s0 + $0x20] sm:$0xff]
    %v106 = vld [vmem:[%s0 + $0x28] sm:$0xff]
    %v107 = vld [vmem:[%s0 + $0x30] sm:$0xff]
    %v108 = vld [vmem:[%s0 + $0x38] sm:$0xff]
    %v109 = vld [vmem:[%s0 + $0x40] sm:$0xff]
    %v110 = vld [vmem:[%s0 + $0x48] sm:$0xff]
    %v111 = vld [vmem:[%s0 + $0x50] sm:$0xff]
    %v112 = vld [vmem:[%s0 + $0x58] sm:$0xff]
    %vm113 = vcmp.ne.f32.partialorder %v101, %v101
    %vm114 = vcmp.ne.f32.partialorder %v102, %v102
    %vm115 = vcmp.ne.f32.partialorder %v103, %v103
    %vm116 = vcmp.ne.f32.partialorder %v104, %v104
    %vm117 = vcmp.ne.f32.partialorder %v105, %v105
    %vm118 = vcmp.ne.f32.partialorder %v106, %v106
    %vm119 = vcmp.ne.f32.partialorder %v107, %v107
    %vm120 = vcmp.ne.f32.partialorder %v108, %v108
    %vm121 = vcmp.ne.f32.partialorder %v109, %v109
    %vm122 = vcmp.ne.f32.partialorder %v110, %v110
    %vm123 = vcmp.ne.f32.partialorder %v111, %v111
    %vm124 = vcmp.ne.f32.partialorder %v112, %v112
    %v125 = vsel %vm113, 0.0, %v101
    %v126 = vsel %vm114, 0.0, %v102
    %v127 = vsel %vm115, 0.0, %v103
    %v128 = vsel %vm116, 0.0, %v104
    %v129 = vsel %vm117, 0.0, %v105
    %v130 = vsel %vm118, 0.0, %v106
    %v131 = vsel %vm119, 0.0, %v107
    %v132 = vsel %vm120, 0.0, %v108
    %v133 = vsel %vm121, 0.0, %v109
    %v134 = vsel %vm122, 0.0, %v110
    %v135 = vsel %vm123, 0.0, %v111
    %v136 = vsel %vm124, 0.0, %v112
    %v137 = vld [vmem:[%s1] sm:$0x1]
    %139 = vset.pattern.permute.xlu0 0
    %140 = vperm.xlu0 %139, %v125
    %v141 = vpop.permute.xlu0 %140
    %144 = vset.pattern.permute.xlu0 0
    %145 = vperm.xlu0 %144, %v126
    %v146 = vpop.permute.xlu0 %145
    %149 = vset.pattern.permute.xlu0 0
    %150 = vperm.xlu0 %149, %v127
    %v151 = vpop.permute.xlu0 %150
    %154 = vset.pattern.permute.xlu0 0
    %155 = vperm.xlu0 %154, %v128
    %v156 = vpop.permute.xlu0 %155
    %159 = vset.pattern.permute.xlu0 0
    %160 = vperm.xlu0 %159, %v129
    %v161 = vpop.permute.xlu0 %160
    %164 = vset.pattern.permute.xlu0 0
    %165 = vperm.xlu0 %164, %v130
    %v166 = vpop.permute.xlu0 %165
    %169 = vset.pattern.permute.xlu0 0
    %170 = vperm.xlu0 %169, %v131
    %v171 = vpop.permute.xlu0 %170
    %174 = vset.pattern.permute.xlu0 0
    %175 = vperm.xlu0 %174, %v132
    %v176 = vpop.permute.xlu0 %175
    %179 = vset.pattern.permute.xlu0 0
    %180 = vperm.xlu0 %179, %v133
    %v181 = vpop.permute.xlu0 %180
    %184 = vset.pattern.permute.xlu0 0
    %185 = vperm.xlu0 %184, %v134
    %v186 = vpop.permute.xlu0 %185
    %189 = vset.pattern.permute.xlu0 0
    %190 = vperm.xlu0 %189, %v135
    %v191 = vpop.permute.xlu0 %190
    %194 = vset.pattern.permute.xlu0 0
    %195 = vperm.xlu0 %194, %v136
    %v196 = vpop.permute.xlu0 %195
    %v199 = vlaneseq
    %v200 = vshrl.u32 %v199, 7
    %v201 = vsub.s32 0, %v200
    %v202 = vrot.slane %v137, %v201
    %v204 = vmul.f32 %v141, %v202
    %v205 = vmul.f32 %v146, %v202
    %v206 = vmul.f32 %v151, %v202
    %v207 = vmul.f32 %v156, %v202
    %v208 = vmul.f32 %v161, %v202
    %v209 = vmul.f32 %v166, %v202
    %v210 = vmul.f32 %v171, %v202
    %v211 = vmul.f32 %v176, %v202
    %v212 = vmul.f32 %v181, %v202
    %v213 = vmul.f32 %v186, %v202
    %v214 = vmul.f32 %v191, %v202
    %v215 = vmul.f32 %v196, %v202
    %v216 = vld [vmem:[%s2] sm:$0x1]
    %v218 = vlaneseq
    %v219 = vshrl.u32 %v218, 7
    %v220 = vsub.s32 0, %v219
    %v221 = vrot.slane %v216, %v220
    %v223 = vadd.f32 %v204, %v221
    %v224 = vadd.f32 %v205, %v221
    %v225 = vadd.f32 %v206, %v221
    %v226 = vadd.f32 %v207, %v221
    %v227 = vadd.f32 %v208, %v221
    %v228 = vadd.f32 %v209, %v221
    %v229 = vadd.f32 %v210, %v221
    %v230 = vadd.f32 %v211, %v221
    %v231 = vadd.f32 %v212, %v221
    %v232 = vadd.f32 %v213, %v221
    %v233 = vadd.f32 %v214, %v221
    %v234 = vadd.f32 %v215, %v221
    %v235 = vld [vmem:[#allocation2] sm:$0xff]
    %v236 = vld [vmem:[#allocation2 + $0x8] sm:$0xf]
    %v237 = vld [vmem:[#allocation2 + $0xc] sm:$0xff]
    %v238 = vld [vmem:[#allocation2 + $0x14] sm:$0xf]
    %v239 = vld [vmem:[#allocation2 + $0x18] sm:$0xff]
    %v240 = vld [vmem:[#allocation2 + $0x20] sm:$0xf]
    %v241 = vld [vmem:[#allocation2 + $0x24] sm:$0xff]
    %v242 = vld [vmem:[#allocation2 + $0x2c] sm:$0xf]
    %v243 = vld [vmem:[#allocation2 + $0x30] sm:$0xff]
    %v244 = vld [vmem:[#allocation2 + $0x38] sm:$0xf]
    %v245 = vld [vmem:[#allocation2 + $0x3c] sm:$0xff]
    %v246 = vld [vmem:[#allocation2 + $0x44] sm:$0xf]
    %v247 = vld [vmem:[#allocation2 + $0x48] sm:$0xff]
    %v248 = vld [vmem:[#allocation2 + $0x50] sm:$0xf]
    %v249 = vld [vmem:[#allocation2 + $0x54] sm:$0xff]
    %v250 = vld [vmem:[#allocation2 + $0x5c] sm:$0xf]
    %v251 = vld [vmem:[#allocation2 + $0x60] sm:$0xff]
    %v252 = vld [vmem:[#allocation2 + $0x68] sm:$0xf]
    %v253 = vld [vmem:[#allocation2 + $0x6c] sm:$0xff]
    %v254 = vld [vmem:[#allocation2 + $0x74] sm:$0xf]
    %v255 = vld [vmem:[#allocation2 + $0x78] sm:$0xff]
    %v256 = vld [vmem:[#allocation2 + $0x80] sm:$0xf]
    %v257 = vld [vmem:[#allocation2 + $0x84] sm:$0xff]
    %v258 = vld [vmem:[#allocation2 + $0x8c] sm:$0xf]
    %v259 = vld [vmem:[#allocation2 + $0x90] sm:$0xff]
    %v260 = vld [vmem:[#allocation2 + $0x98] sm:$0xf]
    %v261 = vld [vmem:[#allocation2 + $0x9c] sm:$0xff]
    %v262 = vld [vmem:[#allocation2 + $0xa4] sm:$0xf]
    %v263 = vld [vmem:[#allocation2 + $0xa8] sm:$0xff]
    %v264 = vld [vmem:[#allocation2 + $0xb0] sm:$0xf]
    %v265 = vld [vmem:[#allocation2 + $0xb4] sm:$0xff]
    %v266 = vld [vmem:[#allocation2 + $0xbc] sm:$0xf]
    %v267 = vld [vmem:[%s4] sm:$0x1]
    %v268 = vmul.f32 %v223, %v223
    %v269 = vmul.f32 %v224, %v224
    %v270 = vmul.f32 %v225, %v225
    %v271 = vmul.f32 %v226, %v226
    %v272 = vmul.f32 %v227, %v227
    %v273 = vmul.f32 %v228, %v228
    %v274 = vmul.f32 %v229, %v229
    %v275 = vmul.f32 %v230, %v230
    %v276 = vmul.f32 %v231, %v231
    %v277 = vmul.f32 %v232, %v232
    %v278 = vmul.f32 %v233, %v233
    %v279 = vmul.f32 %v234, %v234
    %v280 = vmul.f32 %v223, %v268
    %v281 = vmul.f32 %v224, %v269
    %v282 = vmul.f32 %v225, %v270
    %v283 = vmul.f32 %v226, %v271
    %v284 = vmul.f32 %v227, %v272
    %v285 = vmul.f32 %v228, %v273
    %v286 = vmul.f32 %v229, %v274
    %v287 = vmul.f32 %v230, %v275
    %v288 = vmul.f32 %v231, %v276
    %v289 = vmul.f32 %v232, %v277
    %v290 = vmul.f32 %v233, %v278
    %v291 = vmul.f32 %v234, %v279
    %v292 = vmul.f32 %v280, 0.044715
    %v293 = vmul.f32 %v281, 0.044715
    %v294 = vmul.f32 %v282, 0.044715
    %v295 = vmul.f32 %v283, 0.044715
    %v296 = vmul.f32 %v284, 0.044715
    %v297 = vmul.f32 %v285, 0.044715
    %v298 = vmul.f32 %v286, 0.044715
    %v299 = vmul.f32 %v287, 0.044715
    %v300 = vmul.f32 %v288, 0.044715
    %v301 = vmul.f32 %v289, 0.044715
    %v302 = vmul.f32 %v290, 0.044715
    %v303 = vmul.f32 %v291, 0.044715
    %v304 = vadd.f32 %v223, %v292
    %v305 = vadd.f32 %v224, %v293
    %v306 = vadd.f32 %v225, %v294
    %v307 = vadd.f32 %v226, %v295
    %v308 = vadd.f32 %v227, %v296
    %v309 = vadd.f32 %v228, %v297
    %v310 = vadd.f32 %v229, %v298
    %v311 = vadd.f32 %v230, %v299
    %v312 = vadd.f32 %v231, %v300
    %v313 = vadd.f32 %v232, %v301
    %v314 = vadd.f32 %v233, %v302
    %v315 = vadd.f32 %v234, %v303
    %v316 = vmul.f32 %v304, 0.7978846
    %v317 = vmul.f32 %v305, 0.7978846
    %v318 = vmul.f32 %v306, 0.7978846
    %v319 = vmul.f32 %v307, 0.7978846
    %v320 = vmul.f32 %v308, 0.7978846
    %v321 = vmul.f32 %v309, 0.7978846
    %v322 = vmul.f32 %v310, 0.7978846
    %v323 = vmul.f32 %v311, 0.7978846
    %v324 = vmul.f32 %v312, 0.7978846
    %v325 = vmul.f32 %v313, 0.7978846
    %v326 = vmul.f32 %v314, 0.7978846
    %v327 = vmul.f32 %v315, 0.7978846
    %v328 = vtanh.pop %v316
    %v329 = vtanh.pop %v317
    %v330 = vtanh.pop %v318
    %v331 = vtanh.pop %v319
    %v332 = vtanh.pop %v320
    %v333 = vtanh.pop %v321
    %v334 = vtanh.pop %v322
    %v335 = vtanh.pop %v323
    %v336 = vtanh.pop %v324
    %v337 = vtanh.pop %v325
    %v338 = vtanh.pop %v326
    %v339 = vtanh.pop %v327
    %v340 = vadd.f32 %v328, 1.0
    %v341 = vadd.f32 %v329, 1.0
    %v342 = vadd.f32 %v330, 1.0
    %v343 = vadd.f32 %v331, 1.0
    %v344 = vadd.f32 %v332, 1.0
    %v345 = vadd.f32 %v333, 1.0
    %v346 = vadd.f32 %v334, 1.0
    %v347 = vadd.f32 %v335, 1.0
    %v348 = vadd.f32 %v336, 1.0
    %v349 = vadd.f32 %v337, 1.0
    %v350 = vadd.f32 %v338, 1.0
    %v351 = vadd.f32 %v339, 1.0
    %v352 = vmul.f32 %v340, 0.5
    %v353 = vmul.f32 %v341, 0.5
    %v354 = vmul.f32 %v342, 0.5
    %v355 = vmul.f32 %v343, 0.5
    %v356 = vmul.f32 %v344, 0.5
    %v357 = vmul.f32 %v345, 0.5
    %v358 = vmul.f32 %v346, 0.5
    %v359 = vmul.f32 %v347, 0.5
    %v360 = vmul.f32 %v348, 0.5
    %v361 = vmul.f32 %v349, 0.5
    %v362 = vmul.f32 %v350, 0.5
    %v363 = vmul.f32 %v351, 0.5
    %v364 = vmul.f32 %v223, %v352
    %v365 = vmul.f32 %v224, %v353
    %v366 = vmul.f32 %v225, %v354
    %v367 = vmul.f32 %v226, %v355
    %v368 = vmul.f32 %v227, %v356
    %v369 = vmul.f32 %v228, %v357
    %v370 = vmul.f32 %v229, %v358
    %v371 = vmul.f32 %v230, %v359
    %v372 = vmul.f32 %v231, %v360
    %v373 = vmul.f32 %v232, %v361
    %v374 = vmul.f32 %v233, %v362
    %v375 = vmul.f32 %v234, %v363
    %v376 = vpack.c.bf16 %v365, %v364
    %v377 = vpack.c.bf16 %v367, %v366
    %v378 = vpack.c.bf16 %v369, %v368
    %v379 = vpack.c.bf16 %v371, %v370
    %v380 = vpack.c.bf16 %v373, %v372
    %v381 = vpack.c.bf16 %v375, %v374
    %v414 = vunpack.c.l.b16 %v235
    %v415 = vunpack.c.h.b16 %v235
    %v416 = vunpack.c.l.b16 %v236
    %v417 = vunpack.c.l.b16 %v237
    %v418 = vunpack.c.h.b16 %v237
    %v419 = vunpack.c.l.b16 %v238
    %v420 = vunpack.c.l.b16 %v239
    %v421 = vunpack.c.h.b16 %v239
    %v422 = vunpack.c.l.b16 %v240
    %v423 = vunpack.c.l.b16 %v241
    %v424 = vunpack.c.h.b16 %v241
    %v425 = vunpack.c.l.b16 %v242
    %v426 = vunpack.c.l.b16 %v243
    %v427 = vunpack.c.h.b16 %v243
    %v428 = vunpack.c.l.b16 %v244
    %v429 = vunpack.c.l.b16 %v245
    %v430 = vunpack.c.h.b16 %v245
    %v431 = vunpack.c.l.b16 %v246
    %v432 = vunpack.c.l.b16 %v247
    %v433 = vunpack.c.h.b16 %v247
    %v434 = vunpack.c.l.b16 %v248
    %v435 = vunpack.c.l.b16 %v249
    %v436 = vunpack.c.h.b16 %v249
    %v437 = vunpack.c.l.b16 %v250
    %v438 = vunpack.c.l.b16 %v251
    %v439 = vunpack.c.h.b16 %v251
    %v440 = vunpack.c.l.b16 %v252
    %v441 = vunpack.c.l.b16 %v253
    %v442 = vunpack.c.h.b16 %v253
    %v443 = vunpack.c.l.b16 %v254
    %v444 = vunpack.c.l.b16 %v255
    %v445 = vunpack.c.h.b16 %v255
    %v446 = vunpack.c.l.b16 %v256
    %v447 = vunpack.c.l.b16 %v257
    %v448 = vunpack.c.h.b16 %v257
    %v449 = vunpack.c.l.b16 %v258
    %v450 = vunpack.c.l.b16 %v259
    %v451 = vunpack.c.h.b16 %v259
    %v452 = vunpack.c.l.b16 %v260
    %v453 = vunpack.c.l.b16 %v261
    %v454 = vunpack.c.h.b16 %v261
    %v455 = vunpack.c.l.b16 %v262
    %v456 = vunpack.c.l.b16 %v263
    %v457 = vunpack.c.h.b16 %v263
    %v458 = vunpack.c.l.b16 %v264
    %v459 = vunpack.c.l.b16 %v265
    %v460 = vunpack.c.h.b16 %v265
    %v461 = vunpack.c.l.b16 %v266
    %v462 = vpack.c.b16 %v417, %v414
    %v463 = vpack.c.b16 %v418, %v415
    %v464 = vpack.c.b16 %v419, %v416
    %v465 = vpack.c.b16 %v423, %v420
    %v466 = vpack.c.b16 %v424, %v421
    %v467 = vpack.c.b16 %v425, %v422
    %v468 = vpack.c.b16 %v429, %v426
    %v469 = vpack.c.b16 %v430, %v427
    %v470 = vpack.c.b16 %v431, %v428
    %v471 = vpack.c.b16 %v435, %v432
    %v472 = vpack.c.b16 %v436, %v433
    %v473 = vpack.c.b16 %v437, %v434
    %v474 = vpack.c.b16 %v441, %v438
    %v475 = vpack.c.b16 %v442, %v439
    %v476 = vpack.c.b16 %v443, %v440
    %v477 = vpack.c.b16 %v447, %v444
    %v478 = vpack.c.b16 %v448, %v445
    %v479 = vpack.c.b16 %v449, %v446
    %v480 = vpack.c.b16 %v453, %v450
    %v481 = vpack.c.b16 %v454, %v451
    %v482 = vpack.c.b16 %v455, %v452
    %v483 = vpack.c.b16 %v459, %v456
    %v484 = vpack.c.b16 %v460, %v457
    %v485 = vpack.c.b16 %v461, %v458
    %510 = vmatprep.subr.bf16.mxu0 %v463
    %511 = vmatpush1.bf16.msra.mxu0 %v462
    %512 = vmatprep.subr.bf16.mxu0 %v466
    %513 = vmatpush1.bf16.msra.mxu0 %v465
    %514 = vmatprep.subr.bf16.mxu0 %v469
    %515 = vmatpush1.bf16.msra.mxu0 %v468
    %516 = vmatprep.subr.bf16.mxu0 %v472
    %517 = vmatpush1.bf16.msra.mxu0 %v471
    %518 = vmatprep.subr.bf16.mxu0 %v475
    %519 = vmatpush1.bf16.msra.mxu0 %v474
    %520 = vmatprep.subr.bf16.mxu0 %v478
    %521 = vmatpush1.bf16.msra.mxu0 %v477
    %522 = vmatprep.subr.bf16.mxu0 %v481
    %523 = vmatpush1.bf16.msra.mxu0 %v480
    %524 = vmatprep.subr.bf16.mxu0 %v484
    %525 = vmatpush1.bf16.msra.mxu0 %v483
    %526 = vmatprep.subr.bf16.mxu0 0
    %527 = vmatpush1.bf16.msra.mxu0 0
    %528 = vmatprep.subr.bf16.mxu0 0
    %529 = vmatpush1.bf16.msra.mxu0 0
    %530 = vmatprep.subr.bf16.mxu0 0
    %531 = vmatpush1.bf16.msra.mxu0 0
    %532 = vmatprep.subr.bf16.mxu0 0
    %533 = vmatpush1.bf16.msra.mxu0 0
    %534 = vmatprep.subr.bf16.mxu0 0
    %535 = vmatpush1.bf16.msra.mxu0 0
    %536 = vmatprep.subr.bf16.mxu0 0
    %537 = vmatpush1.bf16.msra.mxu0 0
    %538 = vmatprep.subr.bf16.mxu0 0
    %539 = vmatpush1.bf16.msra.mxu0 0
    %540 = vmatprep.subr.bf16.mxu0 0
    %541 = vmatpush1.bf16.msra.mxu0 0
    %542 = vmatprep.mubr.bf16.mxu0 0
    %543 = vmatmul.mubr.bf16.gmra.mrb[0].mxu0 %v376
    %v544 = vpop.f32.mrb[0].mxu0
    %v545 = vadd.f32 0.0, %v544
    %v546 = vpop.f32.mrb[0].mxu0
    %v547 = vadd.f32 0.0, %v546
    %v548 = vpop.f32.mrb[0].mxu0
    %v549 = vadd.f32 0.0, %v548
    %v550 = vpop.f32.mrb[0].mxu0
    %v551 = vadd.f32 0.0, %v550
    %552 = vmatprep.mubr.bf16.mxu0 0
    %553 = vmatmul.mubr.bf16.gmra.mrb[0].mxu0 %v377
    %v554 = vpop.f32.mrb[0].mxu0
    %v555 = vadd.f32 0.0, %v554
    %v556 = vpop.f32.mrb[0].mxu0
    %v557 = vadd.f32 0.0, %v556
    %v558 = vpop.f32.mrb[0].mxu0
    %v559 = vadd.f32 0.0, %v558
    %v560 = vpop.f32.mrb[0].mxu0
    %v561 = vadd.f32 0.0, %v560
    %562 = vmatprep.mubr.bf16.mxu0 0
    %563 = vmatmul.mubr.bf16.gmra.mrb[0].mxu0 %v378
    %v564 = vpop.f32.mrb[0].mxu0
    %v565 = vadd.f32 0.0, %v564
    %v566 = vpop.f32.mrb[0].mxu0
    %v567 = vadd.f32 0.0, %v566
    %v568 = vpop.f32.mrb[0].mxu0
    %v569 = vadd.f32 0.0, %v568
    %v570 = vpop.f32.mrb[0].mxu0
    %v571 = vadd.f32 0.0, %v570
    %572 = vmatprep.mubr.bf16.mxu0 0
    %573 = vmatmul.mubr.bf16.gmra.mrb[0].mxu0 %v379
    %v574 = vpop.f32.mrb[0].mxu0
    %v575 = vadd.f32 0.0, %v574
    %v576 = vpop.f32.mrb[0].mxu0
    %v577 = vadd.f32 0.0, %v576
    %v578 = vpop.f32.mrb[0].mxu0
    %v579 = vadd.f32 0.0, %v578
    %v580 = vpop.f32.mrb[0].mxu0
    %v581 = vadd.f32 0.0, %v580
    %582 = vmatprep.mubr.bf16.mxu0 0
    %583 = vmatmul.mubr.bf16.gmra.mrb[0].mxu0 %v380
    %v584 = vpop.f32.mrb[0].mxu0
    %v585 = vadd.f32 0.0, %v584
    %v586 = vpop.f32.mrb[0].mxu0
    %v587 = vadd.f32 0.0, %v586
    %v588 = vpop.f32.mrb[0].mxu0
    %v589 = vadd.f32 0.0, %v588
    %v590 = vpop.f32.mrb[0].mxu0
    %v591 = vadd.f32 0.0, %v590
    %592 = vmatprep.mubr.bf16.mxu0 0
    %593 = vmatmul.mubr.bf16.gmra.mrb[0].mxu0 %v381
    %v594 = vpop.f32.mrb[0].mxu0
    %v595 = vadd.f32 0.0, %v594
    %v596 = vpop.f32.mrb[0].mxu0
    %v597 = vadd.f32 0.0, %v596
    %v598 = vpop.f32.mrb[0].mxu0
    %v599 = vadd.f32 0.0, %v598
    %v600 = vpop.f32.mrb[0].mxu0
    %v601 = vadd.f32 0.0, %v600
    %602 = vdwg.mxu0
    %603 = vmatprep.subr.bf16.mxu0 0
    %604 = vmatpush1.bf16.msra.mxu0 %v464
    %605 = vmatprep.subr.bf16.mxu0 0
    %606 = vmatpush1.bf16.msra.mxu0 %v467
    %607 = vmatprep.subr.bf16.mxu0 0
    %608 = vmatpush1.bf16.msra.mxu0 %v470
    %609 = vmatprep.subr.bf16.mxu0 0
    %610 = vmatpush1.bf16.msra.mxu0 %v473
    %611 = vmatprep.subr.bf16.mxu0 0
    %612 = vmatpush1.bf16.msra.mxu0 %v476
    %613 = vmatprep.subr.bf16.mxu0 0
    %614 = vmatpush1.bf16.msra.mxu0 %v479
    %615 = vmatprep.subr.bf16.mxu0 0
    %616 = vmatpush1.bf16.msra.mxu0 %v482
    %617 = vmatprep.subr.bf16.mxu0 0
    %618 = vmatpush1.bf16.msra.mxu0 %v485
    %619 = vmatprep.subr.bf16.mxu0 0
    %620 = vmatpush1.bf16.msra.mxu0 0
    %621 = vmatprep.subr.bf16.mxu0 0
    %622 = vmatpush1.bf16.msra.mxu0 0
    %623 = vmatprep.subr.bf16.mxu0 0
    %624 = vmatpush1.bf16.msra.mxu0 0
    %625 = vmatprep.subr.bf16.mxu0 0
    %626 = vmatpush1.bf16.msra.mxu0 0
    %627 = vmatprep.subr.bf16.mxu0 0
    %628 = vmatpush1.bf16.msra.mxu0 0
    %629 = vmatprep.subr.bf16.mxu0 0
    %630 = vmatpush1.bf16.msra.mxu0 0
    %631 = vmatprep.subr.bf16.mxu0 0
    %632 = vmatpush1.bf16.msra.mxu0 0
    %633 = vmatprep.subr.bf16.mxu0 0
    %634 = vmatpush1.bf16.msra.mxu0 0
    %635 = vmatprep.mubr.bf16.mxu0 0
    %636 = vmatmul.mubr.bf16.gmra.mrb[0].mxu0 %v376
    %v637 = vpop.f32.mrb[0].mxu0
    %v638 = vadd.f32 0.0, %v637
    %v639 = vpop.f32.mrb[0].mxu0
    %v640 = vpop.f32.mrb[0].mxu0
    %v641 = vadd.f32 0.0, %v640
    %v642 = vpop.f32.mrb[0].mxu0
    %643 = vmatprep.mubr.bf16.mxu0 0
    %644 = vmatmul.mubr.bf16.gmra.mrb[0].mxu0 %v377
    %v645 = vpop.f32.mrb[0].mxu0
    %v646 = vadd.f32 0.0, %v645
    %v647 = vpop.f32.mrb[0].mxu0
    %v648 = vpop.f32.mrb[0].mxu0
    %v649 = vadd.f32 0.0, %v648
    %v650 = vpop.f32.mrb[0].mxu0
    %651 = vmatprep.mubr.bf16.mxu0 0
    %652 = vmatmul.mubr.bf16.gmra.mrb[0].mxu0 %v378
    %v653 = vpop.f32.mrb[0].mxu0
    %v654 = vadd.f32 0.0, %v653
    %v655 = vpop.f32.mrb[0].mxu0
    %v656 = vpop.f32.mrb[0].mxu0
    %v657 = vadd.f32 0.0, %v656
    %v658 = vpop.f32.mrb[0].mxu0
    %659 = vmatprep.mubr.bf16.mxu0 0
    %660 = vmatmul.mubr.bf16.gmra.mrb[0].mxu0 %v379
    %v661 = vpop.f32.mrb[0].mxu0
    %v662 = vadd.f32 0.0, %v661
    %v663 = vpop.f32.mrb[0].mxu0
    %v664 = vpop.f32.mrb[0].mxu0
    %v665 = vadd.f32 0.0, %v664
    %v666 = vpop.f32.mrb[0].mxu0
    %667 = vmatprep.mubr.bf16.mxu0 0
    %668 = vmatmul.mubr.bf16.gmra.mrb[0].mxu0 %v380
    %v669 = vpop.f32.mrb[0].mxu0
    %v670 = vadd.f32 0.0, %v669
    %v671 = vpop.f32.mrb[0].mxu0
    %v672 = vpop.f32.mrb[0].mxu0
    %v673 = vadd.f32 0.0, %v672
    %v674 = vpop.f32.mrb[0].mxu0
    %675 = vmatprep.mubr.bf16.mxu0 0
    %676 = vmatmul.mubr.bf16.gmra.mrb[0].mxu0 %v381
    %v677 = vpop.f32.mrb[0].mxu0
    %v678 = vadd.f32 0.0, %v677
    %v679 = vpop.f32.mrb[0].mxu0
    %v680 = vpop.f32.mrb[0].mxu0
    %v681 = vadd.f32 0.0, %v680
    %v682 = vpop.f32.mrb[0].mxu0
    %683 = vdwg.mxu0
    %v685 = vlaneseq
    %v686 = vshrl.u32 %v685, 7
    %v687 = vsub.s32 0, %v686
    %v688 = vrot.slane %v267, %v687
    %v690 = vadd.f32 %v547, %v688
    %v691 = vadd.f32 %v551, %v688
    %v692 = vadd.f32 %v557, %v688
    %v693 = vadd.f32 %v561, %v688
    %v694 = vadd.f32 %v567, %v688
    %v695 = vadd.f32 %v571, %v688
    %v696 = vadd.f32 %v577, %v688
    %v697 = vadd.f32 %v581, %v688
    %v698 = vadd.f32 %v587, %v688
    %v699 = vadd.f32 %v591, %v688
    %v700 = vadd.f32 %v597, %v688
    %v701 = vadd.f32 %v601, %v688
    %vm714 = vcmask 1040384
    %v715 = vrot.slane %v545, 7
    %v716 = vrot.slane %v549, 7
    %v717 = vsel %vm714, %v715, %v716
    %v718 = vrot.slane %v555, 7
    %v719 = vrot.slane %v559, 7
    %v720 = vsel %vm714, %v718, %v719
    %v721 = vrot.slane %v565, 7
    %v722 = vrot.slane %v569, 7
    %v723 = vsel %vm714, %v721, %v722
    %v724 = vrot.slane %v575, 7
    %v725 = vrot.slane %v579, 7
    %v726 = vsel %vm714, %v724, %v725
    %v727 = vrot.slane %v585, 7
    %v728 = vrot.slane %v589, 7
    %v729 = vsel %vm714, %v727, %v728
    %v730 = vrot.slane %v595, 7
    %v731 = vrot.slane %v599, 7
    %v732 = vsel %vm714, %v730, %v731
    %v745 = vsel %vm714, 0.0, %v715
    %v746 = vsel %vm714, 0.0, %v718
    %v747 = vsel %vm714, 0.0, %v721
    %v748 = vsel %vm714, 0.0, %v724
    %v749 = vsel %vm714, 0.0, %v727
    %v750 = vsel %vm714, 0.0, %v730
    %v751 = vadd.f32 %v690, %v745
    %v752 = vadd.f32 %v691, %v717
    %v753 = vadd.f32 %v692, %v746
    %v754 = vadd.f32 %v693, %v720
    %v755 = vadd.f32 %v694, %v747
    %v756 = vadd.f32 %v695, %v723
    %v757 = vadd.f32 %v696, %v748
    %v758 = vadd.f32 %v697, %v726
    %v759 = vadd.f32 %v698, %v749
    %v760 = vadd.f32 %v699, %v729
    %v761 = vadd.f32 %v700, %v750
    %v762 = vadd.f32 %v701, %v732
    %vm775 = vcmask 1046528
    %v776 = vrot.slane %v638, 1
    %v777 = vrot.slane %v641, 1
    %v778 = vsel %vm775, %v776, %v777
    %v779 = vrot.slane %v646, 1
    %v780 = vrot.slane %v649, 1
    %v781 = vsel %vm775, %v779, %v780
    %v782 = vrot.slane %v654, 1
    %v783 = vrot.slane %v657, 1
    %v784 = vsel %vm775, %v782, %v783
    %v785 = vrot.slane %v662, 1
    %v786 = vrot.slane %v665, 1
    %v787 = vsel %vm775, %v785, %v786
    %v788 = vrot.slane %v670, 1
    %v789 = vrot.slane %v673, 1
    %v790 = vsel %vm775, %v788, %v789
    %v791 = vrot.slane %v678, 1
    %v792 = vrot.slane %v681, 1
    %v793 = vsel %vm775, %v791, %v792
    %v806 = vsel %vm775, %v777, 0.0
    %v807 = vsel %vm775, %v780, 0.0
    %v808 = vsel %vm775, %v783, 0.0
    %v809 = vsel %vm775, %v786, 0.0
    %v810 = vsel %vm775, %v789, 0.0
    %v811 = vsel %vm775, %v792, 0.0
    %v812 = vadd.f32 %v751, %v778
    %v813 = vadd.f32 %v752, %v806
    %v814 = vadd.f32 %v753, %v781
    %v815 = vadd.f32 %v754, %v807
    %v816 = vadd.f32 %v755, %v784
    %v817 = vadd.f32 %v756, %v808
    %v818 = vadd.f32 %v757, %v787
    %v819 = vadd.f32 %v758, %v809
    %v820 = vadd.f32 %v759, %v790
    %v821 = vadd.f32 %v760, %v810
    %v822 = vadd.f32 %v761, %v793
    %v823 = vadd.f32 %v762, %v811
    %v824 = vld [vmem:[#allocation5] sm:$0xff]
    %v825 = vld [vmem:[#allocation5 + $0x8] sm:$0xf]
    %v826 = vld [vmem:[#allocation5 + $0xc] sm:$0xff]
    %v827 = vld [vmem:[#allocation5 + $0x14] sm:$0xf]
    %v828 = vld [vmem:[#allocation5 + $0x18] sm:$0xff]
    %v829 = vld [vmem:[#allocation5 + $0x20] sm:$0xf]
    %v830 = vld [vmem:[#allocation5 + $0x24] sm:$0xff]
    %v831 = vld [vmem:[#allocation5 + $0x2c] sm:$0xf]
    %v832 = vld [vmem:[#allocation5 + $0x30] sm:$0xff]
    %v833 = vld [vmem:[#allocation5 + $0x38] sm:$0xf]
    %v834 = vld [vmem:[#allocation5 + $0x3c] sm:$0xff]
    %v835 = vld [vmem:[#allocation5 + $0x44] sm:$0xf]
    %v836 = vld [vmem:[#allocation5 + $0x48] sm:$0xff]
    %v837 = vld [vmem:[#allocation5 + $0x50] sm:$0xf]
    %v838 = vld [vmem:[#allocation5 + $0x54] sm:$0xff]
    %v839 = vld [vmem:[#allocation5 + $0x5c] sm:$0xf]
    %v840 = vld [vmem:[#allocation5 + $0x60] sm:$0xff]
    %v841 = vld [vmem:[#allocation5 + $0x68] sm:$0xf]
    %v842 = vld [vmem:[#allocation5 + $0x6c] sm:$0xff]
    %v843 = vld [vmem:[#allocation5 + $0x74] sm:$0xf]
    %v844 = vld [vmem:[#allocation5 + $0x78] sm:$0xff]
    %v845 = vld [vmem:[#allocation5 + $0x80] sm:$0xf]
    %v846 = vld [vmem:[#allocation5 + $0x84] sm:$0xff]
    %v847 = vld [vmem:[#allocation5 + $0x8c] sm:$0xf]
    %v848 = vld [vmem:[#allocation5 + $0x90] sm:$0xff]
    %v849 = vld [vmem:[#allocation5 + $0x98] sm:$0xf]
    %v850 = vld [vmem:[#allocation5 + $0x9c] sm:$0xff]
    %v851 = vld [vmem:[#allocation5 + $0xa4] sm:$0xf]
    %v852 = vld [vmem:[#allocation5 + $0xa8] sm:$0xff]
    %v853 = vld [vmem:[#allocation5 + $0xb0] sm:$0xf]
    %v854 = vld [vmem:[#allocation5 + $0xb4] sm:$0xff]
    %v855 = vld [vmem:[#allocation5 + $0xbc] sm:$0xf]
    %v856 = vld [vmem:[%s6] sm:$0x1]
    %v857 = vmul.f32 %v812, %v812
    %v858 = vmul.f32 %v813, %v813
    %v859 = vmul.f32 %v814, %v814
    %v860 = vmul.f32 %v815, %v815
    %v861 = vmul.f32 %v816, %v816
    %v862 = vmul.f32 %v817, %v817
    %v863 = vmul.f32 %v818, %v818
    %v864 = vmul.f32 %v819, %v819
    %v865 = vmul.f32 %v820, %v820
    %v866 = vmul.f32 %v821, %v821
    %v867 = vmul.f32 %v822, %v822
    %v868 = vmul.f32 %v823, %v823
    %v869 = vmul.f32 %v812, %v857
    %v870 = vmul.f32 %v813, %v858
    %v871 = vmul.f32 %v814, %v859
    %v872 = vmul.f32 %v815, %v860
    %v873 = vmul.f32 %v816, %v861
    %v874 = vmul.f32 %v817, %v862
    %v875 = vmul.f32 %v818, %v863
    %v876 = vmul.f32 %v819, %v864
    %v877 = vmul.f32 %v820, %v865
    %v878 = vmul.f32 %v821, %v866
    %v879 = vmul.f32 %v822, %v867
    %v880 = vmul.f32 %v823, %v868
    %v881 = vmul.f32 %v869, 0.044715
    %v882 = vmul.f32 %v870, 0.044715
    %v883 = vmul.f32 %v871, 0.044715
    %v884 = vmul.f32 %v872, 0.044715
    %v885 = vmul.f32 %v873, 0.044715
    %v886 = vmul.f32 %v874, 0.044715
    %v887 = vmul.f32 %v875, 0.044715
    %v888 = vmul.f32 %v876, 0.044715
    %v889 = vmul.f32 %v877, 0.044715
    %v890 = vmul.f32 %v878, 0.044715
    %v891 = vmul.f32 %v879, 0.044715
    %v892 = vmul.f32 %v880, 0.044715
    %v893 = vadd.f32 %v812, %v881
    %v894 = vadd.f32 %v813, %v882
    %v895 = vadd.f32 %v814, %v883
    %v896 = vadd.f32 %v815, %v884
    %v897 = vadd.f32 %v816, %v885
    %v898 = vadd.f32 %v817, %v886
    %v899 = vadd.f32 %v818, %v887
    %v900 = vadd.f32 %v819, %v888
    %v901 = vadd.f32 %v820, %v889
    %v902 = vadd.f32 %v821, %v890
    %v903 = vadd.f32 %v822, %v891
    %v904 = vadd.f32 %v823, %v892
    %v905 = vmul.f32 %v893, 0.7978846
    %v906 = vmul.f32 %v894, 0.7978846
    %v907 = vmul.f32 %v895, 0.7978846
    %v908 = vmul.f32 %v896, 0.7978846
    %v909 = vmul.f32 %v897, 0.7978846
    %v910 = vmul.f32 %v898, 0.7978846
    %v911 = vmul.f32 %v899, 0.7978846
    %v912 = vmul.f32 %v900, 0.7978846
    %v913 = vmul.f32 %v901, 0.7978846
    %v914 = vmul.f32 %v902, 0.7978846
    %v915 = vmul.f32 %v903, 0.7978846
    %v916 = vmul.f32 %v904, 0.7978846
    %v917 = vtanh.pop %v905
    %v918 = vtanh.pop %v906
    %v919 = vtanh.pop %v907
    %v920 = vtanh.pop %v908
    %v921 = vtanh.pop %v909
    %v922 = vtanh.pop %v910
    %v923 = vtanh.pop %v911
    %v924 = vtanh.pop %v912
    %v925 = vtanh.pop %v913
    %v926 = vtanh.pop %v914
    %v927 = vtanh.pop %v915
    %v928 = vtanh.pop %v916
    %v929 = vadd.f32 %v917, 1.0
    %v930 = vadd.f32 %v918, 1.0
    %v931 = vadd.f32 %v919, 1.0
    %v932 = vadd.f32 %v920, 1.0
    %v933 = vadd.f32 %v921, 1.0
    %v934 = vadd.f32 %v922, 1.0
    %v935 = vadd.f32 %v923, 1.0
    %v936 = vadd.f32 %v924, 1.0
    %v937 = vadd.f32 %v925, 1.0
    %v938 = vadd.f32 %v926, 1.0
    %v939 = vadd.f32 %v927, 1.0
    %v940 = vadd.f32 %v928, 1.0
    %v941 = vmul.f32 %v929, 0.5
    %v942 = vmul.f32 %v930, 0.5
    %v943 = vmul.f32 %v931, 0.5
    %v944 = vmul.f32 %v932, 0.5
    %v945 = vmul.f32 %v933, 0.5
    %v946 = vmul.f32 %v934, 0.5
    %v947 = vmul.f32 %v935, 0.5
    %v948 = vmul.f32 %v936, 0.5
    %v949 = vmul.f32 %v937, 0.5
    %v950 = vmul.f32 %v938, 0.5
    %v951 = vmul.f32 %v939, 0.5
    %v952 = vmul.f32 %v940, 0.5
    %v953 = vmul.f32 %v812, %v941
    %v954 = vmul.f32 %v813, %v942
    %v955 = vmul.f32 %v814, %v943
    %v956 = vmul.f32 %v815, %v944
    %v957 = vmul.f32 %v816, %v945
    %v958 = vmul.f32 %v817, %v946
    %v959 = vmul.f32 %v818, %v947
    %v960 = vmul.f32 %v819, %v948
    %v961 = vmul.f32 %v820, %v949
    %v962 = vmul.f32 %v821, %v950
    %v963 = vmul.f32 %v822, %v951
    %v964 = vmul.f32 %v823, %v952
    %v965 = vpack.c.bf16 %v954, %v953
    %v966 = vpack.c.bf16 %v956, %v955
    %v967 = vpack.c.bf16 %v958, %v957
    %v968 = vpack.c.bf16 %v960, %v959
    %v969 = vpack.c.bf16 %v962, %v961
    %v970 = vpack.c.bf16 %v964, %v963
    %v1003 = vunpack.c.l.b16 %v824
    %v1004 = vunpack.c.h.b16 %v824
    %v1005 = vunpack.c.l.b16 %v825
    %v1006 = vunpack.c.l.b16 %v826
    %v1007 = vunpack.c.h.b16 %v826
    %v1008 = vunpack.c.l.b16 %v827
    %v1009 = vunpack.c.l.b16 %v828
    %v1010 = vunpack.c.h.b16 %v828
    %v1011 = vunpack.c.l.b16 %v829
    %v1012 = vunpack.c.l.b16 %v830
    %v1013 = vunpack.c.h.b16 %v830
    %v1014 = vunpack.c.l.b16 %v831
    %v1015 = vunpack.c.l.b16 %v832
    %v1016 = vunpack.c.h.b16 %v832
    %v1017 = vunpack.c.l.b16 %v833
    %v1018 = vunpack.c.l.b16 %v834
    %v1019 = vunpack.c.h.b16 %v834
    %v1020 = vunpack.c.l.b16 %v835
    %v1021 = vunpack.c.l.b16 %v836
    %v1022 = vunpack.c.h.b16 %v836
    %v1023 = vunpack.c.l.b16 %v837
    %v1024 = vunpack.c.l.b16 %v838
    %v1025 = vunpack.c.h.b16 %v838
    %v1026 = vunpack.c.l.b16 %v839
    %v1027 = vunpack.c.l.b16 %v840
    %v1028 = vunpack.c.h.b16 %v840
    %v1029 = vunpack.c.l.b16 %v841
    %v1030 = vunpack.c.l.b16 %v842
    %v1031 = vunpack.c.h.b16 %v842
    %v1032 = vunpack.c.l.b16 %v843
    %v1033 = vunpack.c.l.b16 %v844
    %v1034 = vunpack.c.h.b16 %v844
    %v1035 = vunpack.c.l.b16 %v845
    %v1036 = vunpack.c.l.b16 %v846
    %v1037 = vunpack.c.h.b16 %v846
    %v1038 = vunpack.c.l.b16 %v847
    %v1039 = vunpack.c.l.b16 %v848
    %v1040 = vunpack.c.h.b16 %v848
    %v1041 = vunpack.c.l.b16 %v849
    %v1042 = vunpack.c.l.b16 %v850
    %v1043 = vunpack.c.h.b16 %v850
    %v1044 = vunpack.c.l.b16 %v851
    %v1045 = vunpack.c.l.b16 %v852
    %v1046 = vunpack.c.h.b16 %v852
    %v1047 = vunpack.c.l.b16 %v853
    %v1048 = vunpack.c.l.b16 %v854
    %v1049 = vunpack.c.h.b16 %v854
    %v1050 = vunpack.c.l.b16 %v855
    %v1051 = vpack.c.b16 %v1006, %v1003
    %v1052 = vpack.c.b16 %v1007, %v1004
    %v1053 = vpack.c.b16 %v1008, %v1005
    %v1054 = vpack.c.b16 %v1012, %v1009
    %v1055 = vpack.c.b16 %v1013, %v1010
    %v1056 = vpack.c.b16 %v1014, %v1011
    %v1057 = vpack.c.b16 %v1018, %v1015
    %v1058 = vpack.c.b16 %v1019, %v1016
    %v1059 = vpack.c.b16 %v1020, %v1017
    %v1060 = vpack.c.b16 %v1024, %v1021
    %v1061 = vpack.c.b16 %v1025, %v1022
    %v1062 = vpack.c.b16 %v1026, %v1023
    %v1063 = vpack.c.b16 %v1030, %v1027
    %v1064 = vpack.c.b16 %v1031, %v1028
    %v1065 = vpack.c.b16 %v1032, %v1029
    %v1066 = vpack.c.b16 %v1036, %v1033
    %v1067 = vpack.c.b16 %v1037, %v1034
    %v1068 = vpack.c.b16 %v1038, %v1035
    %v1069 = vpack.c.b16 %v1042, %v1039
    %v1070 = vpack.c.b16 %v1043, %v1040
    %v1071 = vpack.c.b16 %v1044, %v1041
    %v1072 = vpack.c.b16 %v1048, %v1045
    %v1073 = vpack.c.b16 %v1049, %v1046
    %v1074 = vpack.c.b16 %v1050, %v1047
    %1099 = vmatprep.subr.bf16.mxu0 %v1052
    %1100 = vmatpush1.bf16.msra.mxu0 %v1051
    %1101 = vmatprep.subr.bf16.mxu0 %v1055
    %1102 = vmatpush1.bf16.msra.mxu0 %v1054
    %1103 = vmatprep.subr.bf16.mxu0 %v1058
    %1104 = vmatpush1.bf16.msra.mxu0 %v1057
    %1105 = vmatprep.subr.bf16.mxu0 %v1061
    %1106 = vmatpush1.bf16.msra.mxu0 %v1060
    %1107 = vmatprep.subr.bf16.mxu0 %v1064
    %1108 = vmatpush1.bf16.msra.mxu0 %v1063
    %1109 = vmatprep.subr.bf16.mxu0 %v1067
    %1110 = vmatpush1.bf16.msra.mxu0 %v1066
    %1111 = vmatprep.subr.bf16.mxu0 %v1070
    %1112 = vmatpush1.bf16.msra.mxu0 %v1069
    %1113 = vmatprep.subr.bf16.mxu0 %v1073
    %1114 = vmatpush1.bf16.msra.mxu0 %v1072
    %1115 = vmatprep.subr.bf16.mxu0 0
    %1116 = vmatpush1.bf16.msra.mxu0 0
    %1117 = vmatprep.subr.bf16.mxu0 0
    %1118 = vmatpush1.bf16.msra.mxu0 0
    %1119 = vmatprep.subr.bf16.mxu0 0
    %1120 = vmatpush1.bf16.msra.mxu0 0
    %1121 = vmatprep.subr.bf16.mxu0 0
    %1122 = vmatpush1.bf16.msra.mxu0 0
    %1123 = vmatprep.subr.bf16.mxu0 0
    %1124 = vmatpush1.bf16.msra.mxu0 0
    %1125 = vmatprep.subr.bf16.mxu0 0
    %1126 = vmatpush1.bf16.msra.mxu0 0
    %1127 = vmatprep.subr.bf16.mxu0 0
    %1128 = vmatpush1.bf16.msra.mxu0 0
    %1129 = vmatprep.subr.bf16.mxu0 0
    %1130 = vmatpush1.bf16.msra.mxu0 0
    %1131 = vmatprep.mubr.bf16.mxu0 0
    %1132 = vmatmul.mubr.bf16.gmra.mrb[0].mxu0 %v965
    %v1133 = vpop.f32.mrb[0].mxu0
    %v1134 = vadd.f32 0.0, %v1133
    %v1135 = vpop.f32.mrb[0].mxu0
    %v1136 = vadd.f32 0.0, %v1135
    %v1137 = vpop.f32.mrb[0].mxu0
    %v1138 = vadd.f32 0.0, %v1137
    %v1139 = vpop.f32.mrb[0].mxu0
    %v1140 = vadd.f32 0.0, %v1139
    %1141 = vmatprep.mubr.bf16.mxu0 0
    %1142 = vmatmul.mubr.bf16.gmra.mrb[0].mxu0 %v966
    %v1143 = vpop.f32.mrb[0].mxu0
    %v1144 = vadd.f32 0.0, %v1143
    %v1145 = vpop.f32.mrb[0].mxu0
    %v1146 = vadd.f32 0.0, %v1145
    %v1147 = vpop.f32.mrb[0].mxu0
    %v1148 = vadd.f32 0.0, %v1147
    %v1149 = vpop.f32.mrb[0].mxu0
    %v1150 = vadd.f32 0.0, %v1149
    %1151 = vmatprep.mubr.bf16.mxu0 0
    %1152 = vmatmul.mubr.bf16.gmra.mrb[0].mxu0 %v967
    %v1153 = vpop.f32.mrb[0].mxu0
    %v1154 = vadd.f32 0.0, %v1153
    %v1155 = vpop.f32.mrb[0].mxu0
    %v1156 = vadd.f32 0.0, %v1155
    %v1157 = vpop.f32.mrb[0].mxu0
    %v1158 = vadd.f32 0.0, %v1157
    %v1159 = vpop.f32.mrb[0].mxu0
    %v1160 = vadd.f32 0.0, %v1159
    %1161 = vmatprep.mubr.bf16.mxu0 0
    %1162 = vmatmul.mubr.bf16.gmra.mrb[0].mxu0 %v968
    %v1163 = vpop.f32.mrb[0].mxu0
    %v1164 = vadd.f32 0.0, %v1163
    %v1165 = vpop.f32.mrb[0].mxu0
    %v1166 = vadd.f32 0.0, %v1165
    %v1167 = vpop.f32.mrb[0].mxu0
    %v1168 = vadd.f32 0.0, %v1167
    %v1169 = vpop.f32.mrb[0].mxu0
    %v1170 = vadd.f32 0.0, %v1169
    %1171 = vmatprep.mubr.bf16.mxu0 0
    %1172 = vmatmul.mubr.bf16.gmra.mrb[0].mxu0 %v969
    %v1173 = vpop.f32.mrb[0].mxu0
    %v1174 = vadd.f32 0.0, %v1173
    %v1175 = vpop.f32.mrb[0].mxu0
    %v1176 = vadd.f32 0.0, %v1175
    %v1177 = vpop.f32.mrb[0].mxu0
    %v1178 = vadd.f32 0.0, %v1177
    %v1179 = vpop.f32.mrb[0].mxu0
    %v1180 = vadd.f32 0.0, %v1179
    %1181 = vmatprep.mubr.bf16.mxu0 0
    %1182 = vmatmul.mubr.bf16.gmra.mrb[0].mxu0 %v970
    %v1183 = vpop.f32.mrb[0].mxu0
    %v1184 = vadd.f32 0.0, %v1183
    %v1185 = vpop.f32.mrb[0].mxu0
    %v1186 = vadd.f32 0.0, %v1185
    %v1187 = vpop.f32.mrb[0].mxu0
    %v1188 = vadd.f32 0.0, %v1187
    %v1189 = vpop.f32.mrb[0].mxu0
    %v1190 = vadd.f32 0.0, %v1189
    %1191 = vdwg.mxu0
    %1192 = vmatprep.subr.bf16.mxu0 0
    %1193 = vmatpush1.bf16.msra.mxu0 %v1053
    %1194 = vmatprep.subr.bf16.mxu0 0
    %1195 = vmatpush1.bf16.msra.mxu0 %v1056
    %1196 = vmatprep.subr.bf16.mxu0 0
    %1197 = vmatpush1.bf16.msra.mxu0 %v1059
    %1198 = vmatprep.subr.bf16.mxu0 0
    %1199 = vmatpush1.bf16.msra.mxu0 %v1062
    %1200 = vmatprep.subr.bf16.mxu0 0
    %1201 = vmatpush1.bf16.msra.mxu0 %v1065
    %1202 = vmatprep.subr.bf16.mxu0 0
    %1203 = vmatpush1.bf16.msra.mxu0 %v1068
    %1204 = vmatprep.subr.bf16.mxu0 0
    %1205 = vmatpush1.bf16.msra.mxu0 %v1071
    %1206 = vmatprep.subr.bf16.mxu0 0
    %1207 = vmatpush1.bf16.msra.mxu0 %v1074
    %1208 = vmatprep.subr.bf16.mxu0 0
    %1209 = vmatpush1.bf16.msra.mxu0 0
    %1210 = vmatprep.subr.bf16.mxu0 0
    %1211 = vmatpush1.bf16.msra.mxu0 0
    %1212 = vmatprep.subr.bf16.mxu0 0
    %1213 = vmatpush1.bf16.msra.mxu0 0
    %1214 = vmatprep.subr.bf16.mxu0 0
    %1215 = vmatpush1.bf16.msra.mxu0 0
    %1216 = vmatprep.subr.bf16.mxu0 0
    %1217 = vmatpush1.bf16.msra.mxu0 0
    %1218 = vmatprep.subr.bf16.mxu0 0
    %1219 = vmatpush1.bf16.msra.mxu0 0
    %1220 = vmatprep.subr.bf16.mxu0 0
    %1221 = vmatpush1.bf16.msra.mxu0 0
    %1222 = vmatprep.subr.bf16.mxu0 0
    %1223 = vmatpush1.bf16.msra.mxu0 0
    %1224 = vmatprep.mubr.bf16.mxu0 0
    %1225 = vmatmul.mubr.bf16.gmra.mrb[0].mxu0 %v965
    %v1226 = vpop.f32.mrb[0].mxu0
    %v1227 = vadd.f32 0.0, %v1226
    %v1228 = vpop.f32.mrb[0].mxu0
    %v1229 = vpop.f32.mrb[0].mxu0
    %v1230 = vadd.f32 0.0, %v1229
    %v1231 = vpop.f32.mrb[0].mxu0
    %1232 = vmatprep.mubr.bf16.mxu0 0
    %1233 = vmatmul.mubr.bf16.gmra.mrb[0].mxu0 %v966
    %v1234 = vpop.f32.mrb[0].mxu0
    %v1235 = vadd.f32 0.0, %v1234
    %v1236 = vpop.f32.mrb[0].mxu0
    %v1237 = vpop.f32.mrb[0].mxu0
    %v1238 = vadd.f32 0.0, %v1237
    %v1239 = vpop.f32.mrb[0].mxu0
    %1240 = vmatprep.mubr.bf16.mxu0 0
    %1241 = vmatmul.mubr.bf16.gmra.mrb[0].mxu0 %v967
    %v1242 = vpop.f32.mrb[0].mxu0
    %v1243 = vadd.f32 0.0, %v1242
    %v1244 = vpop.f32.mrb[0].mxu0
    %v1245 = vpop.f32.mrb[0].mxu0
    %v1246 = vadd.f32 0.0, %v1245
    %v1247 = vpop.f32.mrb[0].mxu0
    %1248 = vmatprep.mubr.bf16.mxu0 0
    %1249 = vmatmul.mubr.bf16.gmra.mrb[0].mxu0 %v968
    %v1250 = vpop.f32.mrb[0].mxu0
    %v1251 = vadd.f32 0.0, %v1250
    %v1252 = vpop.f32.mrb[0].mxu0
    %v1253 = vpop.f32.mrb[0].mxu0
    %v1254 = vadd.f32 0.0, %v1253
    %v1255 = vpop.f32.mrb[0].mxu0
    %1256 = vmatprep.mubr.bf16.mxu0 0
    %1257 = vmatmul.mubr.bf16.gmra.mrb[0].mxu0 %v969
    %v1258 = vpop.f32.mrb[0].mxu0
    %v1259 = vadd.f32 0.0, %v1258
    %v1260 = vpop.f32.mrb[0].mxu0
    %v1261 = vpop.f32.mrb[0].mxu0
    %v1262 = vadd.f32 0.0, %v1261
    %v1263 = vpop.f32.mrb[0].mxu0
    %1264 = vmatprep.mubr.bf16.mxu0 0
    %1265 = vmatmul.mubr.bf16.gmra.mrb[0].mxu0 %v970
    %v1266 = vpop.f32.mrb[0].mxu0
    %v1267 = vadd.f32 0.0, %v1266
    %v1268 = vpop.f32.mrb[0].mxu0
    %v1269 = vpop.f32.mrb[0].mxu0
    %v1270 = vadd.f32 0.0, %v1269
    %v1271 = vpop.f32.mrb[0].mxu0
    %1272 = vdwg.mxu0
    %v1274 = vlaneseq
    %v1275 = vshrl.u32 %v1274, 7
    %v1276 = vsub.s32 0, %v1275
    %v1277 = vrot.slane %v856, %v1276
    %v1279 = vadd.f32 %v1136, %v1277
    %v1280 = vadd.f32 %v1140, %v1277
    %v1281 = vadd.f32 %v1146, %v1277
    %v1282 = vadd.f32 %v1150, %v1277
    %v1283 = vadd.f32 %v1156, %v1277
    %v1284 = vadd.f32 %v1160, %v1277
    %v1285 = vadd.f32 %v1166, %v1277
    %v1286 = vadd.f32 %v1170, %v1277
    %v1287 = vadd.f32 %v1176, %v1277
    %v1288 = vadd.f32 %v1180, %v1277
    %v1289 = vadd.f32 %v1186, %v1277
    %v1290 = vadd.f32 %v1190, %v1277
    %v1303 = vrot.slane %v1134, 7
    %v1304 = vrot.slane %v1138, 7
    %v1305 = vsel %vm714, %v1303, %v1304
    %v1306 = vrot.slane %v1144, 7
    %v1307 = vrot.slane %v1148, 7
    %v1308 = vsel %vm714, %v1306, %v1307
    %v1309 = vrot.slane %v1154, 7
    %v1310 = vrot.slane %v1158, 7
    %v1311 = vsel %vm714, %v1309, %v1310
    %v1312 = vrot.slane %v1164, 7
    %v1313 = vrot.slane %v1168, 7
    %v1314 = vsel %vm714, %v1312, %v1313
    %v1315 = vrot.slane %v1174, 7
    %v1316 = vrot.slane %v1178, 7
    %v1317 = vsel %vm714, %v1315, %v1316
    %v1318 = vrot.slane %v1184, 7
    %v1319 = vrot.slane %v1188, 7
    %v1320 = vsel %vm714, %v1318, %v1319
    %v1333 = vsel %vm714, 0.0, %v1303
    %v1334 = vsel %vm714, 0.0, %v1306
    %v1335 = vsel %vm714, 0.0, %v1309
    %v1336 = vsel %vm714, 0.0, %v1312
    %v1337 = vsel %vm714, 0.0, %v1315
    %v1338 = vsel %vm714, 0.0, %v1318
    %v1339 = vadd.f32 %v1279, %v1333
    %v1340 = vadd.f32 %v1280, %v1305
    %v1341 = vadd.f32 %v1281, %v1334
    %v1342 = vadd.f32 %v1282, %v1308
    %v1343 = vadd.f32 %v1283, %v1335
    %v1344 = vadd.f32 %v1284, %v1311
    %v1345 = vadd.f32 %v1285, %v1336
    %v1346 = vadd.f32 %v1286, %v1314
    %v1347 = vadd.f32 %v1287, %v1337
    %v1348 = vadd.f32 %v1288, %v1317
    %v1349 = vadd.f32 %v1289, %v1338
    %v1350 = vadd.f32 %v1290, %v1320
    %v1363 = vrot.slane %v1227, 1
    %v1364 = vrot.slane %v1230, 1
    %v1365 = vsel %vm775, %v1363, %v1364
    %v1366 = vrot.slane %v1235, 1
    %v1367 = vrot.slane %v1238, 1
    %v1368 = vsel %vm775, %v1366, %v1367
    %v1369 = vrot.slane %v1243, 1
    %v1370 = vrot.slane %v1246, 1
    %v1371 = vsel %vm775, %v1369, %v1370
    %v1372 = vrot.slane %v1251, 1
    %v1373 = vrot.slane %v1254, 1
    %v1374 = vsel %vm775, %v1372, %v1373
    %v1375 = vrot.slane %v1259, 1
    %v1376 = vrot.slane %v1262, 1
    %v1377 = vsel %vm775, %v1375, %v1376
    %v1378 = vrot.slane %v1267, 1
    %v1379 = vrot.slane %v1270, 1
    %v1380 = vsel %vm775, %v1378, %v1379
    %v1393 = vsel %vm775, %v1364, 0.0
    %v1394 = vsel %vm775, %v1367, 0.0
    %v1395 = vsel %vm775, %v1370, 0.0
    %v1396 = vsel %vm775, %v1373, 0.0
    %v1397 = vsel %vm775, %v1376, 0.0
    %v1398 = vsel %vm775, %v1379, 0.0
    %v1399 = vadd.f32 %v1339, %v1365
    %v1400 = vadd.f32 %v1340, %v1393
    %v1401 = vadd.f32 %v1341, %v1368
    %v1402 = vadd.f32 %v1342, %v1394
    %v1403 = vadd.f32 %v1343, %v1371
    %v1404 = vadd.f32 %v1344, %v1395
    %v1405 = vadd.f32 %v1345, %v1374
    %v1406 = vadd.f32 %v1346, %v1396
    %v1407 = vadd.f32 %v1347, %v1377
    %v1408 = vadd.f32 %v1348, %v1397
    %v1409 = vadd.f32 %v1349, %v1380
    %v1410 = vadd.f32 %v1350, %v1398
    %v1411 = vadd.f32 %v1399, %v223
    %v1412 = vadd.f32 %v1400, %v224
    %v1413 = vadd.f32 %v1401, %v225
    %v1414 = vadd.f32 %v1402, %v226
    %v1415 = vadd.f32 %v1403, %v227
    %v1416 = vadd.f32 %v1404, %v228
    %v1417 = vadd.f32 %v1405, %v229
    %v1418 = vadd.f32 %v1406, %v230
    %v1419 = vadd.f32 %v1407, %v231
    %v1420 = vadd.f32 %v1408, %v232
    %v1421 = vadd.f32 %v1409, %v233
    %v1422 = vadd.f32 %v1410, %v234
    %s1423 = scalar_lea.vmem [#allocation2], 192
    %v1424 = vld [vmem:[%s1423] sm:$0xff]
    %v1425 = vld [vmem:[%s1423 + $0x8] sm:$0xf]
    %v1426 = vld [vmem:[%s1423 + $0xc] sm:$0xff]
    %v1427 = vld [vmem:[%s1423 + $0x14] sm:$0xf]
    %v1428 = vld [vmem:[%s1423 + $0x18] sm:$0xff]
    %v1429 = vld [vmem:[%s1423 + $0x20] sm:$0xf]
    %v1430 = vld [vmem:[%s1423 + $0x24] sm:$0xff]
    %v1431 = vld [vmem:[%s1423 + $0x2c] sm:$0xf]
    %v1432 = vld [vmem:[%s1423 + $0x30] sm:$0xff]
    %v1433 = vld [vmem:[%s1423 + $0x38] sm:$0xf]
    %v1434 = vld [vmem:[%s1423 + $0x3c] sm:$0xff]
    %v1435 = vld [vmem:[%s1423 + $0x44] sm:$0xf]
    %v1436 = vld [vmem:[%s1423 + $0x48] sm:$0xff]
    %v1437 = vld [vmem:[%s1423 + $0x50] sm:$0xf]
    %v1438 = vld [vmem:[%s1423 + $0x54] sm:$0xff]
    %v1439 = vld [vmem:[%s1423 + $0x5c] sm:$0xf]
    %v1440 = vld [vmem:[%s1423 + $0x60] sm:$0xff]
    %v1441 = vld [vmem:[%s1423 + $0x68] sm:$0xf]
    %v1442 = vld [vmem:[%s1423 + $0x6c] sm:$0xff]
    %v1443 = vld [vmem:[%s1423 + $0x74] sm:$0xf]
    %v1444 = vld [vmem:[%s1423 + $0x78] sm:$0xff]
    %v1445 = vld [vmem:[%s1423 + $0x80] sm:$0xf]
    %v1446 = vld [vmem:[%s1423 + $0x84] sm:$0xff]
    %v1447 = vld [vmem:[%s1423 + $0x8c] sm:$0xf]
    %v1448 = vld [vmem:[%s1423 + $0x90] sm:$0xff]
    %v1449 = vld [vmem:[%s1423 + $0x98] sm:$0xf]
    %v1450 = vld [vmem:[%s1423 + $0x9c] sm:$0xff]
    %v1451 = vld [vmem:[%s1423 + $0xa4] sm:$0xf]
    %v1452 = vld [vmem:[%s1423 + $0xa8] sm:$0xff]
    %v1453 = vld [vmem:[%s1423 + $0xb0] sm:$0xf]
    %v1454 = vld [vmem:[%s1423 + $0xb4] sm:$0xff]
    %v1455 = vld [vmem:[%s1423 + $0xbc] sm:$0xf]
    %s1456 = scalar_lea.vmem %s4, 1
    %v1457 = vld [vmem:[%s1456] sm:$0x1]
    %v1458 = vmul.f32 %v1411, %v1411
    %v1459 = vmul.f32 %v1412, %v1412
    %v1460 = vmul.f32 %v1413, %v1413
    %v1461 = vmul.f32 %v1414, %v1414
    %v1462 = vmul.f32 %v1415, %v1415
    %v1463 = vmul.f32 %v1416, %v1416
    %v1464 = vmul.f32 %v1417, %v1417
    %v1465 = vmul.f32 %v1418, %v1418
    %v1466 = vmul.f32 %v1419, %v1419
    %v1467 = vmul.f32 %v1420, %v1420
    %v1468 = vmul.f32 %v1421, %v1421
    %v1469 = vmul.f32 %v1422, %v1422
    %v1470 = vmul.f32 %v1411, %v1458
    %v1471 = vmul.f32 %v1412, %v1459
    %v1472 = vmul.f32 %v1413, %v1460
    %v1473 = vmul.f32 %v1414, %v1461
    %v1474 = vmul.f32 %v1415, %v1462
    %v1475 = vmul.f32 %v1416, %v1463
    %v1476 = vmul.f32 %v1417, %v1464
    %v1477 = vmul.f32 %v1418, %v1465
    %v1478 = vmul.f32 %v1419, %v1466
    %v1479 = vmul.f32 %v1420, %v1467
    %v1480 = vmul.f32 %v1421, %v1468
    %v1481 = vmul.f32 %v1422, %v1469
    %v1482 = vmul.f32 %v1470, 0.044715
    %v1483 = vmul.f32 %v1471, 0.044715
    %v1484 = vmul.f32 %v1472, 0.044715
    %v1485 = vmul.f32 %v1473, 0.044715
    %v1486 = vmul.f32 %v1474, 0.044715
    %v1487 = vmul.f32 %v1475, 0.044715
    %v1488 = vmul.f32 %v1476, 0.044715
    %v1489 = vmul.f32 %v1477, 0.044715
    %v1490 = vmul.f32 %v1478, 0.044715
    %v1491 = vmul.f32 %v1479, 0.044715
    %v1492 = vmul.f32 %v1480, 0.044715
    %v1493 = vmul.f32 %v1481, 0.044715
    %v1494 = vadd.f32 %v1411, %v1482
    %v1495 = vadd.f32 %v1412, %v1483
    %v1496 = vadd.f32 %v1413, %v1484
    %v1497 = vadd.f32 %v1414, %v1485
    %v1498 = vadd.f32 %v1415, %v1486
    %v1499 = vadd.f32 %v1416, %v1487
    %v1500 = vadd.f32 %v1417, %v1488
    %v1501 = vadd.f32 %v1418, %v1489
    %v1502 = vadd.f32 %v1419, %v1490
    %v1503 = vadd.f32 %v1420, %v1491
    %v1504 = vadd.f32 %v1421, %v1492
    %v1505 = vadd.f32 %v1422, %v1493
    %v1506 = vmul.f32 %v1494, 0.7978846
    %v1507 = vmul.f32 %v1495, 0.7978846
    %v1508 = vmul.f32 %v1496, 0.7978846
    %v1509 = vmul.f32 %v1497, 0.7978846
    %v1510 = vmul.f32 %v1498, 0.7978846
    %v1511 = vmul.f32 %v1499, 0.7978846
    %v1512 = vmul.f32 %v1500, 0.7978846
    %v1513 = vmul.f32 %v1501, 0.7978846
    %v1514 = vmul.f32 %v1502, 0.7978846
    %v1515 = vmul.f32 %v1503, 0.7978846
    %v1516 = vmul.f32 %v1504, 0.7978846
    %v1517 = vmul.f32 %v1505, 0.7978846
    %v1518 = vtanh.pop %v1506
    %v1519 = vtanh.pop %v1507
    %v1520 = vtanh.pop %v1508
    %v1521 = vtanh.pop %v1509
    %v1522 = vtanh.pop %v1510
    %v1523 = vtanh.pop %v1511
    %v1524 = vtanh.pop %v1512
    %v1525 = vtanh.pop %v1513
    %v1526 = vtanh.pop %v1514
    %v1527 = vtanh.pop %v1515
    %v1528 = vtanh.pop %v1516
    %v1529 = vtanh.pop %v1517
    %v1530 = vadd.f32 %v1518, 1.0
    %v1531 = vadd.f32 %v1519, 1.0
    %v1532 = vadd.f32 %v1520, 1.0
    %v1533 = vadd.f32 %v1521, 1.0
    %v1534 = vadd.f32 %v1522, 1.0
    %v1535 = vadd.f32 %v1523, 1.0
    %v1536 = vadd.f32 %v1524, 1.0
    %v1537 = vadd.f32 %v1525, 1.0
    %v1538 = vadd.f32 %v1526, 1.0
    %v1539 = vadd.f32 %v1527, 1.0
    %v1540 = vadd.f32 %v1528, 1.0
    %v1541 = vadd.f32 %v1529, 1.0
    %v1542 = vmul.f32 %v1530, 0.5
    %v1543 = vmul.f32 %v1531, 0.5
    %v1544 = vmul.f32 %v1532, 0.5
    %v1545 = vmul.f32 %v1533, 0.5
    %v1546 = vmul.f32 %v1534, 0.5
    %v1547 = vmul.f32 %v1535, 0.5
    %v1548 = vmul.f32 %v1536, 0.5
    %v1549 = vmul.f32 %v1537, 0.5
    %v1550 = vmul.f32 %v1538, 0.5
    %v1551 = vmul.f32 %v1539, 0.5
    %v1552 = vmul.f32 %v1540, 0.5
    %v1553 = vmul.f32 %v1541, 0.5
    %v1554 = vmul.f32 %v1411, %v1542
    %v1555 = vmul.f32 %v1412, %v1543
    %v1556 = vmul.f32 %v1413, %v1544
    %v1557 = vmul.f32 %v1414, %v1545
    %v1558 = vmul.f32 %v1415, %v1546
    %v1559 = vmul.f32 %v1416, %v1547
    %v1560 = vmul.f32 %v1417, %v1548
    %v1561 = vmul.f32 %v1418, %v1549
    %v1562 = vmul.f32 %v1419, %v1550
    %v1563 = vmul.f32 %v1420, %v1551
    %v1564 = vmul.f32 %v1421, %v1552
    %v1565 = vmul.f32 %v1422, %v1553
    %v1566 = vpack.c.bf16 %v1555, %v1554
    %v1567 = vpack.c.bf16 %v1557, %v1556
    %v1568 = vpack.c.bf16 %v1559, %v1558
    %v1569 = vpack.c.bf16 %v1561, %v1560
    %v1570 = vpack.c.bf16 %v1563, %v1562
    %v1571 = vpack.c.bf16 %v1565, %v1564
    %v1604 = vunpack.c.l.b16 %v1424
    %v1605 = vunpack.c.h.b16 %v1424
    %v1606 = vunpack.c.l.b16 %v1425
    %v1607 = vunpack.c.l.b16 %v1426
    %v1608 = vunpack.c.h.b16 %v1426
    %v1609 = vunpack.c.l.b16 %v1427
    %v1610 = vunpack.c.l.b16 %v1428
    %v1611 = vunpack.c.h.b16 %v1428
    %v1612 = vunpack.c.l.b16 %v1429
    %v1613 = vunpack.c.l.b16 %v1430
    %v1614 = vunpack.c.h.b16 %v1430
    %v1615 = vunpack.c.l.b16 %v1431
    %v1616 = vunpack.c.l.b16 %v1432
    %v1617 = vunpack.c.h.b16 %v1432
    %v1618 = vunpack.c.l.b16 %v1433
    %v1619 = vunpack.c.l.b16 %v1434
    %v1620 = vunpack.c.h.b16 %v1434
    %v1621 = vunpack.c.l.b16 %v1435
    %v1622 = vunpack.c.l.b16 %v1436
    %v1623 = vunpack.c.h.b16 %v1436
    %v1624 = vunpack.c.l.b16 %v1437
    %v1625 = vunpack.c.l.b16 %v1438
    %v1626 = vunpack.c.h.b16 %v1438
    %v1627 = vunpack.c.l.b16 %v1439
    %v1628 = vunpack.c.l.b16 %v1440
    %v1629 = vunpack.c.h.b16 %v1440
    %v1630 = vunpack.c.l.b16 %v1441
    %v1631 = vunpack.c.l.b16 %v1442
    %v1632 = vunpack.c.h.b16 %v1442
    %v1633 = vunpack.c.l.b16 %v1443
    %v1634 = vunpack.c.l.b16 %v1444
    %v1635 = vunpack.c.h.b16 %v1444
    %v1636 = vunpack.c.l.b16 %v1445
    %v1637 = vunpack.c.l.b16 %v1446
    %v1638 = vunpack.c.h.b16 %v1446
    %v1639 = vunpack.c.l.b16 %v1447
    %v1640 = vunpack.c.l.b16 %v1448
    %v1641 = vunpack.c.h.b16 %v1448
    %v1642 = vunpack.c.l.b16 %v1449
    %v1643 = vunpack.c.l.b16 %v1450
    %v1644 = vunpack.c.h.b16 %v1450
    %v1645 = vunpack.c.l.b16 %v1451
    %v1646 = vunpack.c.l.b16 %v1452
    %v1647 = vunpack.c.h.b16 %v1452
    %v1648 = vunpack.c.l.b16 %v1453
    %v1649 = vunpack.c.l.b16 %v1454
    %v1650 = vunpack.c.h.b16 %v1454
    %v1651 = vunpack.c.l.b16 %v1455
    %v1652 = vpack.c.b16 %v1607, %v1604
    %v1653 = vpack.c.b16 %v1608, %v1605
    %v1654 = vpack.c.b16 %v1609, %v1606
    %v1655 = vpack.c.b16 %v1613, %v1610
    %v1656 = vpack.c.b16 %v1614, %v1611
    %v1657 = vpack.c.b16 %v1615, %v1612
    %v1658 = vpack.c.b16 %v1619, %v1616
    %v1659 = vpack.c.b16 %v1620, %v1617
    %v1660 = vpack.c.b16 %v1621, %v1618
    %v1661 = vpack.c.b16 %v1625, %v1622
    %v1662 = vpack.c.b16 %v1626, %v1623
    %v1663 = vpack.c.b16 %v1627, %v1624
    %v1664 = vpack.c.b16 %v1631, %v1628
    %v1665 = vpack.c.b16 %v1632, %v1629
    %v1666 = vpack.c.b16 %v1633, %v1630
    %v1667 = vpack.c.b16 %v1637, %v1634
    %v1668 = vpack.c.b16 %v1638, %v1635
    %v1669 = vpack.c.b16 %v1639, %v1636
    %v1670 = vpack.c.b16 %v1643, %v1640
    %v1671 = vpack.c.b16 %v1644, %v1641
    %v1672 = vpack.c.b16 %v1645, %v1642
    %v1673 = vpack.c.b16 %v1649, %v1646
    %v1674 = vpack.c.b16 %v1650, %v1647
    %v1675 = vpack.c.b16 %v1651, %v1648
    %1700 = vmatprep.subr.bf16.mxu0 %v1653
    %1701 = vmatpush1.bf16.msra.mxu0 %v1652
    %1702 = vmatprep.subr.bf16.mxu0 %v1656
    %1703 = vmatpush1.bf16.msra.mxu0 %v1655
    %1704 = vmatprep.subr.bf16.mxu0 %v1659
    %1705 = vmatpush1.bf16.msra.mxu0 %v1658
    %1706 = vmatprep.subr.bf16.mxu0 %v1662
    %1707 = vmatpush1.bf16.msra.mxu0 %v1661
    %1708 = vmatprep.subr.bf16.mxu0 %v1665
    %1709 = vmatpush1.bf16.msra.mxu0 %v1664
    %1710 = vmatprep.subr.bf16.mxu0 %v1668
    %1711 = vmatpush1.bf16.msra.mxu0 %v1667
    %1712 = vmatprep.subr.bf16.mxu0 %v1671
    %1713 = vmatpush1.bf16.msra.mxu0 %v1670
    %1714 = vmatprep.subr.bf16.mxu0 %v1674
    %1715 = vmatpush1.bf16.msra.mxu0 %v1673
    %1716 = vmatprep.subr.bf16.mxu0 0
    %1717 = vmatpush1.bf16.msra.mxu0 0
    %1718 = vmatprep.subr.bf16.mxu0 0
    %1719 = vmatpush1.bf16.msra.mxu0 0
    %1720 = vmatprep.subr.bf16.mxu0 0
    %1721 = vmatpush1.bf16.msra.mxu0 0
    %1722 = vmatprep.subr.bf16.mxu0 0
    %1723 = vmatpush1.bf16.msra.mxu0 0
    %1724 = vmatprep.subr.bf16.mxu0 0
    %1725 = vmatpush1.bf16.msra.mxu0 0
    %1726 = vmatprep.subr.bf16.mxu0 0
    %1727 = vmatpush1.bf16.msra.mxu0 0
    %1728 = vmatprep.subr.bf16.mxu0 0
    %1729 = vmatpush1.bf16.msra.mxu0 0
    %1730 = vmatprep.subr.bf16.mxu0 0
    %1731 = vmatpush1.bf16.msra.mxu0 0
    %1732 = vmatprep.mubr.bf16.mxu0 0
    %1733 = vmatmul.mubr.bf16.gmra.mrb[0].mxu0 %v1566
    %v1734 = vpop.f32.mrb[0].mxu0
    %v1735 = vadd.f32 0.0, %v1734
    %v1736 = vpop.f32.mrb[0].mxu0
    %v1737 = vadd.f32 0.0, %v1736
    %v1738 = vpop.f32.mrb[0].mxu0
    %v1739 = vadd.f32 0.0, %v1738
    %v1740 = vpop.f32.mrb[0].mxu0
    %v1741 = vadd.f32 0.0, %v1740
    %1742 = vmatprep.mubr.bf16.mxu0 0
    %1743 = vmatmul.mubr.bf16.gmra.mrb[0].mxu0 %v1567
    %v1744 = vpop.f32.mrb[0].mxu0
    %v1745 = vadd.f32 0.0, %v1744
    %v1746 = vpop.f32.mrb[0].mxu0
    %v1747 = vadd.f32 0.0, %v1746
    %v1748 = vpop.f32.mrb[0].mxu0
    %v1749 = vadd.f32 0.0, %v1748
    %v1750 = vpop.f32.mrb[0].mxu0
    %v1751 = vadd.f32 0.0, %v1750
    %1752 = vmatprep.mubr.bf16.mxu0 0
    %1753 = vmatmul.mubr.bf16.gmra.mrb[0].mxu0 %v1568
    %v1754 = vpop.f32.mrb[0].mxu0
    %v1755 = vadd.f32 0.0, %v1754
    %v1756 = vpop.f32.mrb[0].mxu0
    %v1757 = vadd.f32 0.0, %v1756
    %v1758 = vpop.f32.mrb[0].mxu0
    %v1759 = vadd.f32 0.0, %v1758
    %v1760 = vpop.f32.mrb[0].mxu0
    %v1761 = vadd.f32 0.0, %v1760
    %1762 = vmatprep.mubr.bf16.mxu0 0
    %1763 = vmatmul.mubr.bf16.gmra.mrb[0].mxu0 %v1569
    %v1764 = vpop.f32.mrb[0].mxu0
    %v1765 = vadd.f32 0.0, %v1764
    %v1766 = vpop.f32.mrb[0].mxu0
    %v1767 = vadd.f32 0.0, %v1766
    %v1768 = vpop.f32.mrb[0].mxu0
    %v1769 = vadd.f32 0.0, %v1768
    %v1770 = vpop.f32.mrb[0].mxu0
    %v1771 = vadd.f32 0.0, %v1770
    %1772 = vmatprep.mubr.bf16.mxu0 0
    %1773 = vmatmul.mubr.bf16.gmra.mrb[0].mxu0 %v1570
    %v1774 = vpop.f32.mrb[0].mxu0
    %v1775 = vadd.f32 0.0, %v1774
    %v1776 = vpop.f32.mrb[0].mxu0
    %v1777 = vadd.f32 0.0, %v1776
    %v1778 = vpop.f32.mrb[0].mxu0
    %v1779 = vadd.f32 0.0, %v1778
    %v1780 = vpop.f32.mrb[0].mxu0
    %v1781 = vadd.f32 0.0, %v1780
    %1782 = vmatprep.mubr.bf16.mxu0 0
    %1783 = vmatmul.mubr.bf16.gmra.mrb[0].mxu0 %v1571
    %v1784 = vpop.f32.mrb[0].mxu0
    %v1785 = vadd.f32 0.0, %v1784
    %v1786 = vpop.f32.mrb[0].mxu0
    %v1787 = vadd.f32 0.0, %v1786
    %v1788 = vpop.f32.mrb[0].mxu0
    %v1789 = vadd.f32 0.0, %v1788
    %v1790 = vpop.f32.mrb[0].mxu0
    %v1791 = vadd.f32 0.0, %v1790
    %1792 = vdwg.mxu0
    %1793 = vmatprep.subr.bf16.mxu0 0
    %1794 = vmatpush1.bf16.msra.mxu0 %v1654
    %1795 = vmatprep.subr.bf16.mxu0 0
    %1796 = vmatpush1.bf16.msra.mxu0 %v1657
    %1797 = vmatprep.subr.bf16.mxu0 0
    %1798 = vmatpush1.bf16.msra.mxu0 %v1660
    %1799 = vmatprep.subr.bf16.mxu0 0
    %1800 = vmatpush1.bf16.msra.mxu0 %v1663
    %1801 = vmatprep.subr.bf16.mxu0 0
    %1802 = vmatpush1.bf16.msra.mxu0 %v1666
    %1803 = vmatprep.subr.bf16.mxu0 0
    %1804 = vmatpush1.bf16.msra.mxu0 %v1669
    %1805 = vmatprep.subr.bf16.mxu0 0
    %1806 = vmatpush1.bf16.msra.mxu0 %v1672
    %1807 = vmatprep.subr.bf16.mxu0 0
    %1808 = vmatpush1.bf16.msra.mxu0 %v1675
    %1809 = vmatprep.subr.bf16.mxu0 0
    %1810 = vmatpush1.bf16.msra.mxu0 0
    %1811 = vmatprep.subr.bf16.mxu0 0
    %1812 = vmatpush1.bf16.msra.mxu0 0
    %1813 = vmatprep.subr.bf16.mxu0 0
    %1814 = vmatpush1.bf16.msra.mxu0 0
    %1815 = vmatprep.subr.bf16.mxu0 0
    %1816 = vmatpush1.bf16.msra.mxu0 0
    %1817 = vmatprep.subr.bf16.mxu0 0
    %1818 = vmatpush1.bf16.msra.mxu0 0
    %1819 = vmatprep.subr.bf16.mxu0 0
    %1820 = vmatpush1.bf16.msra.mxu0 0
    %1821 = vmatprep.subr.bf16.mxu0 0
    %1822 = vmatpush1.bf16.msra.mxu0 0
    %1823 = vmatprep.subr.bf16.mxu0 0
    %1824 = vmatpush1.bf16.msra.mxu0 0
    %1825 = vmatprep.mubr.bf16.mxu0 0
    %1826 = vmatmul.mubr.bf16.gmra.mrb[0].mxu0 %v1566
    %v1827 = vpop.f32.mrb[0].mxu0
    %v1828 = vadd.f32 0.0, %v1827
    %v1829 = vpop.f32.mrb[0].mxu0
    %v1830 = vpop.f32.mrb[0].mxu0
    %v1831 = vadd.f32 0.0, %v1830
    %v1832 = vpop.f32.mrb[0].mxu0
    %1833 = vmatprep.mubr.bf16.mxu0 0
    %1834 = vmatmul.mubr.bf16.gmra.mrb[0].mxu0 %v1567
    %v1835 = vpop.f32.mrb[0].mxu0
    %v1836 = vadd.f32 0.0, %v1835
    %v1837 = vpop.f32.mrb[0].mxu0
    %v1838 = vpop.f32.mrb[0].mxu0
    %v1839 = vadd.f32 0.0, %v1838
    %v1840 = vpop.f32.mrb[0].mxu0
    %1841 = vmatprep.mubr.bf16.mxu0 0
    %1842 = vmatmul.mubr.bf16.gmra.mrb[0].mxu0 %v1568
    %v1843 = vpop.f32.mrb[0].mxu0
    %v1844 = vadd.f32 0.0, %v1843
    %v1845 = vpop.f32.mrb[0].mxu0
    %v1846 = vpop.f32.mrb[0].mxu0
    %v1847 = vadd.f32 0.0, %v1846
    %v1848 = vpop.f32.mrb[0].mxu0
    %1849 = vmatprep.mubr.bf16.mxu0 0
    %1850 = vmatmul.mubr.bf16.gmra.mrb[0].mxu0 %v1569
    %v1851 = vpop.f32.mrb[0].mxu0
    %v1852 = vadd.f32 0.0, %v1851
    %v1853 = vpop.f32.mrb[0].mxu0
    %v1854 = vpop.f32.mrb[0].mxu0
    %v1855 = vadd.f32 0.0, %v1854
    %v1856 = vpop.f32.mrb[0].mxu0
    %1857 = vmatprep.mubr.bf16.mxu0 0
    %1858 = vmatmul.mubr.bf16.gmra.mrb[0].mxu0 %v1570
    %v1859 = vpop.f32.mrb[0].mxu0
    %v1860 = vadd.f32 0.0, %v1859
    %v1861 = vpop.f32.mrb[0].mxu0
    %v1862 = vpop.f32.mrb[0].mxu0
    %v1863 = vadd.f32 0.0, %v1862
    %v1864 = vpop.f32.mrb[0].mxu0
    %1865 = vmatprep.mubr.bf16.mxu0 0
    %1866 = vmatmul.mubr.bf16.gmra.mrb[0].mxu0 %v1571
    %v1867 = vpop.f32.mrb[0].mxu0
    %v1868 = vadd.f32 0.0, %v1867
    %v1869 = vpop.f32.mrb[0].mxu0
    %v1870 = vpop.f32.mrb[0].mxu0
    %v1871 = vadd.f32 0.0, %v1870
    %v1872 = vpop.f32.mrb[0].mxu0
    %1873 = vdwg.mxu0
    %v1875 = vlaneseq
    %v1876 = vshrl.u32 %v1875, 7
    %v1877 = vsub.s32 0, %v1876
    %v1878 = vrot.slane %v1457, %v1877
    %v1880 = vadd.f32 %v1737, %v1878
    %v1881 = vadd.f32 %v1741, %v1878
    %v1882 = vadd.f32 %v1747, %v1878
    %v1883 = vadd.f32 %v1751, %v1878
    %v1884 = vadd.f32 %v1757, %v1878
    %v1885 = vadd.f32 %v1761, %v1878
    %v1886 = vadd.f32 %v1767, %v1878
    %v1887 = vadd.f32 %v1771, %v1878
    %v1888 = vadd.f32 %v1777, %v1878
    %v1889 = vadd.f32 %v1781, %v1878
    %v1890 = vadd.f32 %v1787, %v1878
    %v1891 = vadd.f32 %v1791, %v1878
    %vm1904 = vcmask 1041408
    %v1905 = vrot.slane %v1735, 6
    %v1906 = vrot.slane %v1739, 6
    %v1907 = vsel %vm1904, %v1905, %v1906
    %v1908 = vrot.slane %v1745, 6
    %v1909 = vrot.slane %v1749, 6
    %v1910 = vsel %vm1904, %v1908, %v1909
    %v1911 = vrot.slane %v1755, 6
    %v1912 = vrot.slane %v1759, 6
    %v1913 = vsel %vm1904, %v1911, %v1912
    %v1914 = vrot.slane %v1765, 6
    %v1915 = vrot.slane %v1769, 6
    %v1916 = vsel %vm1904, %v1914, %v1915
    %v1917 = vrot.slane %v1775, 6
    %v1918 = vrot.slane %v1779, 6
    %v1919 = vsel %vm1904, %v1917, %v1918
    %v1920 = vrot.slane %v1785, 6
    %v1921 = vrot.slane %v1789, 6
    %v1922 = vsel %vm1904, %v1920, %v1921
    %v1935 = vsel %vm1904, 0.0, %v1905
    %v1936 = vsel %vm1904, 0.0, %v1908
    %v1937 = vsel %vm1904, 0.0, %v1911
    %v1938 = vsel %vm1904, 0.0, %v1914
    %v1939 = vsel %vm1904, 0.0, %v1917
    %v1940 = vsel %vm1904, 0.0, %v1920
    %v1941 = vadd.f32 %v1880, %v1935
    %v1942 = vadd.f32 %v1881, %v1907
    %v1943 = vadd.f32 %v1882, %v1936
    %v1944 = vadd.f32 %v1883, %v1910
    %v1945 = vadd.f32 %v1884, %v1937
    %v1946 = vadd.f32 %v1885, %v1913
    %v1947 = vadd.f32 %v1886, %v1938
    %v1948 = vadd.f32 %v1887, %v1916
    %v1949 = vadd.f32 %v1888, %v1939
    %v1950 = vadd.f32 %v1889, %v1919
    %v1951 = vadd.f32 %v1890, %v1940
    %v1952 = vadd.f32 %v1891, %v1922
    %vm1965 = vcmask 1045504
    %v1966 = vrot.slane %v1828, 2
    %v1967 = vrot.slane %v1831, 2
    %v1968 = vsel %vm1965, %v1966, %v1967
    %v1969 = vrot.slane %v1836, 2
    %v1970 = vrot.slane %v1839, 2
    %v1971 = vsel %vm1965, %v1969, %v1970
    %v1972 = vrot.slane %v1844, 2
    %v1973 = vrot.slane %v1847, 2
    %v1974 = vsel %vm1965, %v1972, %v1973
    %v1975 = vrot.slane %v1852, 2
    %v1976 = vrot.slane %v1855, 2
    %v1977 = vsel %vm1965, %v1975, %v1976
    %v1978 = vrot.slane %v1860, 2
    %v1979 = vrot.slane %v1863, 2
    %v1980 = vsel %vm1965, %v1978, %v1979
    %v1981 = vrot.slane %v1868, 2
    %v1982 = vrot.slane %v1871, 2
    %v1983 = vsel %vm1965, %v1981, %v1982
    %v1996 = vsel %vm1965, %v1967, 0.0
    %v1997 = vsel %vm1965, %v1970, 0.0
    %v1998 = vsel %vm1965, %v1973, 0.0
    %v1999 = vsel %vm1965, %v1976, 0.0
    %v2000 = vsel %vm1965, %v1979, 0.0
    %v2001 = vsel %vm1965, %v1982, 0.0
    %v2002 = vadd.f32 %v1941, %v1968
    %v2003 = vadd.f32 %v1942, %v1996
    %v2004 = vadd.f32 %v1943, %v1971
    %v2005 = vadd.f32 %v1944, %v1997
    %v2006 = vadd.f32 %v1945, %v1974
    %v2007 = vadd.f32 %v1946, %v1998
    %v2008 = vadd.f32 %v1947, %v1977
    %v2009 = vadd.f32 %v1948, %v1999
    %v2010 = vadd.f32 %v1949, %v1980
    %v2011 = vadd.f32 %v1950, %v2000
    %v2012 = vadd.f32 %v1951, %v1983
    %v2013 = vadd.f32 %v1952, %v2001
    %s2014 = scalar_lea.vmem [#allocation5], 192
    %v2015 = vld [vmem:[%s2014] sm:$0xff]
    %v2016 = vld [vmem:[%s2014 + $0x8] sm:$0xf]
    %v2017 = vld [vmem:[%s2014 + $0xc] sm:$0xff]
    %v2018 = vld [vmem:[%s2014 + $0x14] sm:$0xf]
    %v2019 = vld [vmem:[%s2014 + $0x18] sm:$0xff]
    %v2020 = vld [vmem:[%s2014 + $0x20] sm:$0xf]
    %v2021 = vld [vmem:[%s2014 + $0x24] sm:$0xff]
    %v2022 = vld [vmem:[%s2014 + $0x2c] sm:$0xf]
    %v2023 = vld [vmem:[%s2014 + $0x30] sm:$0xff]
    %v2024 = vld [vmem:[%s2014 + $0x38] sm:$0xf]
    %v2025 = vld [vmem:[%s2014 + $0x3c] sm:$0xff]
    %v2026 = vld [vmem:[%s2014 + $0x44] sm:$0xf]
    %v2027 = vld [vmem:[%s2014 + $0x48] sm:$0xff]
    %v2028 = vld [vmem:[%s2014 + $0x50] sm:$0xf]
    %v2029 = vld [vmem:[%s2014 + $0x54] sm:$0xff]
    %v2030 = vld [vmem:[%s2014 + $0x5c] sm:$0xf]
    %v2031 = vld [vmem:[%s2014 + $0x60] sm:$0xff]
    %v2032 = vld [vmem:[%s2014 + $0x68] sm:$0xf]
    %v2033 = vld [vmem:[%s2014 + $0x6c] sm:$0xff]
    %v2034 = vld [vmem:[%s2014 + $0x74] sm:$0xf]
    %v2035 = vld [vmem:[%s2014 + $0x78] sm:$0xff]
    %v2036 = vld [vmem:[%s2014 + $0x80] sm:$0xf]
    %v2037 = vld [vmem:[%s2014 + $0x84] sm:$0xff]
    %v2038 = vld [vmem:[%s2014 + $0x8c] sm:$0xf]
    %v2039 = vld [vmem:[%s2014 + $0x90] sm:$0xff]
    %v2040 = vld [vmem:[%s2014 + $0x98] sm:$0xf]
    %v2041 = vld [vmem:[%s2014 + $0x9c] sm:$0xff]
    %v2042 = vld [vmem:[%s2014 + $0xa4] sm:$0xf]
    %v2043 = vld [vmem:[%s2014 + $0xa8] sm:$0xff]
    %v2044 = vld [vmem:[%s2014 + $0xb0] sm:$0xf]
    %v2045 = vld [vmem:[%s2014 + $0xb4] sm:$0xff]
    %v2046 = vld [vmem:[%s2014 + $0xbc] sm:$0xf]
    %s2047 = scalar_lea.vmem %s6, 1
    %v2048 = vld [vmem:[%s2047] sm:$0x1]
    %v2049 = vmul.f32 %v2002, %v2002
    %v2050 = vmul.f32 %v2003, %v2003
    %v2051 = vmul.f32 %v2004, %v2004
    %v2052 = vmul.f32 %v2005, %v2005
    %v2053 = vmul.f32 %v2006, %v2006
    %v2054 = vmul.f32 %v2007, %v2007
    %v2055 = vmul.f32 %v2008, %v2008
    %v2056 = vmul.f32 %v2009, %v2009
    %v2057 = vmul.f32 %v2010, %v2010
    %v2058 = vmul.f32 %v2011, %v2011
    %v2059 = vmul.f32 %v2012, %v2012
    %v2060 = vmul.f32 %v2013, %v2013
    %v2061 = vmul.f32 %v2002, %v2049
    %v2062 = vmul.f32 %v2003, %v2050
    %v2063 = vmul.f32 %v2004, %v2051
    %v2064 = vmul.f32 %v2005, %v2052
    %v2065 = vmul.f32 %v2006, %v2053
    %v2066 = vmul.f32 %v2007, %v2054
    %v2067 = vmul.f32 %v2008, %v2055
    %v2068 = vmul.f32 %v2009, %v2056
    %v2069 = vmul.f32 %v2010, %v2057
    %v2070 = vmul.f32 %v2011, %v2058
    %v2071 = vmul.f32 %v2012, %v2059
    %v2072 = vmul.f32 %v2013, %v2060
    %v2073 = vmul.f32 %v2061, 0.044715
    %v2074 = vmul.f32 %v2062, 0.044715
    %v2075 = vmul.f32 %v2063, 0.044715
    %v2076 = vmul.f32 %v2064, 0.044715
    %v2077 = vmul.f32 %v2065, 0.044715
    %v2078 = vmul.f32 %v2066, 0.044715
    %v2079 = vmul.f32 %v2067, 0.044715
    %v2080 = vmul.f32 %v2068, 0.044715
    %v2081 = vmul.f32 %v2069, 0.044715
    %v2082 = vmul.f32 %v2070, 0.044715
    %v2083 = vmul.f32 %v2071, 0.044715
    %v2084 = vmul.f32 %v2072, 0.044715
    %v2085 = vadd.f32 %v2002, %v2073
    %v2086 = vadd.f32 %v2003, %v2074
    %v2087 = vadd.f32 %v2004, %v2075
    %v2088 = vadd.f32 %v2005, %v2076
    %v2089 = vadd.f32 %v2006, %v2077
    %v2090 = vadd.f32 %v2007, %v2078
    %v2091 = vadd.f32 %v2008, %v2079
    %v2092 = vadd.f32 %v2009, %v2080
    %v2093 = vadd.f32 %v2010, %v2081
    %v2094 = vadd.f32 %v2011, %v2082
    %v2095 = vadd.f32 %v2012, %v2083
    %v2096 = vadd.f32 %v2013, %v2084
    %v2097 = vmul.f32 %v2085, 0.7978846
    %v2098 = vmul.f32 %v2086, 0.7978846
    %v2099 = vmul.f32 %v2087, 0.7978846
    %v2100 = vmul.f32 %v2088, 0.7978846
    %v2101 = vmul.f32 %v2089, 0.7978846
    %v2102 = vmul.f32 %v2090, 0.7978846
    %v2103 = vmul.f32 %v2091, 0.7978846
    %v2104 = vmul.f32 %v2092, 0.7978846
    %v2105 = vmul.f32 %v2093, 0.7978846
    %v2106 = vmul.f32 %v2094, 0.7978846
    %v2107 = vmul.f32 %v2095, 0.7978846
    %v2108 = vmul.f32 %v2096, 0.7978846
    %v2109 = vtanh.pop %v2097
    %v2110 = vtanh.pop %v2098
    %v2111 = vtanh.pop %v2099
    %v2112 = vtanh.pop %v2100
    %v2113 = vtanh.pop %v2101
    %v2114 = vtanh.pop %v2102
    %v2115 = vtanh.pop %v2103
    %v2116 = vtanh.pop %v2104
    %v2117 = vtanh.pop %v2105
    %v2118 = vtanh.pop %v2106
    %v2119 = vtanh.pop %v2107
    %v2120 = vtanh.pop %v2108
    %v2121 = vadd.f32 %v2109, 1.0
    %v2122 = vadd.f32 %v2110, 1.0
    %v2123 = vadd.f32 %v2111, 1.0
    %v2124 = vadd.f32 %v2112, 1.0
    %v2125 = vadd.f32 %v2113, 1.0
    %v2126 = vadd.f32 %v2114, 1.0
    %v2127 = vadd.f32 %v2115, 1.0
    %v2128 = vadd.f32 %v2116, 1.0
    %v2129 = vadd.f32 %v2117, 1.0
    %v2130 = vadd.f32 %v2118, 1.0
    %v2131 = vadd.f32 %v2119, 1.0
    %v2132 = vadd.f32 %v2120, 1.0
    %v2133 = vmul.f32 %v2121, 0.5
    %v2134 = vmul.f32 %v2122, 0.5
    %v2135 = vmul.f32 %v2123, 0.5
    %v2136 = vmul.f32 %v2124, 0.5
    %v2137 = vmul.f32 %v2125, 0.5
    %v2138 = vmul.f32 %v2126, 0.5
    %v2139 = vmul.f32 %v2127, 0.5
    %v2140 = vmul.f32 %v2128, 0.5
    %v2141 = vmul.f32 %v2129, 0.5
    %v2142 = vmul.f32 %v2130, 0.5
    %v2143 = vmul.f32 %v2131, 0.5
    %v2144 = vmul.f32 %v2132, 0.5
    %v2145 = vmul.f32 %v2002, %v2133
    %v2146 = vmul.f32 %v2003, %v2134
    %v2147 = vmul.f32 %v2004, %v2135
    %v2148 = vmul.f32 %v2005, %v2136
    %v2149 = vmul.f32 %v2006, %v2137
    %v2150 = vmul.f32 %v2007, %v2138
    %v2151 = vmul.f32 %v2008, %v2139
    %v2152 = vmul.f32 %v2009, %v2140
    %v2153 = vmul.f32 %v2010, %v2141
    %v2154 = vmul.f32 %v2011, %v2142
    %v2155 = vmul.f32 %v2012, %v2143
    %v2156 = vmul.f32 %v2013, %v2144
    %v2157 = vpack.c.bf16 %v2146, %v2145
    %v2158 = vpack.c.bf16 %v2148, %v2147
    %v2159 = vpack.c.bf16 %v2150, %v2149
    %v2160 = vpack.c.bf16 %v2152, %v2151
    %v2161 = vpack.c.bf16 %v2154, %v2153
    %v2162 = vpack.c.bf16 %v2156, %v2155
    %v2195 = vunpack.c.l.b16 %v2015
    %v2196 = vunpack.c.h.b16 %v2015
    %v2197 = vunpack.c.l.b16 %v2016
    %v2198 = vunpack.c.l.b16 %v2017
    %v2199 = vunpack.c.h.b16 %v2017
    %v2200 = vunpack.c.l.b16 %v2018
    %v2201 = vunpack.c.l.b16 %v2019
    %v2202 = vunpack.c.h.b16 %v2019
    %v2203 = vunpack.c.l.b16 %v2020
    %v2204 = vunpack.c.l.b16 %v2021
    %v2205 = vunpack.c.h.b16 %v2021
    %v2206 = vunpack.c.l.b16 %v2022
    %v2207 = vunpack.c.l.b16 %v2023
    %v2208 = vunpack.c.h.b16 %v2023
    %v2209 = vunpack.c.l.b16 %v2024
    %v2210 = vunpack.c.l.b16 %v2025
    %v2211 = vunpack.c.h.b16 %v2025
    %v2212 = vunpack.c.l.b16 %v2026
    %v2213 = vunpack.c.l.b16 %v2027
    %v2214 = vunpack.c.h.b16 %v2027
    %v2215 = vunpack.c.l.b16 %v2028
    %v2216 = vunpack.c.l.b16 %v2029
    %v2217 = vunpack.c.h.b16 %v2029
    %v2218 = vunpack.c.l.b16 %v2030
    %v2219 = vunpack.c.l.b16 %v2031
    %v2220 = vunpack.c.h.b16 %v2031
    %v2221 = vunpack.c.l.b16 %v2032
    %v2222 = vunpack.c.l.b16 %v2033
    %v2223 = vunpack.c.h.b16 %v2033
    %v2224 = vunpack.c.l.b16 %v2034
    %v2225 = vunpack.c.l.b16 %v2035
    %v2226 = vunpack.c.h.b16 %v2035
    %v2227 = vunpack.c.l.b16 %v2036
    %v2228 = vunpack.c.l.b16 %v2037
    %v2229 = vunpack.c.h.b16 %v2037
    %v2230 = vunpack.c.l.b16 %v2038
    %v2231 = vunpack.c.l.b16 %v2039
    %v2232 = vunpack.c.h.b16 %v2039
    %v2233 = vunpack.c.l.b16 %v2040
    %v2234 = vunpack.c.l.b16 %v2041
    %v2235 = vunpack.c.h.b16 %v2041
    %v2236 = vunpack.c.l.b16 %v2042
    %v2237 = vunpack.c.l.b16 %v2043
    %v2238 = vunpack.c.h.b16 %v2043
    %v2239 = vunpack.c.l.b16 %v2044
    %v2240 = vunpack.c.l.b16 %v2045
    %v2241 = vunpack.c.h.b16 %v2045
    %v2242 = vunpack.c.l.b16 %v2046
    %v2243 = vpack.c.b16 %v2198, %v2195
    %v2244 = vpack.c.b16 %v2199, %v2196
    %v2245 = vpack.c.b16 %v2200, %v2197
    %v2246 = vpack.c.b16 %v2204, %v2201
    %v2247 = vpack.c.b16 %v2205, %v2202
    %v2248 = vpack.c.b16 %v2206, %v2203
    %v2249 = vpack.c.b16 %v2210, %v2207
    %v2250 = vpack.c.b16 %v2211, %v2208
    %v2251 = vpack.c.b16 %v2212, %v2209
    %v2252 = vpack.c.b16 %v2216, %v2213
    %v2253 = vpack.c.b16 %v2217, %v2214
    %v2254 = vpack.c.b16 %v2218, %v2215
    %v2255 = vpack.c.b16 %v2222, %v2219
    %v2256 = vpack.c.b16 %v2223, %v2220
    %v2257 = vpack.c.b16 %v2224, %v2221
    %v2258 = vpack.c.b16 %v2228, %v2225
    %v2259 = vpack.c.b16 %v2229, %v2226
    %v2260 = vpack.c.b16 %v2230, %v2227
    %v2261 = vpack.c.b16 %v2234, %v2231
    %v2262 = vpack.c.b16 %v2235, %v2232
    %v2263 = vpack.c.b16 %v2236, %v2233
    %v2264 = vpack.c.b16 %v2240, %v2237
    %v2265 = vpack.c.b16 %v2241, %v2238
    %v2266 = vpack.c.b16 %v2242, %v2239
    %2291 = vmatprep.subr.bf16.mxu0 %v2244
    %2292 = vmatpush1.bf16.msra.mxu0 %v2243
    %2293 = vmatprep.subr.bf16.mxu0 %v2247
    %2294 = vmatpush1.bf16.msra.mxu0 %v2246
    %2295 = vmatprep.subr.bf16.mxu0 %v2250
    %2296 = vmatpush1.bf16.msra.mxu0 %v2249
    %2297 = vmatprep.subr.bf16.mxu0 %v2253
    %2298 = vmatpush1.bf16.msra.mxu0 %v2252
    %2299 = vmatprep.subr.bf16.mxu0 %v2256
    %2300 = vmatpush1.bf16.msra.mxu0 %v2255
    %2301 = vmatprep.subr.bf16.mxu0 %v2259
    %2302 = vmatpush1.bf16.msra.mxu0 %v2258
    %2303 = vmatprep.subr.bf16.mxu0 %v2262
    %2304 = vmatpush1.bf16.msra.mxu0 %v2261
    %2305 = vmatprep.subr.bf16.mxu0 %v2265
    %2306 = vmatpush1.bf16.msra.mxu0 %v2264
    %2307 = vmatprep.subr.bf16.mxu0 0
    %2308 = vmatpush1.bf16.msra.mxu0 0
    %2309 = vmatprep.subr.bf16.mxu0 0
    %2310 = vmatpush1.bf16.msra.mxu0 0
    %2311 = vmatprep.subr.bf16.mxu0 0
    %2312 = vmatpush1.bf16.msra.mxu0 0
    %2313 = vmatprep.subr.bf16.mxu0 0
    %2314 = vmatpush1.bf16.msra.mxu0 0
    %2315 = vmatprep.subr.bf16.mxu0 0
    %2316 = vmatpush1.bf16.msra.mxu0 0
    %2317 = vmatprep.subr.bf16.mxu0 0
    %2318 = vmatpush1.bf16.msra.mxu0 0
    %2319 = vmatprep.subr.bf16.mxu0 0
    %2320 = vmatpush1.bf16.msra.mxu0 0
    %2321 = vmatprep.subr.bf16.mxu0 0
    %2322 = vmatpush1.bf16.msra.mxu0 0
    %2323 = vmatprep.mubr.bf16.mxu0 0
    %2324 = vmatmul.mubr.bf16.gmra.mrb[0].mxu0 %v2157
    %v2325 = vpop.f32.mrb[0].mxu0
    %v2326 = vadd.f32 0.0, %v2325
    %v2327 = vpop.f32.mrb[0].mxu0
    %v2328 = vadd.f32 0.0, %v2327
    %v2329 = vpop.f32.mrb[0].mxu0
    %v2330 = vadd.f32 0.0, %v2329
    %v2331 = vpop.f32.mrb[0].mxu0
    %v2332 = vadd.f32 0.0, %v2331
    %2333 = vmatprep.mubr.bf16.mxu0 0
    %2334 = vmatmul.mubr.bf16.gmra.mrb[0].mxu0 %v2158
    %v2335 = vpop.f32.mrb[0].mxu0
    %v2336 = vadd.f32 0.0, %v2335
    %v2337 = vpop.f32.mrb[0].mxu0
    %v2338 = vadd.f32 0.0, %v2337
    %v2339 = vpop.f32.mrb[0].mxu0
    %v2340 = vadd.f32 0.0, %v2339
    %v2341 = vpop.f32.mrb[0].mxu0
    %v2342 = vadd.f32 0.0, %v2341
    %2343 = vmatprep.mubr.bf16.mxu0 0
    %2344 = vmatmul.mubr.bf16.gmra.mrb[0].mxu0 %v2159
    %v2345 = vpop.f32.mrb[0].mxu0
    %v2346 = vadd.f32 0.0, %v2345
    %v2347 = vpop.f32.mrb[0].mxu0
    %v2348 = vadd.f32 0.0, %v2347
    %v2349 = vpop.f32.mrb[0].mxu0
    %v2350 = vadd.f32 0.0, %v2349
    %v2351 = vpop.f32.mrb[0].mxu0
    %v2352 = vadd.f32 0.0, %v2351
    %2353 = vmatprep.mubr.bf16.mxu0 0
    %2354 = vmatmul.mubr.bf16.gmra.mrb[0].mxu0 %v2160
    %v2355 = vpop.f32.mrb[0].mxu0
    %v2356 = vadd.f32 0.0, %v2355
    %v2357 = vpop.f32.mrb[0].mxu0
    %v2358 = vadd.f32 0.0, %v2357
    %v2359 = vpop.f32.mrb[0].mxu0
    %v2360 = vadd.f32 0.0, %v2359
    %v2361 = vpop.f32.mrb[0].mxu0
    %v2362 = vadd.f32 0.0, %v2361
    %2363 = vmatprep.mubr.bf16.mxu0 0
    %2364 = vmatmul.mubr.bf16.gmra.mrb[0].mxu0 %v2161
    %v2365 = vpop.f32.mrb[0].mxu0
    %v2366 = vadd.f32 0.0, %v2365
    %v2367 = vpop.f32.mrb[0].mxu0
    %v2368 = vadd.f32 0.0, %v2367
    %v2369 = vpop.f32.mrb[0].mxu0
    %v2370 = vadd.f32 0.0, %v2369
    %v2371 = vpop.f32.mrb[0].mxu0
    %v2372 = vadd.f32 0.0, %v2371
    %2373 = vmatprep.mubr.bf16.mxu0 0
    %2374 = vmatmul.mubr.bf16.gmra.mrb[0].mxu0 %v2162
    %v2375 = vpop.f32.mrb[0].mxu0
    %v2376 = vadd.f32 0.0, %v2375
    %v2377 = vpop.f32.mrb[0].mxu0
    %v2378 = vadd.f32 0.0, %v2377
    %v2379 = vpop.f32.mrb[0].mxu0
    %v2380 = vadd.f32 0.0, %v2379
    %v2381 = vpop.f32.mrb[0].mxu0
    %v2382 = vadd.f32 0.0, %v2381
    %2383 = vdwg.mxu0
    %2384 = vmatprep.subr.bf16.mxu0 0
    %2385 = vmatpush1.bf16.msra.mxu0 %v2245
    %2386 = vmatprep.subr.bf16.mxu0 0
    %2387 = vmatpush1.bf16.msra.mxu0 %v2248
    %2388 = vmatprep.subr.bf16.mxu0 0
    %2389 = vmatpush1.bf16.msra.mxu0 %v2251
    %2390 = vmatprep.subr.bf16.mxu0 0
    %2391 = vmatpush1.bf16.msra.mxu0 %v2254
    %2392 = vmatprep.subr.bf16.mxu0 0
    %2393 = vmatpush1.bf16.msra.mxu0 %v2257
    %2394 = vmatprep.subr.bf16.mxu0 0
    %2395 = vmatpush1.bf16.msra.mxu0 %v2260
    %2396 = vmatprep.subr.bf16.mxu0 0
    %2397 = vmatpush1.bf16.msra.mxu0 %v2263
    %2398 = vmatprep.subr.bf16.mxu0 0
    %2399 = vmatpush1.bf16.msra.mxu0 %v2266
    %2400 = vmatprep.subr.bf16.mxu0 0
    %2401 = vmatpush1.bf16.msra.mxu0 0
    %2402 = vmatprep.subr.bf16.mxu0 0
    %2403 = vmatpush1.bf16.msra.mxu0 0
    %2404 = vmatprep.subr.bf16.mxu0 0
    %2405 = vmatpush1.bf16.msra.mxu0 0
    %2406 = vmatprep.subr.bf16.mxu0 0
    %2407 = vmatpush1.bf16.msra.mxu0 0
    %2408 = vmatprep.subr.bf16.mxu0 0
    %2409 = vmatpush1.bf16.msra.mxu0 0
    %2410 = vmatprep.subr.bf16.mxu0 0
    %2411 = vmatpush1.bf16.msra.mxu0 0
    %2412 = vmatprep.subr.bf16.mxu0 0
    %2413 = vmatpush1.bf16.msra.mxu0 0
    %2414 = vmatprep.subr.bf16.mxu0 0
    %2415 = vmatpush1.bf16.msra.mxu0 0
    %2416 = vmatprep.mubr.bf16.mxu0 0
    %2417 = vmatmul.mubr.bf16.gmra.mrb[0].mxu0 %v2157
    %v2418 = vpop.f32.mrb[0].mxu0
    %v2419 = vadd.f32 0.0, %v2418
    %v2420 = vpop.f32.mrb[0].mxu0
    %v2421 = vpop.f32.mrb[0].mxu0
    %v2422 = vadd.f32 0.0, %v2421
    %v2423 = vpop.f32.mrb[0].mxu0
    %2424 = vmatprep.mubr.bf16.mxu0 0
    %2425 = vmatmul.mubr.bf16.gmra.mrb[0].mxu0 %v2158
    %v2426 = vpop.f32.mrb[0].mxu0
    %v2427 = vadd.f32 0.0, %v2426
    %v2428 = vpop.f32.mrb[0].mxu0
    %v2429 = vpop.f32.mrb[0].mxu0
    %v2430 = vadd.f32 0.0, %v2429
    %v2431 = vpop.f32.mrb[0].mxu0
    %2432 = vmatprep.mubr.bf16.mxu0 0
    %2433 = vmatmul.mubr.bf16.gmra.mrb[0].mxu0 %v2159
    %v2434 = vpop.f32.mrb[0].mxu0
    %v2435 = vadd.f32 0.0, %v2434
    %v2436 = vpop.f32.mrb[0].mxu0
    %v2437 = vpop.f32.mrb[0].mxu0
    %v2438 = vadd.f32 0.0, %v2437
    %v2439 = vpop.f32.mrb[0].mxu0
    %2440 = vmatprep.mubr.bf16.mxu0 0
    %2441 = vmatmul.mubr.bf16.gmra.mrb[0].mxu0 %v2160
    %v2442 = vpop.f32.mrb[0].mxu0
    %v2443 = vadd.f32 0.0, %v2442
    %v2444 = vpop.f32.mrb[0].mxu0
    %v2445 = vpop.f32.mrb[0].mxu0
    %v2446 = vadd.f32 0.0, %v2445
    %v2447 = vpop.f32.mrb[0].mxu0
    %2448 = vmatprep.mubr.bf16.mxu0 0
    %2449 = vmatmul.mubr.bf16.gmra.mrb[0].mxu0 %v2161
    %v2450 = vpop.f32.mrb[0].mxu0
    %v2451 = vadd.f32 0.0, %v2450
    %v2452 = vpop.f32.mrb[0].mxu0
    %v2453 = vpop.f32.mrb[0].mxu0
    %v2454 = vadd.f32 0.0, %v2453
    %v2455 = vpop.f32.mrb[0].mxu0
    %2456 = vmatprep.mubr.bf16.mxu0 0
    %2457 = vmatmul.mubr.bf16.gmra.mrb[0].mxu0 %v2162
    %v2458 = vpop.f32.mrb[0].mxu0
    %v2459 = vadd.f32 0.0, %v2458
    %v2460 = vpop.f32.mrb[0].mxu0
    %v2461 = vpop.f32.mrb[0].mxu0
    %v2462 = vadd.f32 0.0, %v2461
    %v2463 = vpop.f32.mrb[0].mxu0
    %2464 = vdwg.mxu0
    %v2466 = vlaneseq
    %v2467 = vshrl.u32 %v2466, 7
    %v2468 = vsub.s32 0, %v2467
    %v2469 = vrot.slane %v2048, %v2468
    %v2471 = vadd.f32 %v2328, %v2469
    %v2472 = vadd.f32 %v2332, %v2469
    %v2473 = vadd.f32 %v2338, %v2469
    %v2474 = vadd.f32 %v2342, %v2469
    %v2475 = vadd.f32 %v2348, %v2469
    %v2476 = vadd.f32 %v2352, %v2469
    %v2477 = vadd.f32 %v2358, %v2469
    %v2478 = vadd.f32 %v2362, %v2469
    %v2479 = vadd.f32 %v2368, %v2469
    %v2480 = vadd.f32 %v2372, %v2469
    %v2481 = vadd.f32 %v2378, %v2469
    %v2482 = vadd.f32 %v2382, %v2469
    %v2495 = vrot.slane %v2326, 6
    %v2496 = vrot.slane %v2330, 6
    %v2497 = vsel %vm1904, %v2495, %v2496
    %v2498 = vrot.slane %v2336, 6
    %v2499 = vrot.slane %v2340, 6
    %v2500 = vsel %vm1904, %v2498, %v2499
    %v2501 = vrot.slane %v2346, 6
    %v2502 = vrot.slane %v2350, 6
    %v2503 = vsel %vm1904, %v2501, %v2502
    %v2504 = vrot.slane %v2356, 6
    %v2505 = vrot.slane %v2360, 6
    %v2506 = vsel %vm1904, %v2504, %v2505
    %v2507 = vrot.slane %v2366, 6
    %v2508 = vrot.slane %v2370, 6
    %v2509 = vsel %vm1904, %v2507, %v2508
    %v2510 = vrot.slane %v2376, 6
    %v2511 = vrot.slane %v2380, 6
    %v2512 = vsel %vm1904, %v2510, %v2511
    %v2525 = vsel %vm1904, 0.0, %v2495
    %v2526 = vsel %vm1904, 0.0, %v2498
    %v2527 = vsel %vm1904, 0.0, %v2501
    %v2528 = vsel %vm1904, 0.0, %v2504
    %v2529 = vsel %vm1904, 0.0, %v2507
    %v2530 = vsel %vm1904, 0.0, %v2510
    %v2531 = vadd.f32 %v2471, %v2525
    %v2532 = vadd.f32 %v2472, %v2497
    %v2533 = vadd.f32 %v2473, %v2526
    %v2534 = vadd.f32 %v2474, %v2500
    %v2535 = vadd.f32 %v2475, %v2527
    %v2536 = vadd.f32 %v2476, %v2503
    %v2537 = vadd.f32 %v2477, %v2528
    %v2538 = vadd.f32 %v2478, %v2506
    %v2539 = vadd.f32 %v2479, %v2529
    %v2540 = vadd.f32 %v2480, %v2509
    %v2541 = vadd.f32 %v2481, %v2530
    %v2542 = vadd.f32 %v2482, %v2512
    %v2555 = vrot.slane %v2419, 2
    %v2556 = vrot.slane %v2422, 2
    %v2557 = vsel %vm1965, %v2555, %v2556
    %v2558 = vrot.slane %v2427, 2
    %v2559 = vrot.slane %v2430, 2
    %v2560 = vsel %vm1965, %v2558, %v2559
    %v2561 = vrot.slane %v2435, 2
    %v2562 = vrot.slane %v2438, 2
    %v2563 = vsel %vm1965, %v2561, %v2562
    %v2564 = vrot.slane %v2443, 2
    %v2565 = vrot.slane %v2446, 2
    %v2566 = vsel %vm1965, %v2564, %v2565
    %v2567 = vrot.slane %v2451, 2
    %v2568 = vrot.slane %v2454, 2
    %v2569 = vsel %vm1965, %v2567, %v2568
    %v2570 = vrot.slane %v2459, 2
    %v2571 = vrot.slane %v2462, 2
    %v2572 = vsel %vm1965, %v2570, %v2571
    %v2585 = vsel %vm1965, %v2556, 0.0
    %v2586 = vsel %vm1965, %v2559, 0.0
    %v2587 = vsel %vm1965, %v2562, 0.0
    %v2588 = vsel %vm1965, %v2565, 0.0
    %v2589 = vsel %vm1965, %v2568, 0.0
    %v2590 = vsel %vm1965, %v2571, 0.0
    %v2591 = vadd.f32 %v2531, %v2557
    %v2592 = vadd.f32 %v2532, %v2585
    %v2593 = vadd.f32 %v2533, %v2560
    %v2594 = vadd.f32 %v2534, %v2586
    %v2595 = vadd.f32 %v2535, %v2563
    %v2596 = vadd.f32 %v2536, %v2587
    %v2597 = vadd.f32 %v2537, %v2566
    %v2598 = vadd.f32 %v2538, %v2588
    %v2599 = vadd.f32 %v2539, %v2569
    %v2600 = vadd.f32 %v2540, %v2589
    %v2601 = vadd.f32 %v2541, %v2572
    %v2602 = vadd.f32 %v2542, %v2590
    %v2603 = vadd.f32 %v2591, %v1411
    %v2604 = vadd.f32 %v2592, %v1412
    %v2605 = vadd.f32 %v2593, %v1413
    %v2606 = vadd.f32 %v2594, %v1414
    %v2607 = vadd.f32 %v2595, %v1415
    %v2608 = vadd.f32 %v2596, %v1416
    %v2609 = vadd.f32 %v2597, %v1417
    %v2610 = vadd.f32 %v2598, %v1418
    %v2611 = vadd.f32 %v2599, %v1419
    %v2612 = vadd.f32 %v2600, %v1420
    %v2613 = vadd.f32 %v2601, %v1421
    %v2614 = vadd.f32 %v2602, %v1422
    %v2615 = vpack.c.bf16 %v2604, %v2603
    %v2616 = vpack.c.bf16 %v2606, %v2605
    %v2617 = vpack.c.bf16 %v2608, %v2607
    %v2618 = vpack.c.bf16 %v2610, %v2609
    %v2619 = vpack.c.bf16 %v2612, %v2611
    %v2620 = vpack.c.bf16 %v2614, %v2613
    %v2621 = vld [vmem:[%s7] sm:$0xf]
    %v2622 = vld [vmem:[%s7 + $0x4] sm:$0xf]
    %v2623 = vld [vmem:[%s7 + $0x8] sm:$0xf]
    %v2624 = vld [vmem:[%s7 + $0xc] sm:$0xf]
    %v2625 = vld [vmem:[%s7 + $0x10] sm:$0xf]
    %v2626 = vld [vmem:[%s7 + $0x14] sm:$0xf]
    %v2627 = vld [vmem:[%s7 + $0x18] sm:$0xf]
    %v2628 = vld [vmem:[%s7 + $0x1c] sm:$0xf]
    %v2629 = vld [vmem:[%s7 + $0x20] sm:$0xf]
    %v2630 = vld [vmem:[%s7 + $0x24] sm:$0xf]
    %v2631 = vld [vmem:[%s7 + $0x28] sm:$0xf]
    %v2632 = vld [vmem:[%s7 + $0x2c] sm:$0xf]
    %v2633 = vld [vmem:[%s7 + $0x30] sm:$0xf]
    %v2634 = vld [vmem:[%s7 + $0x34] sm:$0xf]
    %v2635 = vld [vmem:[%s7 + $0x38] sm:$0xf]
    %v2636 = vld [vmem:[%s7 + $0x3c] sm:$0xf]
    %v2653 = vunpack.c.l.b16 %v2621
    %v2654 = vunpack.c.l.b16 %v2622
    %v2655 = vunpack.c.l.b16 %v2623
    %v2656 = vunpack.c.l.b16 %v2624
    %v2657 = vunpack.c.l.b16 %v2625
    %v2658 = vunpack.c.l.b16 %v2626
    %v2659 = vunpack.c.l.b16 %v2627
    %v2660 = vunpack.c.l.b16 %v2628
    %v2661 = vunpack.c.l.b16 %v2629
    %v2662 = vunpack.c.l.b16 %v2630
    %v2663 = vunpack.c.l.b16 %v2631
    %v2664 = vunpack.c.l.b16 %v2632
    %v2665 = vunpack.c.l.b16 %v2633
    %v2666 = vunpack.c.l.b16 %v2634
    %v2667 = vunpack.c.l.b16 %v2635
    %v2668 = vunpack.c.l.b16 %v2636
    %v2669 = vpack.c.b16 %v2654, %v2653
    %v2670 = vpack.c.b16 %v2656, %v2655
    %v2671 = vpack.c.b16 %v2658, %v2657
    %v2672 = vpack.c.b16 %v2660, %v2659
    %v2673 = vpack.c.b16 %v2662, %v2661
    %v2674 = vpack.c.b16 %v2664, %v2663
    %v2675 = vpack.c.b16 %v2666, %v2665
    %v2676 = vpack.c.b16 %v2668, %v2667
    %2685 = vmatprep.subr.bf16.mxu0 0
    %2686 = vmatpush1.bf16.msra.mxu0 %v2669
    %2687 = vmatprep.subr.bf16.mxu0 0
    %2688 = vmatpush1.bf16.msra.mxu0 %v2670
    %2689 = vmatprep.subr.bf16.mxu0 0
    %2690 = vmatpush1.bf16.msra.mxu0 %v2671
    %2691 = vmatprep.subr.bf16.mxu0 0
    %2692 = vmatpush1.bf16.msra.mxu0 %v2672
    %2693 = vmatprep.subr.bf16.mxu0 0
    %2694 = vmatpush1.bf16.msra.mxu0 %v2673
    %2695 = vmatprep.subr.bf16.mxu0 0
    %2696 = vmatpush1.bf16.msra.mxu0 %v2674
    %2697 = vmatprep.subr.bf16.mxu0 0
    %2698 = vmatpush1.bf16.msra.mxu0 %v2675
    %2699 = vmatprep.subr.bf16.mxu0 0
    %2700 = vmatpush1.bf16.msra.mxu0 %v2676
    %2701 = vmatprep.subr.bf16.mxu0 0
    %2702 = vmatpush1.bf16.msra.mxu0 0
    %2703 = vmatprep.subr.bf16.mxu0 0
    %2704 = vmatpush1.bf16.msra.mxu0 0
    %2705 = vmatprep.subr.bf16.mxu0 0
    %2706 = vmatpush1.bf16.msra.mxu0 0
    %2707 = vmatprep.subr.bf16.mxu0 0
    %2708 = vmatpush1.bf16.msra.mxu0 0
    %2709 = vmatprep.subr.bf16.mxu0 0
    %2710 = vmatpush1.bf16.msra.mxu0 0
    %2711 = vmatprep.subr.bf16.mxu0 0
    %2712 = vmatpush1.bf16.msra.mxu0 0
    %2713 = vmatprep.subr.bf16.mxu0 0
    %2714 = vmatpush1.bf16.msra.mxu0 0
    %2715 = vmatprep.subr.bf16.mxu0 0
    %2716 = vmatpush1.bf16.msra.mxu0 0
    %2717 = vmatprep.mubr.bf16.mxu0 0
    %2718 = vmatmul.mubr.bf16.gmra.mrb[0].mxu0 %v2615
    %v2719 = vpop.f32.mrb[0].mxu0
    %v2720 = vadd.f32 0.0, %v2719
    %v2721 = vpop.f32.mrb[0].mxu0
    %v2722 = vpop.f32.mrb[0].mxu0
    %v2723 = vadd.f32 0.0, %v2722
    %v2724 = vpop.f32.mrb[0].mxu0
    %2725 = vmatprep.mubr.bf16.mxu0 0
    %2726 = vmatmul.mubr.bf16.gmra.mrb[0].mxu0 %v2616
    %v2727 = vpop.f32.mrb[0].mxu0
    %v2728 = vadd.f32 0.0, %v2727
    %v2729 = vpop.f32.mrb[0].mxu0
    %v2730 = vpop.f32.mrb[0].mxu0
    %v2731 = vadd.f32 0.0, %v2730
    %v2732 = vpop.f32.mrb[0].mxu0
    %2733 = vmatprep.mubr.bf16.mxu0 0
    %2734 = vmatmul.mubr.bf16.gmra.mrb[0].mxu0 %v2617
    %v2735 = vpop.f32.mrb[0].mxu0
    %v2736 = vadd.f32 0.0, %v2735
    %v2737 = vpop.f32.mrb[0].mxu0
    %v2738 = vpop.f32.mrb[0].mxu0
    %v2739 = vadd.f32 0.0, %v2738
    %v2740 = vpop.f32.mrb[0].mxu0
    %2741 = vmatprep.mubr.bf16.mxu0 0
    %2742 = vmatmul.mubr.bf16.gmra.mrb[0].mxu0 %v2618
    %v2743 = vpop.f32.mrb[0].mxu0
    %v2744 = vadd.f32 0.0, %v2743
    %v2745 = vpop.f32.mrb[0].mxu0
    %v2746 = vpop.f32.mrb[0].mxu0
    %v2747 = vadd.f32 0.0, %v2746
    %v2748 = vpop.f32.mrb[0].mxu0
    %2749 = vmatprep.mubr.bf16.mxu0 0
    %2750 = vmatmul.mubr.bf16.gmra.mrb[0].mxu0 %v2619
    %v2751 = vpop.f32.mrb[0].mxu0
    %v2752 = vadd.f32 0.0, %v2751
    %v2753 = vpop.f32.mrb[0].mxu0
    %v2754 = vpop.f32.mrb[0].mxu0
    %v2755 = vadd.f32 0.0, %v2754
    %v2756 = vpop.f32.mrb[0].mxu0
    %2757 = vmatprep.mubr.bf16.mxu0 0
    %2758 = vmatmul.mubr.bf16.gmra.mrb[0].mxu0 %v2620
    %v2759 = vpop.f32.mrb[0].mxu0
    %v2760 = vadd.f32 0.0, %v2759
    %v2761 = vpop.f32.mrb[0].mxu0
    %v2762 = vpop.f32.mrb[0].mxu0
    %v2763 = vadd.f32 0.0, %v2762
    %v2764 = vpop.f32.mrb[0].mxu0
    %2765 = vdwg.mxu0
    %v2766 = vld [vmem:[%s8] sm:$0x1]
    %v2768 = vlaneseq
    %v2769 = vshrl.u32 %v2768, 7
    %v2770 = vsub.s32 0, %v2769
    %v2771 = vrot.slane %v2766, %v2770
    %v2773 = vadd.f32 %v2720, %v2771
    %v2774 = vadd.f32 %v2723, %v2771
    %v2775 = vadd.f32 %v2728, %v2771
    %v2776 = vadd.f32 %v2731, %v2771
    %v2777 = vadd.f32 %v2736, %v2771
    %v2778 = vadd.f32 %v2739, %v2771
    %v2779 = vadd.f32 %v2744, %v2771
    %v2780 = vadd.f32 %v2747, %v2771
    %v2781 = vadd.f32 %v2752, %v2771
    %v2782 = vadd.f32 %v2755, %v2771
    %v2783 = vadd.f32 %v2760, %v2771
    %v2784 = vadd.f32 %v2763, %v2771
    %v2785 = vld [vmem:[#allocation7] sm:$0xff]
    %v2786 = vld [vmem:[#allocation7 + $0x8] sm:$0xf]
    %v2787 = vld [vmem:[#allocation7 + $0xc] sm:$0xff]
    %v2788 = vld [vmem:[#allocation7 + $0x14] sm:$0xf]
    %v2789 = vld [vmem:[#allocation7 + $0x18] sm:$0xff]
    %v2790 = vld [vmem:[#allocation7 + $0x20] sm:$0xf]
    %v2791 = vld [vmem:[#allocation7 + $0x24] sm:$0xff]
    %v2792 = vld [vmem:[#allocation7 + $0x2c] sm:$0xf]
    %v2793 = vld [vmem:[#allocation7 + $0x30] sm:$0xff]
    %v2794 = vld [vmem:[#allocation7 + $0x38] sm:$0xf]
    %v2795 = vld [vmem:[#allocation7 + $0x3c] sm:$0xff]
    %v2796 = vld [vmem:[#allocation7 + $0x44] sm:$0xf]
    %v2797 = vld [vmem:[#allocation7 + $0x48] sm:$0xff]
    %v2798 = vld [vmem:[#allocation7 + $0x50] sm:$0xf]
    %v2799 = vld [vmem:[#allocation7 + $0x54] sm:$0xff]
    %v2800 = vld [vmem:[#allocation7 + $0x5c] sm:$0xf]
    %v2801 = vld [vmem:[#allocation7 + $0x60] sm:$0xff]
    %v2802 = vld [vmem:[#allocation7 + $0x68] sm:$0xf]
    %v2803 = vld [vmem:[#allocation7 + $0x6c] sm:$0xff]
    %v2804 = vld [vmem:[#allocation7 + $0x74] sm:$0xf]
    %v2805 = vld [vmem:[#allocation7 + $0x78] sm:$0xff]
    %v2806 = vld [vmem:[#allocation7 + $0x80] sm:$0xf]
    %v2807 = vld [vmem:[#allocation7 + $0x84] sm:$0xff]
    %v2808 = vld [vmem:[#allocation7 + $0x8c] sm:$0xf]
    %v2809 = vld [vmem:[#allocation7 + $0x90] sm:$0xff]
    %v2810 = vld [vmem:[#allocation7 + $0x98] sm:$0xf]
    %v2811 = vld [vmem:[#allocation7 + $0x9c] sm:$0xff]
    %v2812 = vld [vmem:[#allocation7 + $0xa4] sm:$0xf]
    %v2813 = vld [vmem:[#allocation7 + $0xa8] sm:$0xff]
    %v2814 = vld [vmem:[#allocation7 + $0xb0] sm:$0xf]
    %v2815 = vld [vmem:[#allocation7 + $0xb4] sm:$0xff]
    %v2816 = vld [vmem:[#allocation7 + $0xbc] sm:$0xf]
    %v2817 = vld [vmem:[%s10] sm:$0x1]
    %v2818 = vmul.f32 %v2603, %v2603
    %v2819 = vmul.f32 %v2604, %v2604
    %v2820 = vmul.f32 %v2605, %v2605
    %v2821 = vmul.f32 %v2606, %v2606
    %v2822 = vmul.f32 %v2607, %v2607
    %v2823 = vmul.f32 %v2608, %v2608
    %v2824 = vmul.f32 %v2609, %v2609
    %v2825 = vmul.f32 %v2610, %v2610
    %v2826 = vmul.f32 %v2611, %v2611
    %v2827 = vmul.f32 %v2612, %v2612
    %v2828 = vmul.f32 %v2613, %v2613
    %v2829 = vmul.f32 %v2614, %v2614
    %v2830 = vmul.f32 %v2603, %v2818
    %v2831 = vmul.f32 %v2604, %v2819
    %v2832 = vmul.f32 %v2605, %v2820
    %v2833 = vmul.f32 %v2606, %v2821
    %v2834 = vmul.f32 %v2607, %v2822
    %v2835 = vmul.f32 %v2608, %v2823
    %v2836 = vmul.f32 %v2609, %v2824
    %v2837 = vmul.f32 %v2610, %v2825
    %v2838 = vmul.f32 %v2611, %v2826
    %v2839 = vmul.f32 %v2612, %v2827
    %v2840 = vmul.f32 %v2613, %v2828
    %v2841 = vmul.f32 %v2614, %v2829
    %v2842 = vmul.f32 %v2830, 0.044715
    %v2843 = vmul.f32 %v2831, 0.044715
    %v2844 = vmul.f32 %v2832, 0.044715
    %v2845 = vmul.f32 %v2833, 0.044715
    %v2846 = vmul.f32 %v2834, 0.044715
    %v2847 = vmul.f32 %v2835, 0.044715
    %v2848 = vmul.f32 %v2836, 0.044715
    %v2849 = vmul.f32 %v2837, 0.044715
    %v2850 = vmul.f32 %v2838, 0.044715
    %v2851 = vmul.f32 %v2839, 0.044715
    %v2852 = vmul.f32 %v2840, 0.044715
    %v2853 = vmul.f32 %v2841, 0.044715
    %v2854 = vadd.f32 %v2603, %v2842
    %v2855 = vadd.f32 %v2604, %v2843
    %v2856 = vadd.f32 %v2605, %v2844
    %v2857 = vadd.f32 %v2606, %v2845
    %v2858 = vadd.f32 %v2607, %v2846
    %v2859 = vadd.f32 %v2608, %v2847
    %v2860 = vadd.f32 %v2609, %v2848
    %v2861 = vadd.f32 %v2610, %v2849
    %v2862 = vadd.f32 %v2611, %v2850
    %v2863 = vadd.f32 %v2612, %v2851
    %v2864 = vadd.f32 %v2613, %v2852
    %v2865 = vadd.f32 %v2614, %v2853
    %v2866 = vmul.f32 %v2854, 0.7978846
    %v2867 = vmul.f32 %v2855, 0.7978846
    %v2868 = vmul.f32 %v2856, 0.7978846
    %v2869 = vmul.f32 %v2857, 0.7978846
    %v2870 = vmul.f32 %v2858, 0.7978846
    %v2871 = vmul.f32 %v2859, 0.7978846
    %v2872 = vmul.f32 %v2860, 0.7978846
    %v2873 = vmul.f32 %v2861, 0.7978846
    %v2874 = vmul.f32 %v2862, 0.7978846
    %v2875 = vmul.f32 %v2863, 0.7978846
    %v2876 = vmul.f32 %v2864, 0.7978846
    %v2877 = vmul.f32 %v2865, 0.7978846
    %v2878 = vtanh.pop %v2866
    %v2879 = vtanh.pop %v2867
    %v2880 = vtanh.pop %v2868
    %v2881 = vtanh.pop %v2869
    %v2882 = vtanh.pop %v2870
    %v2883 = vtanh.pop %v2871
    %v2884 = vtanh.pop %v2872
    %v2885 = vtanh.pop %v2873
    %v2886 = vtanh.pop %v2874
    %v2887 = vtanh.pop %v2875
    %v2888 = vtanh.pop %v2876
    %v2889 = vtanh.pop %v2877
    %v2890 = vadd.f32 %v2878, 1.0
    %v2891 = vadd.f32 %v2879, 1.0
    %v2892 = vadd.f32 %v2880, 1.0
    %v2893 = vadd.f32 %v2881, 1.0
    %v2894 = vadd.f32 %v2882, 1.0
    %v2895 = vadd.f32 %v2883, 1.0
    %v2896 = vadd.f32 %v2884, 1.0
    %v2897 = vadd.f32 %v2885, 1.0
    %v2898 = vadd.f32 %v2886, 1.0
    %v2899 = vadd.f32 %v2887, 1.0
    %v2900 = vadd.f32 %v2888, 1.0
    %v2901 = vadd.f32 %v2889, 1.0
    %v2902 = vmul.f32 %v2890, 0.5
    %v2903 = vmul.f32 %v2891, 0.5
    %v2904 = vmul.f32 %v2892, 0.5
    %v2905 = vmul.f32 %v2893, 0.5
    %v2906 = vmul.f32 %v2894, 0.5
    %v2907 = vmul.f32 %v2895, 0.5
    %v2908 = vmul.f32 %v2896, 0.5
    %v2909 = vmul.f32 %v2897, 0.5
    %v2910 = vmul.f32 %v2898, 0.5
    %v2911 = vmul.f32 %v2899, 0.5
    %v2912 = vmul.f32 %v2900, 0.5
    %v2913 = vmul.f32 %v2901, 0.5
    %v2914 = vmul.f32 %v2603, %v2902
    %v2915 = vmul.f32 %v2604, %v2903
    %v2916 = vmul.f32 %v2605, %v2904
    %v2917 = vmul.f32 %v2606, %v2905
    %v2918 = vmul.f32 %v2607, %v2906
    %v2919 = vmul.f32 %v2608, %v2907
    %v2920 = vmul.f32 %v2609, %v2908
    %v2921 = vmul.f32 %v2610, %v2909
    %v2922 = vmul.f32 %v2611, %v2910
    %v2923 = vmul.f32 %v2612, %v2911
    %v2924 = vmul.f32 %v2613, %v2912
    %v2925 = vmul.f32 %v2614, %v2913
    %v2926 = vpack.c.bf16 %v2915, %v2914
    %v2927 = vpack.c.bf16 %v2917, %v2916
    %v2928 = vpack.c.bf16 %v2919, %v2918
    %v2929 = vpack.c.bf16 %v2921, %v2920
    %v2930 = vpack.c.bf16 %v2923, %v2922
    %v2931 = vpack.c.bf16 %v2925, %v2924
    %v2964 = vunpack.c.l.b16 %v2785
    %v2965 = vunpack.c.h.b16 %v2785
    %v2966 = vunpack.c.l.b16 %v2786
    %v2967 = vunpack.c.l.b16 %v2787
    %v2968 = vunpack.c.h.b16 %v2787
    %v2969 = vunpack.c.l.b16 %v2788
    %v2970 = vunpack.c.l.b16 %v2789
    %v2971 = vunpack.c.h.b16 %v2789
    %v2972 = vunpack.c.l.b16 %v2790
    %v2973 = vunpack.c.l.b16 %v2791
    %v2974 = vunpack.c.h.b16 %v2791
    %v2975 = vunpack.c.l.b16 %v2792
    %v2976 = vunpack.c.l.b16 %v2793
    %v2977 = vunpack.c.h.b16 %v2793
    %v2978 = vunpack.c.l.b16 %v2794
    %v2979 = vunpack.c.l.b16 %v2795
    %v2980 = vunpack.c.h.b16 %v2795
    %v2981 = vunpack.c.l.b16 %v2796
    %v2982 = vunpack.c.l.b16 %v2797
    %v2983 = vunpack.c.h.b16 %v2797
    %v2984 = vunpack.c.l.b16 %v2798
    %v2985 = vunpack.c.l.b16 %v2799
    %v2986 = vunpack.c.h.b16 %v2799
    %v2987 = vunpack.c.l.b16 %v2800
    %v2988 = vunpack.c.l.b16 %v2801
    %v2989 = vunpack.c.h.b16 %v2801
    %v2990 = vunpack.c.l.b16 %v2802
    %v2991 = vunpack.c.l.b16 %v2803
    %v2992 = vunpack.c.h.b16 %v2803
    %v2993 = vunpack.c.l.b16 %v2804
    %v2994 = vunpack.c.l.b16 %v2805
    %v2995 = vunpack.c.h.b16 %v2805
    %v2996 = vunpack.c.l.b16 %v2806
    %v2997 = vunpack.c.l.b16 %v2807
    %v2998 = vunpack.c.h.b16 %v2807
    %v2999 = vunpack.c.l.b16 %v2808
    %v3000 = vunpack.c.l.b16 %v2809
    %v3001 = vunpack.c.h.b16 %v2809
    %v3002 = vunpack.c.l.b16 %v2810
    %v3003 = vunpack.c.l.b16 %v2811
    %v3004 = vunpack.c.h.b16 %v2811
    %v3005 = vunpack.c.l.b16 %v2812
    %v3006 = vunpack.c.l.b16 %v2813
    %v3007 = vunpack.c.h.b16 %v2813
    %v3008 = vunpack.c.l.b16 %v2814
    %v3009 = vunpack.c.l.b16 %v2815
    %v3010 = vunpack.c.h.b16 %v2815
    %v3011 = vunpack.c.l.b16 %v2816
    %v3012 = vpack.c.b16 %v2967, %v2964
    %v3013 = vpack.c.b16 %v2968, %v2965
    %v3014 = vpack.c.b16 %v2969, %v2966
    %v3015 = vpack.c.b16 %v2973, %v2970
    %v3016 = vpack.c.b16 %v2974, %v2971
    %v3017 = vpack.c.b16 %v2975, %v2972
    %v3018 = vpack.c.b16 %v2979, %v2976
    %v3019 = vpack.c.b16 %v2980, %v2977
    %v3020 = vpack.c.b16 %v2981, %v2978
    %v3021 = vpack.c.b16 %v2985, %v2982
    %v3022 = vpack.c.b16 %v2986, %v2983
    %v3023 = vpack.c.b16 %v2987, %v2984
    %v3024 = vpack.c.b16 %v2991, %v2988
    %v3025 = vpack.c.b16 %v2992, %v2989
    %v3026 = vpack.c.b16 %v2993, %v2990
    %v3027 = vpack.c.b16 %v2997, %v2994
    %v3028 = vpack.c.b16 %v2998, %v2995
    %v3029 = vpack.c.b16 %v2999, %v2996
    %v3030 = vpack.c.b16 %v3003, %v3000
    %v3031 = vpack.c.b16 %v3004, %v3001
    %v3032 = vpack.c.b16 %v3005, %v3002
    %v3033 = vpack.c.b16 %v3009, %v3006
    %v3034 = vpack.c.b16 %v3010, %v3007
    %v3035 = vpack.c.b16 %v3011, %v3008
    %3060 = vmatprep.subr.bf16.mxu0 %v3013
    %3061 = vmatpush1.bf16.msra.mxu0 %v3012
    %3062 = vmatprep.subr.bf16.mxu0 %v3016
    %3063 = vmatpush1.bf16.msra.mxu0 %v3015
    %3064 = vmatprep.subr.bf16.mxu0 %v3019
    %3065 = vmatpush1.bf16.msra.mxu0 %v3018
    %3066 = vmatprep.subr.bf16.mxu0 %v3022
    %3067 = vmatpush1.bf16.msra.mxu0 %v3021
    %3068 = vmatprep.subr.bf16.mxu0 %v3025
    %3069 = vmatpush1.bf16.msra.mxu0 %v3024
    %3070 = vmatprep.subr.bf16.mxu0 %v3028
    %3071 = vmatpush1.bf16.msra.mxu0 %v3027
    %3072 = vmatprep.subr.bf16.mxu0 %v3031
    %3073 = vmatpush1.bf16.msra.mxu0 %v3030
    %3074 = vmatprep.subr.bf16.mxu0 %v3034
    %3075 = vmatpush1.bf16.msra.mxu0 %v3033
    %3076 = vmatprep.subr.bf16.mxu0 0
    %3077 = vmatpush1.bf16.msra.mxu0 0
    %3078 = vmatprep.subr.bf16.mxu0 0
    %3079 = vmatpush1.bf16.msra.mxu0 0
    %3080 = vmatprep.subr.bf16.mxu0 0
    %3081 = vmatpush1.bf16.msra.mxu0 0
    %3082 = vmatprep.subr.bf16.mxu0 0
    %3083 = vmatpush1.bf16.msra.mxu0 0
    %3084 = vmatprep.subr.bf16.mxu0 0
    %3085 = vmatpush1.bf16.msra.mxu0 0
    %3086 = vmatprep.subr.bf16.mxu0 0
    %3087 = vmatpush1.bf16.msra.mxu0 0
    %3088 = vmatprep.subr.bf16.mxu0 0
    %3089 = vmatpush1.bf16.msra.mxu0 0
    %3090 = vmatprep.subr.bf16.mxu0 0
    %3091 = vmatpush1.bf16.msra.mxu0 0
    %3092 = vmatprep.mubr.bf16.mxu0 0
    %3093 = vmatmul.mubr.bf16.gmra.mrb[0].mxu0 %v2926
    %v3094 = vpop.f32.mrb[0].mxu0
    %v3095 = vadd.f32 0.0, %v3094
    %v3096 = vpop.f32.mrb[0].mxu0
    %v3097 = vadd.f32 0.0, %v3096
    %v3098 = vpop.f32.mrb[0].mxu0
    %v3099 = vadd.f32 0.0, %v3098
    %v3100 = vpop.f32.mrb[0].mxu0
    %v3101 = vadd.f32 0.0, %v3100
    %3102 = vmatprep.mubr.bf16.mxu0 0
    %3103 = vmatmul.mubr.bf16.gmra.mrb[0].mxu0 %v2927
    %v3104 = vpop.f32.mrb[0].mxu0
    %v3105 = vadd.f32 0.0, %v3104
    %v3106 = vpop.f32.mrb[0].mxu0
    %v3107 = vadd.f32 0.0, %v3106
    %v3108 = vpop.f32.mrb[0].mxu0
    %v3109 = vadd.f32 0.0, %v3108
    %v3110 = vpop.f32.mrb[0].mxu0
    %v3111 = vadd.f32 0.0, %v3110
    %3112 = vmatprep.mubr.bf16.mxu0 0
    %3113 = vmatmul.mubr.bf16.gmra.mrb[0].mxu0 %v2928
    %v3114 = vpop.f32.mrb[0].mxu0
    %v3115 = vadd.f32 0.0, %v3114
    %v3116 = vpop.f32.mrb[0].mxu0
    %v3117 = vadd.f32 0.0, %v3116
    %v3118 = vpop.f32.mrb[0].mxu0
    %v3119 = vadd.f32 0.0, %v3118
    %v3120 = vpop.f32.mrb[0].mxu0
    %v3121 = vadd.f32 0.0, %v3120
    %3122 = vmatprep.mubr.bf16.mxu0 0
    %3123 = vmatmul.mubr.bf16.gmra.mrb[0].mxu0 %v2929
    %v3124 = vpop.f32.mrb[0].mxu0
    %v3125 = vadd.f32 0.0, %v3124
    %v3126 = vpop.f32.mrb[0].mxu0
    %v3127 = vadd.f32 0.0, %v3126
    %v3128 = vpop.f32.mrb[0].mxu0
    %v3129 = vadd.f32 0.0, %v3128
    %v3130 = vpop.f32.mrb[0].mxu0
    %v3131 = vadd.f32 0.0, %v3130
    %3132 = vmatprep.mubr.bf16.mxu0 0
    %3133 = vmatmul.mubr.bf16.gmra.mrb[0].mxu0 %v2930
    %v3134 = vpop.f32.mrb[0].mxu0
    %v3135 = vadd.f32 0.0, %v3134
    %v3136 = vpop.f32.mrb[0].mxu0
    %v3137 = vadd.f32 0.0, %v3136
    %v3138 = vpop.f32.mrb[0].mxu0
    %v3139 = vadd.f32 0.0, %v3138
    %v3140 = vpop.f32.mrb[0].mxu0
    %v3141 = vadd.f32 0.0, %v3140
    %3142 = vmatprep.mubr.bf16.mxu0 0
    %3143 = vmatmul.mubr.bf16.gmra.mrb[0].mxu0 %v2931
    %v3144 = vpop.f32.mrb[0].mxu0
    %v3145 = vadd.f32 0.0, %v3144
    %v3146 = vpop.f32.mrb[0].mxu0
    %v3147 = vadd.f32 0.0, %v3146
    %v3148 = vpop.f32.mrb[0].mxu0
    %v3149 = vadd.f32 0.0, %v3148
    %v3150 = vpop.f32.mrb[0].mxu0
    %v3151 = vadd.f32 0.0, %v3150
    %3152 = vdwg.mxu0
    %3153 = vmatprep.subr.bf16.mxu0 0
    %3154 = vmatpush1.bf16.msra.mxu0 %v3014
    %3155 = vmatprep.subr.bf16.mxu0 0
    %3156 = vmatpush1.bf16.msra.mxu0 %v3017
    %3157 = vmatprep.subr.bf16.mxu0 0
    %3158 = vmatpush1.bf16.msra.mxu0 %v3020
    %3159 = vmatprep.subr.bf16.mxu0 0
    %3160 = vmatpush1.bf16.msra.mxu0 %v3023
    %3161 = vmatprep.subr.bf16.mxu0 0
    %3162 = vmatpush1.bf16.msra.mxu0 %v3026
    %3163 = vmatprep.subr.bf16.mxu0 0
    %3164 = vmatpush1.bf16.msra.mxu0 %v3029
    %3165 = vmatprep.subr.bf16.mxu0 0
    %3166 = vmatpush1.bf16.msra.mxu0 %v3032
    %3167 = vmatprep.subr.bf16.mxu0 0
    %3168 = vmatpush1.bf16.msra.mxu0 %v3035
    %3169 = vmatprep.subr.bf16.mxu0 0
    %3170 = vmatpush1.bf16.msra.mxu0 0
    %3171 = vmatprep.subr.bf16.mxu0 0
    %3172 = vmatpush1.bf16.msra.mxu0 0
    %3173 = vmatprep.subr.bf16.mxu0 0
    %3174 = vmatpush1.bf16.msra.mxu0 0
    %3175 = vmatprep.subr.bf16.mxu0 0
    %3176 = vmatpush1.bf16.msra.mxu0 0
    %3177 = vmatprep.subr.bf16.mxu0 0
    %3178 = vmatpush1.bf16.msra.mxu0 0
    %3179 = vmatprep.subr.bf16.mxu0 0
    %3180 = vmatpush1.bf16.msra.mxu0 0
    %3181 = vmatprep.subr.bf16.mxu0 0
    %3182 = vmatpush1.bf16.msra.mxu0 0
    %3183 = vmatprep.subr.bf16.mxu0 0
    %3184 = vmatpush1.bf16.msra.mxu0 0
    %3185 = vmatprep.mubr.bf16.mxu0 0
    %3186 = vmatmul.mubr.bf16.gmra.mrb[0].mxu0 %v2926
    %v3187 = vpop.f32.mrb[0].mxu0
    %v3188 = vadd.f32 0.0, %v3187
    %v3189 = vpop.f32.mrb[0].mxu0
    %v3190 = vpop.f32.mrb[0].mxu0
    %v3191 = vadd.f32 0.0, %v3190
    %v3192 = vpop.f32.mrb[0].mxu0
    %3193 = vmatprep.mubr.bf16.mxu0 0
    %3194 = vmatmul.mubr.bf16.gmra.mrb[0].mxu0 %v2927
    %v3195 = vpop.f32.mrb[0].mxu0
    %v3196 = vadd.f32 0.0, %v3195
    %v3197 = vpop.f32.mrb[0].mxu0
    %v3198 = vpop.f32.mrb[0].mxu0
    %v3199 = vadd.f32 0.0, %v3198
    %v3200 = vpop.f32.mrb[0].mxu0
    %3201 = vmatprep.mubr.bf16.mxu0 0
    %3202 = vmatmul.mubr.bf16.gmra.mrb[0].mxu0 %v2928
    %v3203 = vpop.f32.mrb[0].mxu0
    %v3204 = vadd.f32 0.0, %v3203
    %v3205 = vpop.f32.mrb[0].mxu0
    %v3206 = vpop.f32.mrb[0].mxu0
    %v3207 = vadd.f32 0.0, %v3206
    %v3208 = vpop.f32.mrb[0].mxu0
    %3209 = vmatprep.mubr.bf16.mxu0 0
    %3210 = vmatmul.mubr.bf16.gmra.mrb[0].mxu0 %v2929
    %v3211 = vpop.f32.mrb[0].mxu0
    %v3212 = vadd.f32 0.0, %v3211
    %v3213 = vpop.f32.mrb[0].mxu0
    %v3214 = vpop.f32.mrb[0].mxu0
    %v3215 = vadd.f32 0.0, %v3214
    %v3216 = vpop.f32.mrb[0].mxu0
    %3217 = vmatprep.mubr.bf16.mxu0 0
    %3218 = vmatmul.mubr.bf16.gmra.mrb[0].mxu0 %v2930
    %v3219 = vpop.f32.mrb[0].mxu0
    %v3220 = vadd.f32 0.0, %v3219
    %v3221 = vpop.f32.mrb[0].mxu0
    %v3222 = vpop.f32.mrb[0].mxu0
    %v3223 = vadd.f32 0.0, %v3222
    %v3224 = vpop.f32.mrb[0].mxu0
    %3225 = vmatprep.mubr.bf16.mxu0 0
    %3226 = vmatmul.mubr.bf16.gmra.mrb[0].mxu0 %v2931
    %v3227 = vpop.f32.mrb[0].mxu0
    %v3228 = vadd.f32 0.0, %v3227
    %v3229 = vpop.f32.mrb[0].mxu0
    %v3230 = vpop.f32.mrb[0].mxu0
    %v3231 = vadd.f32 0.0, %v3230
    %v3232 = vpop.f32.mrb[0].mxu0
    %3233 = vdwg.mxu0
    %v3235 = vlaneseq
    %v3236 = vshrl.u32 %v3235, 7
    %v3237 = vsub.s32 0, %v3236
    %v3238 = vrot.slane %v2817, %v3237
    %v3240 = vadd.f32 %v3097, %v3238
    %v3241 = vadd.f32 %v3101, %v3238
    %v3242 = vadd.f32 %v3107, %v3238
    %v3243 = vadd.f32 %v3111, %v3238
    %v3244 = vadd.f32 %v3117, %v3238
    %v3245 = vadd.f32 %v3121, %v3238
    %v3246 = vadd.f32 %v3127, %v3238
    %v3247 = vadd.f32 %v3131, %v3238
    %v3248 = vadd.f32 %v3137, %v3238
    %v3249 = vadd.f32 %v3141, %v3238
    %v3250 = vadd.f32 %v3147, %v3238
    %v3251 = vadd.f32 %v3151, %v3238
    %vm3264 = vcmask 1043456
    %v3265 = vrot.slane %v3095, 4
    %v3266 = vrot.slane %v3099, 4
    %v3267 = vsel %vm3264, %v3265, %v3266
    %v3268 = vrot.slane %v3105, 4
    %v3269 = vrot.slane %v3109, 4
    %v3270 = vsel %vm3264, %v3268, %v3269
    %v3271 = vrot.slane %v3115, 4
    %v3272 = vrot.slane %v3119, 4
    %v3273 = vsel %vm3264, %v3271, %v3272
    %v3274 = vrot.slane %v3125, 4
    %v3275 = vrot.slane %v3129, 4
    %v3276 = vsel %vm3264, %v3274, %v3275
    %v3277 = vrot.slane %v3135, 4
    %v3278 = vrot.slane %v3139, 4
    %v3279 = vsel %vm3264, %v3277, %v3278
    %v3280 = vrot.slane %v3145, 4
    %v3281 = vrot.slane %v3149, 4
    %v3282 = vsel %vm3264, %v3280, %v3281
    %v3295 = vsel %vm3264, 0.0, %v3265
    %v3296 = vsel %vm3264, 0.0, %v3268
    %v3297 = vsel %vm3264, 0.0, %v3271
    %v3298 = vsel %vm3264, 0.0, %v3274
    %v3299 = vsel %vm3264, 0.0, %v3277
    %v3300 = vsel %vm3264, 0.0, %v3280
    %v3301 = vadd.f32 %v3240, %v3295
    %v3302 = vadd.f32 %v3241, %v3267
    %v3303 = vadd.f32 %v3242, %v3296
    %v3304 = vadd.f32 %v3243, %v3270
    %v3305 = vadd.f32 %v3244, %v3297
    %v3306 = vadd.f32 %v3245, %v3273
    %v3307 = vadd.f32 %v3246, %v3298
    %v3308 = vadd.f32 %v3247, %v3276
    %v3309 = vadd.f32 %v3248, %v3299
    %v3310 = vadd.f32 %v3249, %v3279
    %v3311 = vadd.f32 %v3250, %v3300
    %v3312 = vadd.f32 %v3251, %v3282
    %v3325 = vrot.slane %v3188, 4
    %v3326 = vrot.slane %v3191, 4
    %v3327 = vsel %vm3264, %v3325, %v3326
    %v3328 = vrot.slane %v3196, 4
    %v3329 = vrot.slane %v3199, 4
    %v3330 = vsel %vm3264, %v3328, %v3329
    %v3331 = vrot.slane %v3204, 4
    %v3332 = vrot.slane %v3207, 4
    %v3333 = vsel %vm3264, %v3331, %v3332
    %v3334 = vrot.slane %v3212, 4
    %v3335 = vrot.slane %v3215, 4
    %v3336 = vsel %vm3264, %v3334, %v3335
    %v3337 = vrot.slane %v3220, 4
    %v3338 = vrot.slane %v3223, 4
    %v3339 = vsel %vm3264, %v3337, %v3338
    %v3340 = vrot.slane %v3228, 4
    %v3341 = vrot.slane %v3231, 4
    %v3342 = vsel %vm3264, %v3340, %v3341
    %v3355 = vsel %vm3264, %v3326, 0.0
    %v3356 = vsel %vm3264, %v3329, 0.0
    %v3357 = vsel %vm3264, %v3332, 0.0
    %v3358 = vsel %vm3264, %v3335, 0.0
    %v3359 = vsel %vm3264, %v3338, 0.0
    %v3360 = vsel %vm3264, %v3341, 0.0
    %v3361 = vadd.f32 %v3301, %v3327
    %v3362 = vadd.f32 %v3302, %v3355
    %v3363 = vadd.f32 %v3303, %v3330
    %v3364 = vadd.f32 %v3304, %v3356
    %v3365 = vadd.f32 %v3305, %v3333
    %v3366 = vadd.f32 %v3306, %v3357
    %v3367 = vadd.f32 %v3307, %v3336
    %v3368 = vadd.f32 %v3308, %v3358
    %v3369 = vadd.f32 %v3309, %v3339
    %v3370 = vadd.f32 %v3310, %v3359
    %v3371 = vadd.f32 %v3311, %v3342
    %v3372 = vadd.f32 %v3312, %v3360
    %v3373 = vld [vmem:[#allocation8] sm:$0xff]
    %v3374 = vld [vmem:[#allocation8 + $0x8] sm:$0xf]
    %v3375 = vld [vmem:[#allocation8 + $0xc] sm:$0xff]
    %v3376 = vld [vmem:[#allocation8 + $0x14] sm:$0xf]
    %v3377 = vld [vmem:[#allocation8 + $0x18] sm:$0xff]
    %v3378 = vld [vmem:[#allocation8 + $0x20] sm:$0xf]
    %v3379 = vld [vmem:[#allocation8 + $0x24] sm:$0xff]
    %v3380 = vld [vmem:[#allocation8 + $0x2c] sm:$0xf]
    %v3381 = vld [vmem:[#allocation8 + $0x30] sm:$0xff]
    %v3382 = vld [vmem:[#allocation8 + $0x38] sm:$0xf]
    %v3383 = vld [vmem:[#allocation8 + $0x3c] sm:$0xff]
    %v3384 = vld [vmem:[#allocation8 + $0x44] sm:$0xf]
    %v3385 = vld [vmem:[#allocation8 + $0x48] sm:$0xff]
    %v3386 = vld [vmem:[#allocation8 + $0x50] sm:$0xf]
    %v3387 = vld [vmem:[#allocation8 + $0x54] sm:$0xff]
    %v3388 = vld [vmem:[#allocation8 + $0x5c] sm:$0xf]
    %v3389 = vld [vmem:[#allocation8 + $0x60] sm:$0xff]
    %v3390 = vld [vmem:[#allocation8 + $0x68] sm:$0xf]
    %v3391 = vld [vmem:[#allocation8 + $0x6c] sm:$0xff]
    %v3392 = vld [vmem:[#allocation8 + $0x74] sm:$0xf]
    %v3393 = vld [vmem:[#allocation8 + $0x78] sm:$0xff]
    %v3394 = vld [vmem:[#allocation8 + $0x80] sm:$0xf]
    %v3395 = vld [vmem:[#allocation8 + $0x84] sm:$0xff]
    %v3396 = vld [vmem:[#allocation8 + $0x8c] sm:$0xf]
    %v3397 = vld [vmem:[#allocation8 + $0x90] sm:$0xff]
    %v3398 = vld [vmem:[#allocation8 + $0x98] sm:$0xf]
    %v3399 = vld [vmem:[#allocation8 + $0x9c] sm:$0xff]
    %v3400 = vld [vmem:[#allocation8 + $0xa4] sm:$0xf]
    %v3401 = vld [vmem:[#allocation8 + $0xa8] sm:$0xff]
    %v3402 = vld [vmem:[#allocation8 + $0xb0] sm:$0xf]
    %v3403 = vld [vmem:[#allocation8 + $0xb4] sm:$0xff]
    %v3404 = vld [vmem:[#allocation8 + $0xbc] sm:$0xf]
    %v3405 = vld [vmem:[%s12] sm:$0x1]
    %v3406 = vmul.f32 %v3361, %v3361
    %v3407 = vmul.f32 %v3362, %v3362
    %v3408 = vmul.f32 %v3363, %v3363
    %v3409 = vmul.f32 %v3364, %v3364
    %v3410 = vmul.f32 %v3365, %v3365
    %v3411 = vmul.f32 %v3366, %v3366
    %v3412 = vmul.f32 %v3367, %v3367
    %v3413 = vmul.f32 %v3368, %v3368
    %v3414 = vmul.f32 %v3369, %v3369
    %v3415 = vmul.f32 %v3370, %v3370
    %v3416 = vmul.f32 %v3371, %v3371
    %v3417 = vmul.f32 %v3372, %v3372
    %v3418 = vmul.f32 %v3361, %v3406
    %v3419 = vmul.f32 %v3362, %v3407
    %v3420 = vmul.f32 %v3363, %v3408
    %v3421 = vmul.f32 %v3364, %v3409
    %v3422 = vmul.f32 %v3365, %v3410
    %v3423 = vmul.f32 %v3366, %v3411
    %v3424 = vmul.f32 %v3367, %v3412
    %v3425 = vmul.f32 %v3368, %v3413
    %v3426 = vmul.f32 %v3369, %v3414
    %v3427 = vmul.f32 %v3370, %v3415
    %v3428 = vmul.f32 %v3371, %v3416
    %v3429 = vmul.f32 %v3372, %v3417
    %v3430 = vmul.f32 %v3418, 0.044715
    %v3431 = vmul.f32 %v3419, 0.044715
    %v3432 = vmul.f32 %v3420, 0.044715
    %v3433 = vmul.f32 %v3421, 0.044715
    %v3434 = vmul.f32 %v3422, 0.044715
    %v3435 = vmul.f32 %v3423, 0.044715
    %v3436 = vmul.f32 %v3424, 0.044715
    %v3437 = vmul.f32 %v3425, 0.044715
    %v3438 = vmul.f32 %v3426, 0.044715
    %v3439 = vmul.f32 %v3427, 0.044715
    %v3440 = vmul.f32 %v3428, 0.044715
    %v3441 = vmul.f32 %v3429, 0.044715
    %v3442 = vadd.f32 %v3361, %v3430
    %v3443 = vadd.f32 %v3362, %v3431
    %v3444 = vadd.f32 %v3363, %v3432
    %v3445 = vadd.f32 %v3364, %v3433
    %v3446 = vadd.f32 %v3365, %v3434
    %v3447 = vadd.f32 %v3366, %v3435
    %v3448 = vadd.f32 %v3367, %v3436
    %v3449 = vadd.f32 %v3368, %v3437
    %v3450 = vadd.f32 %v3369, %v3438
    %v3451 = vadd.f32 %v3370, %v3439
    %v3452 = vadd.f32 %v3371, %v3440
    %v3453 = vadd.f32 %v3372, %v3441
    %v3454 = vmul.f32 %v3442, 0.7978846
    %v3455 = vmul.f32 %v3443, 0.7978846
    %v3456 = vmul.f32 %v3444, 0.7978846
    %v3457 = vmul.f32 %v3445, 0.7978846
    %v3458 = vmul.f32 %v3446, 0.7978846
    %v3459 = vmul.f32 %v3447, 0.7978846
    %v3460 = vmul.f32 %v3448, 0.7978846
    %v3461 = vmul.f32 %v3449, 0.7978846
    %v3462 = vmul.f32 %v3450, 0.7978846
    %v3463 = vmul.f32 %v3451, 0.7978846
    %v3464 = vmul.f32 %v3452, 0.7978846
    %v3465 = vmul.f32 %v3453, 0.7978846
    %v3466 = vtanh.pop %v3454
    %v3467 = vtanh.pop %v3455
    %v3468 = vtanh.pop %v3456
    %v3469 = vtanh.pop %v3457
    %v3470 = vtanh.pop %v3458
    %v3471 = vtanh.pop %v3459
    %v3472 = vtanh.pop %v3460
    %v3473 = vtanh.pop %v3461
    %v3474 = vtanh.pop %v3462
    %v3475 = vtanh.pop %v3463
    %v3476 = vtanh.pop %v3464
    %v3477 = vtanh.pop %v3465
    %v3478 = vadd.f32 %v3466, 1.0
    %v3479 = vadd.f32 %v3467, 1.0
    %v3480 = vadd.f32 %v3468, 1.0
    %v3481 = vadd.f32 %v3469, 1.0
    %v3482 = vadd.f32 %v3470, 1.0
    %v3483 = vadd.f32 %v3471, 1.0
    %v3484 = vadd.f32 %v3472, 1.0
    %v3485 = vadd.f32 %v3473, 1.0
    %v3486 = vadd.f32 %v3474, 1.0
    %v3487 = vadd.f32 %v3475, 1.0
    %v3488 = vadd.f32 %v3476, 1.0
    %v3489 = vadd.f32 %v3477, 1.0
    %v3490 = vmul.f32 %v3478, 0.5
    %v3491 = vmul.f32 %v3479, 0.5
    %v3492 = vmul.f32 %v3480, 0.5
    %v3493 = vmul.f32 %v3481, 0.5
    %v3494 = vmul.f32 %v3482, 0.5
    %v3495 = vmul.f32 %v3483, 0.5
    %v3496 = vmul.f32 %v3484, 0.5
    %v3497 = vmul.f32 %v3485, 0.5
    %v3498 = vmul.f32 %v3486, 0.5
    %v3499 = vmul.f32 %v3487, 0.5
    %v3500 = vmul.f32 %v3488, 0.5
    %v3501 = vmul.f32 %v3489, 0.5
    %v3502 = vmul.f32 %v3361, %v3490
    %v3503 = vmul.f32 %v3362, %v3491
    %v3504 = vmul.f32 %v3363, %v3492
    %v3505 = vmul.f32 %v3364, %v3493
    %v3506 = vmul.f32 %v3365, %v3494
    %v3507 = vmul.f32 %v3366, %v3495
    %v3508 = vmul.f32 %v3367, %v3496
    %v3509 = vmul.f32 %v3368, %v3497
    %v3510 = vmul.f32 %v3369, %v3498
    %v3511 = vmul.f32 %v3370, %v3499
    %v3512 = vmul.f32 %v3371, %v3500
    %v3513 = vmul.f32 %v3372, %v3501
    %v3514 = vpack.c.bf16 %v3503, %v3502
    %v3515 = vpack.c.bf16 %v3505, %v3504
    %v3516 = vpack.c.bf16 %v3507, %v3506
    %v3517 = vpack.c.bf16 %v3509, %v3508
    %v3518 = vpack.c.bf16 %v3511, %v3510
    %v3519 = vpack.c.bf16 %v3513, %v3512
    %v3552 = vunpack.c.l.b16 %v3373
    %v3553 = vunpack.c.h.b16 %v3373
    %v3554 = vunpack.c.l.b16 %v3374
    %v3555 = vunpack.c.l.b16 %v3375
    %v3556 = vunpack.c.h.b16 %v3375
    %v3557 = vunpack.c.l.b16 %v3376
    %v3558 = vunpack.c.l.b16 %v3377
    %v3559 = vunpack.c.h.b16 %v3377
    %v3560 = vunpack.c.l.b16 %v3378
    %v3561 = vunpack.c.l.b16 %v3379
    %v3562 = vunpack.c.h.b16 %v3379
    %v3563 = vunpack.c.l.b16 %v3380
    %v3564 = vunpack.c.l.b16 %v3381
    %v3565 = vunpack.c.h.b16 %v3381
    %v3566 = vunpack.c.l.b16 %v3382
    %v3567 = vunpack.c.l.b16 %v3383
    %v3568 = vunpack.c.h.b16 %v3383
    %v3569 = vunpack.c.l.b16 %v3384
    %v3570 = vunpack.c.l.b16 %v3385
    %v3571 = vunpack.c.h.b16 %v3385
    %v3572 = vunpack.c.l.b16 %v3386
    %v3573 = vunpack.c.l.b16 %v3387
    %v3574 = vunpack.c.h.b16 %v3387
    %v3575 = vunpack.c.l.b16 %v3388
    %v3576 = vunpack.c.l.b16 %v3389
    %v3577 = vunpack.c.h.b16 %v3389
    %v3578 = vunpack.c.l.b16 %v3390
    %v3579 = vunpack.c.l.b16 %v3391
    %v3580 = vunpack.c.h.b16 %v3391
    %v3581 = vunpack.c.l.b16 %v3392
    %v3582 = vunpack.c.l.b16 %v3393
    %v3583 = vunpack.c.h.b16 %v3393
    %v3584 = vunpack.c.l.b16 %v3394
    %v3585 = vunpack.c.l.b16 %v3395
    %v3586 = vunpack.c.h.b16 %v3395
    %v3587 = vunpack.c.l.b16 %v3396
    %v3588 = vunpack.c.l.b16 %v3397
    %v3589 = vunpack.c.h.b16 %v3397
    %v3590 = vunpack.c.l.b16 %v3398
    %v3591 = vunpack.c.l.b16 %v3399
    %v3592 = vunpack.c.h.b16 %v3399
    %v3593 = vunpack.c.l.b16 %v3400
    %v3594 = vunpack.c.l.b16 %v3401
    %v3595 = vunpack.c.h.b16 %v3401
    %v3596 = vunpack.c.l.b16 %v3402
    %v3597 = vunpack.c.l.b16 %v3403
    %v3598 = vunpack.c.h.b16 %v3403
    %v3599 = vunpack.c.l.b16 %v3404
    %v3600 = vpack.c.b16 %v3555, %v3552
    %v3601 = vpack.c.b16 %v3556, %v3553
    %v3602 = vpack.c.b16 %v3557, %v3554
    %v3603 = vpack.c.b16 %v3561, %v3558
    %v3604 = vpack.c.b16 %v3562, %v3559
    %v3605 = vpack.c.b16 %v3563, %v3560
    %v3606 = vpack.c.b16 %v3567, %v3564
    %v3607 = vpack.c.b16 %v3568, %v3565
    %v3608 = vpack.c.b16 %v3569, %v3566
    %v3609 = vpack.c.b16 %v3573, %v3570
    %v3610 = vpack.c.b16 %v3574, %v3571
    %v3611 = vpack.c.b16 %v3575, %v3572
    %v3612 = vpack.c.b16 %v3579, %v3576
    %v3613 = vpack.c.b16 %v3580, %v3577
    %v3614 = vpack.c.b16 %v3581, %v3578
    %v3615 = vpack.c.b16 %v3585, %v3582
    %v3616 = vpack.c.b16 %v3586, %v3583
    %v3617 = vpack.c.b16 %v3587, %v3584
    %v3618 = vpack.c.b16 %v3591, %v3588
    %v3619 = vpack.c.b16 %v3592, %v3589
    %v3620 = vpack.c.b16 %v3593, %v3590
    %v3621 = vpack.c.b16 %v3597, %v3594
    %v3622 = vpack.c.b16 %v3598, %v3595
    %v3623 = vpack.c.b16 %v3599, %v3596
    %3648 = vmatprep.subr.bf16.mxu0 %v3601
    %3649 = vmatpush1.bf16.msra.mxu0 %v3600
    %3650 = vmatprep.subr.bf16.mxu0 %v3604
    %3651 = vmatpush1.bf16.msra.mxu0 %v3603
    %3652 = vmatprep.subr.bf16.mxu0 %v3607
    %3653 = vmatpush1.bf16.msra.mxu0 %v3606
    %3654 = vmatprep.subr.bf16.mxu0 %v3610
    %3655 = vmatpush1.bf16.msra.mxu0 %v3609
    %3656 = vmatprep.subr.bf16.mxu0 %v3613
    %3657 = vmatpush1.bf16.msra.mxu0 %v3612
    %3658 = vmatprep.subr.bf16.mxu0 %v3616
    %3659 = vmatpush1.bf16.msra.mxu0 %v3615
    %3660 = vmatprep.subr.bf16.mxu0 %v3619
    %3661 = vmatpush1.bf16.msra.mxu0 %v3618
    %3662 = vmatprep.subr.bf16.mxu0 %v3622
    %3663 = vmatpush1.bf16.msra.mxu0 %v3621
    %3664 = vmatprep.subr.bf16.mxu0 0
    %3665 = vmatpush1.bf16.msra.mxu0 0
    %3666 = vmatprep.subr.bf16.mxu0 0
    %3667 = vmatpush1.bf16.msra.mxu0 0
    %3668 = vmatprep.subr.bf16.mxu0 0
    %3669 = vmatpush1.bf16.msra.mxu0 0
    %3670 = vmatprep.subr.bf16.mxu0 0
    %3671 = vmatpush1.bf16.msra.mxu0 0
    %3672 = vmatprep.subr.bf16.mxu0 0
    %3673 = vmatpush1.bf16.msra.mxu0 0
    %3674 = vmatprep.subr.bf16.mxu0 0
    %3675 = vmatpush1.bf16.msra.mxu0 0
    %3676 = vmatprep.subr.bf16.mxu0 0
    %3677 = vmatpush1.bf16.msra.mxu0 0
    %3678 = vmatprep.subr.bf16.mxu0 0
    %3679 = vmatpush1.bf16.msra.mxu0 0
    %3680 = vmatprep.mubr.bf16.mxu0 0
    %3681 = vmatmul.mubr.bf16.gmra.mrb[0].mxu0 %v3514
    %v3682 = vpop.f32.mrb[0].mxu0
    %v3683 = vadd.f32 0.0, %v3682
    %v3684 = vpop.f32.mrb[0].mxu0
    %v3685 = vadd.f32 0.0, %v3684
    %v3686 = vpop.f32.mrb[0].mxu0
    %v3687 = vadd.f32 0.0, %v3686
    %v3688 = vpop.f32.mrb[0].mxu0
    %v3689 = vadd.f32 0.0, %v3688
    %3690 = vmatprep.mubr.bf16.mxu0 0
    %3691 = vmatmul.mubr.bf16.gmra.mrb[0].mxu0 %v3515
    %v3692 = vpop.f32.mrb[0].mxu0
    %v3693 = vadd.f32 0.0, %v3692
    %v3694 = vpop.f32.mrb[0].mxu0
    %v3695 = vadd.f32 0.0, %v3694
    %v3696 = vpop.f32.mrb[0].mxu0
    %v3697 = vadd.f32 0.0, %v3696
    %v3698 = vpop.f32.mrb[0].mxu0
    %v3699 = vadd.f32 0.0, %v3698
    %3700 = vmatprep.mubr.bf16.mxu0 0
    %3701 = vmatmul.mubr.bf16.gmra.mrb[0].mxu0 %v3516
    %v3702 = vpop.f32.mrb[0].mxu0
    %v3703 = vadd.f32 0.0, %v3702
    %v3704 = vpop.f32.mrb[0].mxu0
    %v3705 = vadd.f32 0.0, %v3704
    %v3706 = vpop.f32.mrb[0].mxu0
    %v3707 = vadd.f32 0.0, %v3706
    %v3708 = vpop.f32.mrb[0].mxu0
    %v3709 = vadd.f32 0.0, %v3708
    %3710 = vmatprep.mubr.bf16.mxu0 0
    %3711 = vmatmul.mubr.bf16.gmra.mrb[0].mxu0 %v3517
    %v3712 = vpop.f32.mrb[0].mxu0
    %v3713 = vadd.f32 0.0, %v3712
    %v3714 = vpop.f32.mrb[0].mxu0
    %v3715 = vadd.f32 0.0, %v3714
    %v3716 = vpop.f32.mrb[0].mxu0
    %v3717 = vadd.f32 0.0, %v3716
    %v3718 = vpop.f32.mrb[0].mxu0
    %v3719 = vadd.f32 0.0, %v3718
    %3720 = vmatprep.mubr.bf16.mxu0 0
    %3721 = vmatmul.mubr.bf16.gmra.mrb[0].mxu0 %v3518
    %v3722 = vpop.f32.mrb[0].mxu0
    %v3723 = vadd.f32 0.0, %v3722
    %v3724 = vpop.f32.mrb[0].mxu0
    %v3725 = vadd.f32 0.0, %v3724
    %v3726 = vpop.f32.mrb[0].mxu0
    %v3727 = vadd.f32 0.0, %v3726
    %v3728 = vpop.f32.mrb[0].mxu0
    %v3729 = vadd.f32 0.0, %v3728
    %3730 = vmatprep.mubr.bf16.mxu0 0
    %3731 = vmatmul.mubr.bf16.gmra.mrb[0].mxu0 %v3519
    %v3732 = vpop.f32.mrb[0].mxu0
    %v3733 = vadd.f32 0.0, %v3732
    %v3734 = vpop.f32.mrb[0].mxu0
    %v3735 = vadd.f32 0.0, %v3734
    %v3736 = vpop.f32.mrb[0].mxu0
    %v3737 = vadd.f32 0.0, %v3736
    %v3738 = vpop.f32.mrb[0].mxu0
    %v3739 = vadd.f32 0.0, %v3738
    %3740 = vdwg.mxu0
    %3741 = vmatprep.subr.bf16.mxu0 0
    %3742 = vmatpush1.bf16.msra.mxu0 %v3602
    %3743 = vmatprep.subr.bf16.mxu0 0
    %3744 = vmatpush1.bf16.msra.mxu0 %v3605
    %3745 = vmatprep.subr.bf16.mxu0 0
    %3746 = vmatpush1.bf16.msra.mxu0 %v3608
    %3747 = vmatprep.subr.bf16.mxu0 0
    %3748 = vmatpush1.bf16.msra.mxu0 %v3611
    %3749 = vmatprep.subr.bf16.mxu0 0
    %3750 = vmatpush1.bf16.msra.mxu0 %v3614
    %3751 = vmatprep.subr.bf16.mxu0 0
    %3752 = vmatpush1.bf16.msra.mxu0 %v3617
    %3753 = vmatprep.subr.bf16.mxu0 0
    %3754 = vmatpush1.bf16.msra.mxu0 %v3620
    %3755 = vmatprep.subr.bf16.mxu0 0
    %3756 = vmatpush1.bf16.msra.mxu0 %v3623
    %3757 = vmatprep.subr.bf16.mxu0 0
    %3758 = vmatpush1.bf16.msra.mxu0 0
    %3759 = vmatprep.subr.bf16.mxu0 0
    %3760 = vmatpush1.bf16.msra.mxu0 0
    %3761 = vmatprep.subr.bf16.mxu0 0
    %3762 = vmatpush1.bf16.msra.mxu0 0
    %3763 = vmatprep.subr.bf16.mxu0 0
    %3764 = vmatpush1.bf16.msra.mxu0 0
    %3765 = vmatprep.subr.bf16.mxu0 0
    %3766 = vmatpush1.bf16.msra.mxu0 0
    %3767 = vmatprep.subr.bf16.mxu0 0
    %3768 = vmatpush1.bf16.msra.mxu0 0
    %3769 = vmatprep.subr.bf16.mxu0 0
    %3770 = vmatpush1.bf16.msra.mxu0 0
    %3771 = vmatprep.subr.bf16.mxu0 0
    %3772 = vmatpush1.bf16.msra.mxu0 0
    %3773 = vmatprep.mubr.bf16.mxu0 0
    %3774 = vmatmul.mubr.bf16.gmra.mrb[0].mxu0 %v3514
    %v3775 = vpop.f32.mrb[0].mxu0
    %v3776 = vadd.f32 0.0, %v3775
    %v3777 = vpop.f32.mrb[0].mxu0
    %v3778 = vpop.f32.mrb[0].mxu0
    %v3779 = vadd.f32 0.0, %v3778
    %v3780 = vpop.f32.mrb[0].mxu0
    %3781 = vmatprep.mubr.bf16.mxu0 0
    %3782 = vmatmul.mubr.bf16.gmra.mrb[0].mxu0 %v3515
    %v3783 = vpop.f32.mrb[0].mxu0
    %v3784 = vadd.f32 0.0, %v3783
    %v3785 = vpop.f32.mrb[0].mxu0
    %v3786 = vpop.f32.mrb[0].mxu0
    %v3787 = vadd.f32 0.0, %v3786
    %v3788 = vpop.f32.mrb[0].mxu0
    %3789 = vmatprep.mubr.bf16.mxu0 0
    %3790 = vmatmul.mubr.bf16.gmra.mrb[0].mxu0 %v3516
    %v3791 = vpop.f32.mrb[0].mxu0
    %v3792 = vadd.f32 0.0, %v3791
    %v3793 = vpop.f32.mrb[0].mxu0
    %v3794 = vpop.f32.mrb[0].mxu0
    %v3795 = vadd.f32 0.0, %v3794
    %v3796 = vpop.f32.mrb[0].mxu0
    %3797 = vmatprep.mubr.bf16.mxu0 0
    %3798 = vmatmul.mubr.bf16.gmra.mrb[0].mxu0 %v3517
    %v3799 = vpop.f32.mrb[0].mxu0
    %v3800 = vadd.f32 0.0, %v3799
    %v3801 = vpop.f32.mrb[0].mxu0
    %v3802 = vpop.f32.mrb[0].mxu0
    %v3803 = vadd.f32 0.0, %v3802
    %v3804 = vpop.f32.mrb[0].mxu0
    %3805 = vmatprep.mubr.bf16.mxu0 0
    %3806 = vmatmul.mubr.bf16.gmra.mrb[0].mxu0 %v3518
    %v3807 = vpop.f32.mrb[0].mxu0
    %v3808 = vadd.f32 0.0, %v3807
    %v3809 = vpop.f32.mrb[0].mxu0
    %v3810 = vpop.f32.mrb[0].mxu0
    %v3811 = vadd.f32 0.0, %v3810
    %v3812 = vpop.f32.mrb[0].mxu0
    %3813 = vmatprep.mubr.bf16.mxu0 0
    %3814 = vmatmul.mubr.bf16.gmra.mrb[0].mxu0 %v3519
    %v3815 = vpop.f32.mrb[0].mxu0
    %v3816 = vadd.f32 0.0, %v3815
    %v3817 = vpop.f32.mrb[0].mxu0
    %v3818 = vpop.f32.mrb[0].mxu0
    %v3819 = vadd.f32 0.0, %v3818
    %v3820 = vpop.f32.mrb[0].mxu0
    %3821 = vdwg.mxu0
    %v3823 = vlaneseq
    %v3824 = vshrl.u32 %v3823, 7
    %v3825 = vsub.s32 0, %v3824
    %v3826 = vrot.slane %v3405, %v3825
    %v3828 = vadd.f32 %v3685, %v3826
    %v3829 = vadd.f32 %v3689, %v3826
    %v3830 = vadd.f32 %v3695, %v3826
    %v3831 = vadd.f32 %v3699, %v3826
    %v3832 = vadd.f32 %v3705, %v3826
    %v3833 = vadd.f32 %v3709, %v3826
    %v3834 = vadd.f32 %v3715, %v3826
    %v3835 = vadd.f32 %v3719, %v3826
    %v3836 = vadd.f32 %v3725, %v3826
    %v3837 = vadd.f32 %v3729, %v3826
    %v3838 = vadd.f32 %v3735, %v3826
    %v3839 = vadd.f32 %v3739, %v3826
    %v3852 = vrot.slane %v3683, 4
    %v3853 = vrot.slane %v3687, 4
    %v3854 = vsel %vm3264, %v3852, %v3853
    %v3855 = vrot.slane %v3693, 4
    %v3856 = vrot.slane %v3697, 4
    %v3857 = vsel %vm3264, %v3855, %v3856
    %v3858 = vrot.slane %v3703, 4
    %v3859 = vrot.slane %v3707, 4
    %v3860 = vsel %vm3264, %v3858, %v3859
    %v3861 = vrot.slane %v3713, 4
    %v3862 = vrot.slane %v3717, 4
    %v3863 = vsel %vm3264, %v3861, %v3862
    %v3864 = vrot.slane %v3723, 4
    %v3865 = vrot.slane %v3727, 4
    %v3866 = vsel %vm3264, %v3864, %v3865
    %v3867 = vrot.slane %v3733, 4
    %v3868 = vrot.slane %v3737, 4
    %v3869 = vsel %vm3264, %v3867, %v3868
    %v3882 = vsel %vm3264, 0.0, %v3852
    %v3883 = vsel %vm3264, 0.0, %v3855
    %v3884 = vsel %vm3264, 0.0, %v3858
    %v3885 = vsel %vm3264, 0.0, %v3861
    %v3886 = vsel %vm3264, 0.0, %v3864
    %v3887 = vsel %vm3264, 0.0, %v3867
    %v3888 = vadd.f32 %v3828, %v3882
    %v3889 = vadd.f32 %v3829, %v3854
    %v3890 = vadd.f32 %v3830, %v3883
    %v3891 = vadd.f32 %v3831, %v3857
    %v3892 = vadd.f32 %v3832, %v3884
    %v3893 = vadd.f32 %v3833, %v3860
    %v3894 = vadd.f32 %v3834, %v3885
    %v3895 = vadd.f32 %v3835, %v3863
    %v3896 = vadd.f32 %v3836, %v3886
    %v3897 = vadd.f32 %v3837, %v3866
    %v3898 = vadd.f32 %v3838, %v3887
    %v3899 = vadd.f32 %v3839, %v3869
    %v3912 = vrot.slane %v3776, 4
    %v3913 = vrot.slane %v3779, 4
    %v3914 = vsel %vm3264, %v3912, %v3913
    %v3915 = vrot.slane %v3784, 4
    %v3916 = vrot.slane %v3787, 4
    %v3917 = vsel %vm3264, %v3915, %v3916
    %v3918 = vrot.slane %v3792, 4
    %v3919 = vrot.slane %v3795, 4
    %v3920 = vsel %vm3264, %v3918, %v3919
    %v3921 = vrot.slane %v3800, 4
    %v3922 = vrot.slane %v3803, 4
    %v3923 = vsel %vm3264, %v3921, %v3922
    %v3924 = vrot.slane %v3808, 4
    %v3925 = vrot.slane %v3811, 4
    %v3926 = vsel %vm3264, %v3924, %v3925
    %v3927 = vrot.slane %v3816, 4
    %v3928 = vrot.slane %v3819, 4
    %v3929 = vsel %vm3264, %v3927, %v3928
    %v3942 = vsel %vm3264, %v3913, 0.0
    %v3943 = vsel %vm3264, %v3916, 0.0
    %v3944 = vsel %vm3264, %v3919, 0.0
    %v3945 = vsel %vm3264, %v3922, 0.0
    %v3946 = vsel %vm3264, %v3925, 0.0
    %v3947 = vsel %vm3264, %v3928, 0.0
    %v3948 = vadd.f32 %v3888, %v3914
    %v3949 = vadd.f32 %v3889, %v3942
    %v3950 = vadd.f32 %v3890, %v3917
    %v3951 = vadd.f32 %v3891, %v3943
    %v3952 = vadd.f32 %v3892, %v3920
    %v3953 = vadd.f32 %v3893, %v3944
    %v3954 = vadd.f32 %v3894, %v3923
    %v3955 = vadd.f32 %v3895, %v3945
    %v3956 = vadd.f32 %v3896, %v3926
    %v3957 = vadd.f32 %v3897, %v3946
    %v3958 = vadd.f32 %v3898, %v3929
    %v3959 = vadd.f32 %v3899, %v3947
    %v3960 = vadd.f32 %v3948, %v2773
    %v3961 = vadd.f32 %v3949, %v2774
    %v3962 = vadd.f32 %v3950, %v2775
    %v3963 = vadd.f32 %v3951, %v2776
    %v3964 = vadd.f32 %v3952, %v2777
    %v3965 = vadd.f32 %v3953, %v2778
    %v3966 = vadd.f32 %v3954, %v2779
    %v3967 = vadd.f32 %v3955, %v2780
    %v3968 = vadd.f32 %v3956, %v2781
    %v3969 = vadd.f32 %v3957, %v2782
    %v3970 = vadd.f32 %v3958, %v2783
    %v3971 = vadd.f32 %v3959, %v2784
    %vm3972 = vcmask 261120
    %3973 = vst.msk [vmem:[#allocation10] sm:$0xff] %vm3972, %v3960
    %3974 = vst.msk [vmem:[#allocation10 + $0x8] sm:$0xff] %vm3972, %v3961
    %3975 = vst.msk [vmem:[#allocation10 + $0x10] sm:$0xff] %vm3972, %v3962
    %3976 = vst.msk [vmem:[#allocation10 + $0x18] sm:$0xff] %vm3972, %v3963
    %3977 = vst.msk [vmem:[#allocation10 + $0x20] sm:$0xff] %vm3972, %v3964
    %3978 = vst.msk [vmem:[#allocation10 + $0x28] sm:$0xff] %vm3972, %v3965
    %3979 = vst.msk [vmem:[#allocation10 + $0x30] sm:$0xff] %vm3972, %v3966
    %3980 = vst.msk [vmem:[#allocation10 + $0x38] sm:$0xff] %vm3972, %v3967
    %3981 = vst.msk [vmem:[#allocation10 + $0x40] sm:$0xff] %vm3972, %v3968
    %3982 = vst.msk [vmem:[#allocation10 + $0x48] sm:$0xff] %vm3972, %v3969
    %3983 = vst.msk [vmem:[#allocation10 + $0x50] sm:$0xff] %vm3972, %v3970
    %3984 = vst.msk [vmem:[#allocation10 + $0x58] sm:$0xff] %vm3972, %v3971
    // Predicated region
    $region70: #{ts_encoder_forward.1} parent=1 // pred_check
      _
    $region71: #{ts_encoder_forward.1} parent=1 // pred_check_branch
      %3986 = sbr.rel (0) target = $region73
    $region72: #{ts_encoder_forward.1} parent=1 // pred_region
      %s3988 = ssub.s32 1536, 1536
      %3989 = vsyncadd [#allocation4], %s3988
      %s3990 = sshll.u32 [#allocation10], 4
      %s3991 = int_to_ptr.vmem [resolvable:$true] %s3990
      %3996 = dma.vmem_to_hbm [thread:$0]  %s3991, 1536, %s13, [#allocation4], 128, 128, 8
    $region73: #{ts_encoder_forward.1} parent=1 // pred_fallthru
      _
    // Predicated region
    $region74: #{ts_encoder_forward.1} parent=1 // pred_check
      _
    $region75: #{ts_encoder_forward.1} parent=1 // pred_check_branch
      %3998 = sbr.rel (0) target = $region77
    $region76: #{ts_encoder_forward.1} parent=1 // pred_region
      %3999 = dma.done [#allocation4], 1536
    $region77: #{ts_encoder_forward.1} parent=1 // pred_fallthru
      _
    %4000 = vsyncpa [#allocation3], 1
    %4001 = vsyncpa [#allocation6], 1
    %4002 = vsyncpa [#allocation9], 1
    %4003 = vsyncpa [#allocation4], 1

</llo_original>
